<compile_context>
chip_gen: v7x
topology: tpu7x:2x2x1
jax: 0.10.0
libtpu: 0.0.40
codegen_flags: <defaults>
</compile_context>

<pallas_src>
import math

import jax
import jax.numpy as jnp
from jax import lax
from jax.experimental import pallas as pl
from jax.experimental.pallas import tpu as pltpu


# ---------------------------------------------------------------------------
# Kernel
# ---------------------------------------------------------------------------
def _make_kernel(num_heads, block_b, seq, dim, compute_dtype, approx_recip):
    H = num_heads
    D = dim
    Dh = D // H
    inv_sqrt2 = 1.0 / math.sqrt(2.0)
    nt = (((1,), (1,)), ((), ()))      # contract last dims: A @ B.T (no transpose op)

    def kernel(g_ref, r_ref, wg_ref, bg_ref, wr_ref, br_ref, wc_ref, bc_ref,
               o_ref, pg_sc, pr_sc, ho_sc):
        gf = g_ref[...].astype(compute_dtype)
        rf = r_ref[...].astype(compute_dtype)

        # Fused input projections: 2 matmuls instead of 6 (scale pre-folded).
        #   pg columns: [ q(g2r) | k(r2g) | v(r2g) ]
        #   pr columns: [ k(g2r) | v(g2r) | q(r2g) ]
        pg_sc[...] = (jnp.dot(gf, wg_ref[...], preferred_element_type=jnp.float32)
                      + bg_ref[0])
        pr_sc[...] = (jnp.dot(rf, wr_ref[...], preferred_element_type=jnp.float32)
                      + br_ref[0])

        def attend(q, k, v):
            qh = q.astype(compute_dtype)
            kh = k.astype(compute_dtype)
            vh = v.astype(compute_dtype)
            s = lax.dot_general(qh, kh, nt, preferred_element_type=jnp.float32)
            s = s - jnp.max(s, axis=-1, keepdims=True)
            p = jnp.exp(s)
            p = p * pl.reciprocal(jnp.sum(p, axis=-1, keepdims=True),
                                  approx=approx_recip)
            return jnp.dot(p.astype(compute_dtype), vh,
                           preferred_element_type=jnp.float32)

        def batch_body(b, carry):
            row = b * seq
            if not isinstance(b, int):
                row = pl.multiple_of(row, seq)
            rows = pl.ds(row, seq)
            pg_b = pg_sc[rows, :]              # (seq, 3D) lane-dense scratch reads
            pr_b = pr_sc[rows, :]
            heads = []
            for h in range(H):                 # static head loop: static lane offsets
                c0 = slice(h * Dh, (h + 1) * Dh)
                c1 = slice(D + h * Dh, D + (h + 1) * Dh)
                # g2r: query from g, key/value from r
                heads.append(attend(pg_b[:, c0], pr_b[:, c0], pr_b[:, c1]))
            for h in range(H):
                c1 = slice(D + h * Dh, D + (h + 1) * Dh)
                c2 = slice(2 * D + h * Dh, 2 * D + (h + 1) * Dh)
                # r2g: query from r, key/value from g
                heads.append(attend(pr_b[:, c2], pg_b[:, c1], pg_b[:, c2]))
            # One lane-dense (seq, 2D) store per batch element (no Dh-wide stores).
            ho_sc[rows, :] = jnp.concatenate(heads, axis=-1)
            return carry

        if block_b == 1:
            batch_body(0, 0)
        else:
            lax.fori_loop(0, block_b, batch_body, 0, unroll=min(block_b, 2))

        # Fused epilogue: both out-projections folded into the 2D -> D linear.
        x = (jnp.dot(ho_sc[...].astype(compute_dtype), wc_ref[...],
                     preferred_element_type=jnp.float32) + bc_ref[0])
        # exact (erf-based) GELU, matching nn.GELU default, in f32
        x = 0.5 * x * (1.0 + lax.erf(x * inv_sqrt2))
        o_ref[...] = x.astype(o_ref.dtype)

    return kernel


# ---------------------------------------------------------------------------
# Weight preparation (trace-time, runs once)
# ---------------------------------------------------------------------------
def _prep_weights(params, num_heads, compute_dtype):
    D = params["wo_g2r"].shape[0]
    Dh = D // num_heads
    scale = 1.0 / math.sqrt(Dh)

    def split_in_proj(w, b):
        b = b.reshape(-1)
        # PyTorch in_proj layout: rows [0:D]=Wq, [D:2D]=Wk, [2D:3D]=Wv applied as
        # x @ W.T  ->  transpose to (in_dim, out_dim).
        return w[:D].T, w[D:2 * D].T, w[2 * D:].T, b[:D], b[D:2 * D], b[2 * D:]

    wq_a, wk_a, wv_a, bq_a, bk_a, bv_a = split_in_proj(params["w_g2r"], params["b_g2r"])
    wq_b, wk_b, wv_b, bq_b, bk_b, bv_b = split_in_proj(params["w_r2g"], params["b_r2g"])

    # Fold the 1/sqrt(Dh) attention scale into both query projections.
    wq_a = wq_a * scale
    bq_a = bq_a * scale
    wq_b = wq_b * scale
    bq_b = bq_b * scale

    # Fused input projections (6 -> 2):
    #   g rows:  pg = g @ Wg + bg, columns [ q_g2r | k_r2g | v_r2g ]
    #   r rows:  pr = r @ Wr + br, columns [ k_g2r | v_g2r | q_r2g ]
    wg = jnp.concatenate([wq_a, wk_b, wv_b], axis=1)               # (D, 3D)
    bg = jnp.concatenate([bq_a, bk_b, bv_b]).reshape(1, 3 * D)
    wr = jnp.concatenate([wk_a, wv_a, wq_b], axis=1)               # (D, 3D)
    br = jnp.concatenate([bk_a, bv_a, bq_b]).reshape(1, 3 * D)

    # Fold both MHA out-projections into the final concat+linear:
    #   (a @ Wo.T + bo) @ Wp_half == a @ (Wo.T @ Wp_half) + bo @ Wp_half
    wp = params["wp"]                      # (D, 2D), applied as x @ wp.T
    wp1 = wp[:, :D].T                      # (D, D)  acts on g2r output
    wp2 = wp[:, D:].T                      # (D, D)  acts on r2g output
    wcomb = jnp.concatenate([params["wo_g2r"].T @ wp1,
                             params["wo_r2g"].T @ wp2], axis=0)    # (2D, D)
    bcomb = (params["bo_g2r"].reshape(-1) @ wp1
             + params["bo_r2g"].reshape(-1) @ wp2
             + params["bp"].reshape(-1)).reshape(1, D)

    cd = compute_dtype
    return (wg.astype(cd), bg.astype(jnp.float32),
            wr.astype(cd), br.astype(jnp.float32),
            wcomb.astype(cd), bcomb.astype(jnp.float32))


def _pick_block_b(B, S, sublane, row_target, min_grid):
    """Batch block: layout-feasible, prefer >= min_grid grid steps and
    the largest row count that still fits row_target."""
    feasible = [d for d in range(1, B + 1)
                if B % d == 0 and (d == B or (d * S) % sublane == 0)]

    def score(d):
        rows = d * S
        fits = rows <= row_target
        return ((B // d) >= min_grid, fits, rows if fits else -rows)

    return max(feasible, key=score)


# ---------------------------------------------------------------------------
# Wrapper
# ---------------------------------------------------------------------------
def cross_modal_attention(g, r, params, num_heads, *,
                          block_b=None, compute_dtype=jnp.bfloat16,
                          approx_recip=None, out_dtype=None,
                          row_target=None, min_grid=None,
                          vmem_limit_bytes=None, single_buffer_weights=True):
    """g, r: (B, S, D) float32.  params: PyTorch-layout weights (see init_params)."""
    B, S, D = g.shape
    assert r.shape == (B, S, D)
    assert D % num_heads == 0, "embed dim must be divisible by num_heads"

    if out_dtype is None:
        out_dtype = g.dtype
    if approx_recip is None:
        approx_recip = (compute_dtype != jnp.float32)

    kind = ""
    try:
        kind = jax.devices()[0].device_kind.lower()
    except Exception:
        pass
    if row_target is None:
        # v6e's 256-wide MXU benefits from ~256-row slabs; 128 elsewhere.
        row_target = 256 if "v6" in kind else 128
    if min_grid is None:
        # Keep >= 2 grid steps on 2-TensorCore chips (v7x) so both cores work.
        min_grid = 2 if ("v7" in kind or "7x" in kind) else 1
    if vmem_limit_bytes is None and not any(v in kind for v in ("v2", "v3")):
        # Raise the scoped-VMEM ceiling (16 MiB default on v5e, 32 MiB v6e/v7x);
        # 48 MiB stays under every current generation's physical VMEM.
        vmem_limit_bytes = 48 * 1024 * 1024

    # Cast activations to the compute dtype in the wrapper when the row blocks
    # satisfy its sublane packing (R % 16 for bf16) -- halves activation DMA.
    sub_c = {1: 32, 2: 16}.get(jnp.dtype(compute_dtype).itemsize, 8)
    in_dtype = g.dtype
    if block_b is None:
        pick_c = _pick_block_b(B, S, sub_c, row_target, min_grid)  # compute-dtype inputs
        pick_f = _pick_block_b(B, S, 8, row_target, min_grid)      # f32 inputs
        if pick_c * S <= max(row_target, pick_f * S):
            block_b, in_dtype = pick_c, compute_dtype
        else:
            block_b, in_dtype = pick_f, g.dtype
    else:
        assert B % block_b == 0
        Rchk = block_b * S
        assert Rchk % 8 == 0 or block_b == B, "row block must be a multiple of 8"
        if Rchk % sub_c == 0 or block_b == B:
            in_dtype = compute_dtype
    R = block_b * S

    weights = _prep_weights(params, num_heads, compute_dtype)

    # Flatten (B, S, D) -> (B*S, D) and cast in the wrapper (free, contiguous).
    gf = g.reshape(B * S, D).astype(in_dtype)
    rf = r.reshape(B * S, D).astype(in_dtype)

    act_spec = pl.BlockSpec((R, D), lambda i: (i, 0))
    out_spec = pl.BlockSpec((R, D), lambda i: (i, 0))

    def weight_spec(a):
        idx = lambda i: (0,) * a.ndim
        if single_buffer_weights and hasattr(pl, "Buffered"):
            try:
                # Grid-invariant weights: single VMEM buffer, fetched once.
                return pl.BlockSpec(a.shape, idx, pipeline_mode=pl.Buffered(1))
            except Exception:
                pass
        return pl.BlockSpec(a.shape, idx)

    kernel = _make_kernel(num_heads, block_b, S, D, compute_dtype, approx_recip)
    out = pl.pallas_call(
        kernel,
        out_shape=jax.ShapeDtypeStruct((B * S, D), out_dtype),
        grid_spec=pltpu.PrefetchScalarGridSpec(
            num_scalar_prefetch=0,
            grid=(B // block_b,),
            in_specs=[act_spec, act_spec] + [weight_spec(a) for a in weights],
            out_specs=out_spec,
            scratch_shapes=[pltpu.VMEM((R, 3 * D), jnp.float32),   # pg (fused qkv of g)
                            pltpu.VMEM((R, 3 * D), jnp.float32),   # pr (fused qkv of r)
                            pltpu.VMEM((R, 2 * D), jnp.float32)],  # merged head outputs
        ),
        compiler_params=pltpu.CompilerParams(
            dimension_semantics=("parallel",),
            vmem_limit_bytes=vmem_limit_bytes),
    )(gf, rf, *weights)
    return out.reshape(B, S, D)


# ---------------------------------------------------------------------------
# Pure-JAX reference (mirrors nn.MultiheadAttention math) for validation.
# ---------------------------------------------------------------------------
def _mha_ref(q_in, kv_in, w, b, wo, bo, num_heads):
    B, Sq, D = q_in.shape
    Sk = kv_in.shape[1]
    Dh = D // num_heads
    q = q_in @ w[:D].T + b[:D]
    k = kv_in @ w[D:2 * D].T + b[D:2 * D]
    v = kv_in @ w[2 * D:].T + b[2 * D:]
    q = q.reshape(B, Sq, num_heads, Dh).transpose(0, 2, 1, 3)
    k = k.reshape(B, Sk, num_heads, Dh).transpose(0, 2, 1, 3)
    v = v.reshape(B, Sk, num_heads, Dh).transpose(0, 2, 1, 3)
    s = jnp.einsum("bhqd,bhkd->bhqk", q, k) / math.sqrt(Dh)
    p = jax.nn.softmax(s, axis=-1)
    o = jnp.einsum("bhqk,bhkd->bhqd", p, v)
    o = o.transpose(0, 2, 1, 3).reshape(B, Sq, D)
    return o @ wo.T + bo


def cross_modal_attention_ref(g, r, params, num_heads):
    g2r = _mha_ref(g, r, params["w_g2r"], params["b_g2r"][0],
                   params["wo_g2r"], params["bo_g2r"][0], num_heads)
    r2g = _mha_ref(r, g, params["w_r2g"], params["b_r2g"][0],
                   params["wo_r2g"], params["bo_r2g"][0], num_heads)
    x = jnp.concatenate([g2r, r2g], axis=-1) @ params["wp"].T + params["bp"][0]
    return 0.5 * x * (1.0 + jax.lax.erf(x / math.sqrt(2.0)))


# ---------------------------------------------------------------------------
def init_params(key, dim):
    ks = jax.random.split(key, 8)
    n = lambda k, shape: (0.02 * jax.random.normal(k, shape)).astype(jnp.float32)
    return {
        "w_g2r": n(ks[0], (3 * dim, dim)),
        "b_g2r": n(ks[1], (1, 3 * dim)),
        "wo_g2r": n(ks[2], (dim, dim)),
        "bo_g2r": jnp.zeros((1, dim), jnp.float32),
        "w_r2g": n(ks[3], (3 * dim, dim)),
        "b_r2g": n(ks[4], (1, 3 * dim)),
        "wo_r2g": n(ks[5], (dim, dim)),
        "bo_r2g": jnp.zeros((1, dim), jnp.float32),
        "wp": n(ks[6], (dim, 2 * dim)),
        "bp": n(ks[7], (1, dim)),
    }


if __name__ == "__main__":
    B, S, D, H = 2, 8, 32, 4  # batch, seq, embed dim, num_heads

    key = jax.random.PRNGKey(0)
    kg, kr, kp = jax.random.split(key, 3)
    g = jax.random.normal(kg, (B, S, D), dtype=jnp.float32)
    r = jax.random.normal(kr, (B, S, D), dtype=jnp.float32)
    params = init_params(kp, D)

    ref = cross_modal_attention_ref(g, r, params, H)

    # Strict numerics check: f32 MXU operands, exact softmax reciprocal.
    out_f32 = jax.block_until_ready(
        cross_modal_attention(g, r, params, H, compute_dtype=jnp.float32))
    assert out_f32.shape == (B, S, D)
    err32 = jnp.max(jnp.abs(out_f32 - ref))
    assert jnp.allclose(out_f32, ref, atol=1e-4, rtol=1e-4), f"f32 max abs err {err32}"

    # Fast path: bf16 MXU operands (and bf16 activation DMA) with f32 accumulation.
    out_bf16 = jax.block_until_ready(
        cross_modal_attention(g, r, params, H, compute_dtype=jnp.bfloat16))
    assert out_bf16.shape == (B, S, D)
    err16 = jnp.max(jnp.abs(out_bf16 - ref))
    assert jnp.allclose(out_bf16, ref, atol=3e-2, rtol=3e-2), f"bf16 max abs err {err16}"

    print("KERNEL_OK")
</pallas_src>

<mosaic_0001>
module attributes {stable_mosaic.version = 11 : i64} {
  func.func @kernel(%arg0: i32, %arg1: memref<16x32xf32, #tpu.memory_space<vmem>>, %arg2: memref<16x32xf32, #tpu.memory_space<vmem>>, %arg3: memref<32x96xf32, #tpu.memory_space<vmem>>, %arg4: memref<1x96xf32, #tpu.memory_space<vmem>>, %arg5: memref<32x96xf32, #tpu.memory_space<vmem>>, %arg6: memref<1x96xf32, #tpu.memory_space<vmem>>, %arg7: memref<64x32xf32, #tpu.memory_space<vmem>>, %arg8: memref<1x32xf32, #tpu.memory_space<vmem>>, %arg9: memref<16x32xf32, #tpu.memory_space<vmem>>, %arg10: memref<16x96xf32, #tpu.memory_space<vmem>>, %arg11: memref<16x96xf32, #tpu.memory_space<vmem>>, %arg12: memref<16x64xf32, #tpu.memory_space<vmem>>) attributes {dimension_semantics = [#tpu.dimension_semantics<parallel>], iteration_bounds = array<i64: 1>, scalar_prefetch = 0 : i64, scratch_operands = 3 : i64, tpu.core_type = #tpu.core_type<tc>, window_params = [{transform_indices = @transform_0, window_bounds = array<i64: 16, 32>}, {transform_indices = @transform_1, window_bounds = array<i64: 16, 32>}, {pipeline_mode = #tpu.pipeline_mode<synchronous>, transform_indices = @transform_2, window_bounds = array<i64: 32, 96>}, {pipeline_mode = #tpu.pipeline_mode<synchronous>, transform_indices = @transform_3, window_bounds = array<i64: 1, 96>}, {pipeline_mode = #tpu.pipeline_mode<synchronous>, transform_indices = @transform_4, window_bounds = array<i64: 32, 96>}, {pipeline_mode = #tpu.pipeline_mode<synchronous>, transform_indices = @transform_5, window_bounds = array<i64: 1, 96>}, {pipeline_mode = #tpu.pipeline_mode<synchronous>, transform_indices = @transform_6, window_bounds = array<i64: 64, 32>}, {pipeline_mode = #tpu.pipeline_mode<synchronous>, transform_indices = @transform_7, window_bounds = array<i64: 1, 32>}, {transform_indices = @transform_8, window_bounds = array<i64: 16, 32>}]} {
    %c0 = arith.constant 0 : index
    %c0_0 = arith.constant 0 : index
    %0 = vector.load %arg1[%c0, %c0_0] : memref<16x32xf32, #tpu.memory_space<vmem>>, vector<16x32xf32>
    %c0_1 = arith.constant 0 : index
    %c0_2 = arith.constant 0 : index
    %1 = vector.load %arg2[%c0_1, %c0_2] : memref<16x32xf32, #tpu.memory_space<vmem>>, vector<16x32xf32>
    %c0_3 = arith.constant 0 : index
    %c0_4 = arith.constant 0 : index
    %2 = vector.load %arg3[%c0_3, %c0_4] : memref<32x96xf32, #tpu.memory_space<vmem>>, vector<32x96xf32>
    %cst = arith.constant dense<0.000000e+00> : vector<16x96xf32>
    %3 = tpu.matmul %0, %2, %cst {dimension_numbers = #tpu.dot_dimension_numbers<[1], [0], [0], [1], [0, 0, 1, 1], [], []>} : vector<16x32xf32>, vector<32x96xf32>, vector<16x96xf32> -> vector<16x96xf32>
    %c0_5 = arith.constant 0 : index
    %c0_6 = arith.constant 0 : index
    %4 = vector.load %arg4[%c0_5, %c0_6] : memref<1x96xf32, #tpu.memory_space<vmem>>, vector<1x96xf32>
    %5 = vector.shape_cast %4 : vector<1x96xf32> to vector<96xf32>
    %6 = vector.shape_cast %5 : vector<96xf32> to vector<1x96xf32>
    %7 = vector.broadcast %6 : vector<1x96xf32> to vector<16x96xf32>
    %8 = arith.addf %3, %7 : vector<16x96xf32>
    %c0_7 = arith.constant 0 : index
    %c0_8 = arith.constant 0 : index
    %9 = vector.load %arg10[%c0_7, %c0_8] : memref<16x96xf32, #tpu.memory_space<vmem>>, vector<16x96xf32>
    tpu.vector_store %arg10[%c0_7, %c0_8], %8 {strides = array<i32>} : memref<16x96xf32, #tpu.memory_space<vmem>>, vector<16x96xf32>,
    %c0_9 = arith.constant 0 : index
    %c0_10 = arith.constant 0 : index
    %10 = vector.load %arg5[%c0_9, %c0_10] : memref<32x96xf32, #tpu.memory_space<vmem>>, vector<32x96xf32>
    %cst_11 = arith.constant dense<0.000000e+00> : vector<16x96xf32>
    %11 = tpu.matmul %1, %10, %cst_11 {dimension_numbers = #tpu.dot_dimension_numbers<[1], [0], [0], [1], [0, 0, 1, 1], [], []>} : vector<16x32xf32>, vector<32x96xf32>, vector<16x96xf32> -> vector<16x96xf32>
    %c0_12 = arith.constant 0 : index
    %c0_13 = arith.constant 0 : index
    %12 = vector.load %arg6[%c0_12, %c0_13] : memref<1x96xf32, #tpu.memory_space<vmem>>, vector<1x96xf32>
    %13 = vector.shape_cast %12 : vector<1x96xf32> to vector<96xf32>
    %14 = vector.shape_cast %13 : vector<96xf32> to vector<1x96xf32>
    %15 = vector.broadcast %14 : vector<1x96xf32> to vector<16x96xf32>
    %16 = arith.addf %11, %15 : vector<16x96xf32>
    %c0_14 = arith.constant 0 : index
    %c0_15 = arith.constant 0 : index
    %17 = vector.load %arg11[%c0_14, %c0_15] : memref<16x96xf32, #tpu.memory_space<vmem>>, vector<16x96xf32>
    tpu.vector_store %arg11[%c0_14, %c0_15], %16 {strides = array<i32>} : memref<16x96xf32, #tpu.memory_space<vmem>>, vector<16x96xf32>,
    %c0_i32 = arith.constant 0 : i32
    %c8_i32 = arith.constant 8 : i32
    %18 = arith.muli %c0_i32, %c8_i32 : i32
    %19 = tpu.assume_multiple %18, 8 : i32
    %20 = arith.index_cast %19 : i32 to index
    %c0_16 = arith.constant 0 : index
    %21 = vector.load %arg10[%20, %c0_16] : memref<16x96xf32, #tpu.memory_space<vmem>>, vector<8x96xf32>
    %22 = arith.index_cast %19 : i32 to index
    %c0_17 = arith.constant 0 : index
    %23 = vector.load %arg11[%22, %c0_17] : memref<16x96xf32, #tpu.memory_space<vmem>>, vector<8x96xf32>
    %24 = vector.extract_strided_slice %21 {offsets = [0, 0], sizes = [8, 8], strides = [1, 1]} : vector<8x96xf32> to vector<8x8xf32>
    %25 = vector.extract_strided_slice %23 {offsets = [0, 0], sizes = [8, 8], strides = [1, 1]} : vector<8x96xf32> to vector<8x8xf32>
    %26 = vector.extract_strided_slice %23 {offsets = [0, 32], sizes = [8, 8], strides = [1, 1]} : vector<8x96xf32> to vector<8x8xf32>
    %cst_18 = arith.constant dense<0.000000e+00> : vector<8x8xf32>
    %27 = tpu.matmul %24, %25, %cst_18 {dimension_numbers = #tpu.dot_dimension_numbers<[1], [1], [0], [0], [0, 0, 1, 0], [], []>} : vector<8x8xf32>, vector<8x8xf32>, vector<8x8xf32> -> vector<8x8xf32>
    %cst_19 = arith.constant dense<0xFF800000> : vector<8xf32>
    %28 = vector.multi_reduction <maximumf>, %27, %cst_19 [1] : vector<8x8xf32> to vector<8xf32>
    %29 = vector.shape_cast %28 : vector<8xf32> to vector<8x1xf32>
    %30 = vector.broadcast %29 : vector<8x1xf32> to vector<8x8xf32>
    %31 = arith.subf %27, %30 : vector<8x8xf32>
    %32 = math.exp %31 : vector<8x8xf32>
    %cst_20 = arith.constant dense<0.000000e+00> : vector<8xf32>
    %33 = vector.multi_reduction <add>, %32, %cst_20 [1] : vector<8x8xf32> to vector<8xf32>
    %34 = vector.shape_cast %33 : vector<8xf32> to vector<8x1xf32>
    %35 = tpu.reciprocal %34 : vector<8x1xf32> -> vector<8x1xf32>
    %36 = vector.broadcast %35 : vector<8x1xf32> to vector<8x8xf32>
    %37 = arith.mulf %32, %36 : vector<8x8xf32>
    %cst_21 = arith.constant dense<0.000000e+00> : vector<8x8xf32>
    %38 = tpu.matmul %37, %26, %cst_21 {dimension_numbers = #tpu.dot_dimension_numbers<[1], [0], [0], [1], [0, 0, 1, 1], [], []>} : vector<8x8xf32>, vector<8x8xf32>, vector<8x8xf32> -> vector<8x8xf32>
    %39 = vector.extract_strided_slice %21 {offsets = [0, 8], sizes = [8, 8], strides = [1, 1]} : vector<8x96xf32> to vector<8x8xf32>
    %40 = vector.extract_strided_slice %23 {offsets = [0, 8], sizes = [8, 8], strides = [1, 1]} : vector<8x96xf32> to vector<8x8xf32>
    %41 = vector.extract_strided_slice %23 {offsets = [0, 40], sizes = [8, 8], strides = [1, 1]} : vector<8x96xf32> to vector<8x8xf32>
    %cst_22 = arith.constant dense<0.000000e+00> : vector<8x8xf32>
    %42 = tpu.matmul %39, %40, %cst_22 {dimension_numbers = #tpu.dot_dimension_numbers<[1], [1], [0], [0], [0, 0, 1, 0], [], []>} : vector<8x8xf32>, vector<8x8xf32>, vector<8x8xf32> -> vector<8x8xf32>
    %cst_23 = arith.constant dense<0xFF800000> : vector<8xf32>
    %43 = vector.multi_reduction <maximumf>, %42, %cst_23 [1] : vector<8x8xf32> to vector<8xf32>
    %44 = vector.shape_cast %43 : vector<8xf32> to vector<8x1xf32>
    %45 = vector.broadcast %44 : vector<8x1xf32> to vector<8x8xf32>
    %46 = arith.subf %42, %45 : vector<8x8xf32>
    %47 = math.exp %46 : vector<8x8xf32>
    %cst_24 = arith.constant dense<0.000000e+00> : vector<8xf32>
    %48 = vector.multi_reduction <add>, %47, %cst_24 [1] : vector<8x8xf32> to vector<8xf32>
    %49 = vector.shape_cast %48 : vector<8xf32> to vector<8x1xf32>
    %50 = tpu.reciprocal %49 : vector<8x1xf32> -> vector<8x1xf32>
    %51 = vector.broadcast %50 : vector<8x1xf32> to vector<8x8xf32>
    %52 = arith.mulf %47, %51 : vector<8x8xf32>
    %cst_25 = arith.constant dense<0.000000e+00> : vector<8x8xf32>
    %53 = tpu.matmul %52, %41, %cst_25 {dimension_numbers = #tpu.dot_dimension_numbers<[1], [0], [0], [1], [0, 0, 1, 1], [], []>} : vector<8x8xf32>, vector<8x8xf32>, vector<8x8xf32> -> vector<8x8xf32>
    %54 = vector.extract_strided_slice %21 {offsets = [0, 16], sizes = [8, 8], strides = [1, 1]} : vector<8x96xf32> to vector<8x8xf32>
    %55 = vector.extract_strided_slice %23 {offsets = [0, 16], sizes = [8, 8], strides = [1, 1]} : vector<8x96xf32> to vector<8x8xf32>
    %56 = vector.extract_strided_slice %23 {offsets = [0, 48], sizes = [8, 8], strides = [1, 1]} : vector<8x96xf32> to vector<8x8xf32>
    %cst_26 = arith.constant dense<0.000000e+00> : vector<8x8xf32>
    %57 = tpu.matmul %54, %55, %cst_26 {dimension_numbers = #tpu.dot_dimension_numbers<[1], [1], [0], [0], [0, 0, 1, 0], [], []>} : vector<8x8xf32>, vector<8x8xf32>, vector<8x8xf32> -> vector<8x8xf32>
    %cst_27 = arith.constant dense<0xFF800000> : vector<8xf32>
    %58 = vector.multi_reduction <maximumf>, %57, %cst_27 [1] : vector<8x8xf32> to vector<8xf32>
    %59 = vector.shape_cast %58 : vector<8xf32> to vector<8x1xf32>
    %60 = vector.broadcast %59 : vector<8x1xf32> to vector<8x8xf32>
    %61 = arith.subf %57, %60 : vector<8x8xf32>
    %62 = math.exp %61 : vector<8x8xf32>
    %cst_28 = arith.constant dense<0.000000e+00> : vector<8xf32>
    %63 = vector.multi_reduction <add>, %62, %cst_28 [1] : vector<8x8xf32> to vector<8xf32>
    %64 = vector.shape_cast %63 : vector<8xf32> to vector<8x1xf32>
    %65 = tpu.reciprocal %64 : vector<8x1xf32> -> vector<8x1xf32>
    %66 = vector.broadcast %65 : vector<8x1xf32> to vector<8x8xf32>
    %67 = arith.mulf %62, %66 : vector<8x8xf32>
    %cst_29 = arith.constant dense<0.000000e+00> : vector<8x8xf32>
    %68 = tpu.matmul %67, %56, %cst_29 {dimension_numbers = #tpu.dot_dimension_numbers<[1], [0], [0], [1], [0, 0, 1, 1], [], []>} : vector<8x8xf32>, vector<8x8xf32>, vector<8x8xf32> -> vector<8x8xf32>
    %69 = vector.extract_strided_slice %21 {offsets = [0, 24], sizes = [8, 8], strides = [1, 1]} : vector<8x96xf32> to vector<8x8xf32>
    %70 = vector.extract_strided_slice %23 {offsets = [0, 24], sizes = [8, 8], strides = [1, 1]} : vector<8x96xf32> to vector<8x8xf32>
    %71 = vector.extract_strided_slice %23 {offsets = [0, 56], sizes = [8, 8], strides = [1, 1]} : vector<8x96xf32> to vector<8x8xf32>
    %cst_30 = arith.constant dense<0.000000e+00> : vector<8x8xf32>
    %72 = tpu.matmul %69, %70, %cst_30 {dimension_numbers = #tpu.dot_dimension_numbers<[1], [1], [0], [0], [0, 0, 1, 0], [], []>} : vector<8x8xf32>, vector<8x8xf32>, vector<8x8xf32> -> vector<8x8xf32>
    %cst_31 = arith.constant dense<0xFF800000> : vector<8xf32>
    %73 = vector.multi_reduction <maximumf>, %72, %cst_31 [1] : vector<8x8xf32> to vector<8xf32>
    %74 = vector.shape_cast %73 : vector<8xf32> to vector<8x1xf32>
    %75 = vector.broadcast %74 : vector<8x1xf32> to vector<8x8xf32>
    %76 = arith.subf %72, %75 : vector<8x8xf32>
    %77 = math.exp %76 : vector<8x8xf32>
    %cst_32 = arith.constant dense<0.000000e+00> : vector<8xf32>
    %78 = vector.multi_reduction <add>, %77, %cst_32 [1] : vector<8x8xf32> to vector<8xf32>
    %79 = vector.shape_cast %78 : vector<8xf32> to vector<8x1xf32>
    %80 = tpu.reciprocal %79 : vector<8x1xf32> -> vector<8x1xf32>
    %81 = vector.broadcast %80 : vector<8x1xf32> to vector<8x8xf32>
    %82 = arith.mulf %77, %81 : vector<8x8xf32>
    %cst_33 = arith.constant dense<0.000000e+00> : vector<8x8xf32>
    %83 = tpu.matmul %82, %71, %cst_33 {dimension_numbers = #tpu.dot_dimension_numbers<[1], [0], [0], [1], [0, 0, 1, 1], [], []>} : vector<8x8xf32>, vector<8x8xf32>, vector<8x8xf32> -> vector<8x8xf32>
    %84 = vector.extract_strided_slice %23 {offsets = [0, 64], sizes = [8, 8], strides = [1, 1]} : vector<8x96xf32> to vector<8x8xf32>
    %85 = vector.extract_strided_slice %21 {offsets = [0, 32], sizes = [8, 8], strides = [1, 1]} : vector<8x96xf32> to vector<8x8xf32>
    %86 = vector.extract_strided_slice %21 {offsets = [0, 64], sizes = [8, 8], strides = [1, 1]} : vector<8x96xf32> to vector<8x8xf32>
    %cst_34 = arith.constant dense<0.000000e+00> : vector<8x8xf32>
    %87 = tpu.matmul %84, %85, %cst_34 {dimension_numbers = #tpu.dot_dimension_numbers<[1], [1], [0], [0], [0, 0, 1, 0], [], []>} : vector<8x8xf32>, vector<8x8xf32>, vector<8x8xf32> -> vector<8x8xf32>
    %cst_35 = arith.constant dense<0xFF800000> : vector<8xf32>
    %88 = vector.multi_reduction <maximumf>, %87, %cst_35 [1] : vector<8x8xf32> to vector<8xf32>
    %89 = vector.shape_cast %88 : vector<8xf32> to vector<8x1xf32>
    %90 = vector.broadcast %89 : vector<8x1xf32> to vector<8x8xf32>
    %91 = arith.subf %87, %90 : vector<8x8xf32>
    %92 = math.exp %91 : vector<8x8xf32>
    %cst_36 = arith.constant dense<0.000000e+00> : vector<8xf32>
    %93 = vector.multi_reduction <add>, %92, %cst_36 [1] : vector<8x8xf32> to vector<8xf32>
    %94 = vector.shape_cast %93 : vector<8xf32> to vector<8x1xf32>
    %95 = tpu.reciprocal %94 : vector<8x1xf32> -> vector<8x1xf32>
    %96 = vector.broadcast %95 : vector<8x1xf32> to vector<8x8xf32>
    %97 = arith.mulf %92, %96 : vector<8x8xf32>
    %cst_37 = arith.constant dense<0.000000e+00> : vector<8x8xf32>
    %98 = tpu.matmul %97, %86, %cst_37 {dimension_numbers = #tpu.dot_dimension_numbers<[1], [0], [0], [1], [0, 0, 1, 1], [], []>} : vector<8x8xf32>, vector<8x8xf32>, vector<8x8xf32> -> vector<8x8xf32>
    %99 = vector.extract_strided_slice %23 {offsets = [0, 72], sizes = [8, 8], strides = [1, 1]} : vector<8x96xf32> to vector<8x8xf32>
    %100 = vector.extract_strided_slice %21 {offsets = [0, 40], sizes = [8, 8], strides = [1, 1]} : vector<8x96xf32> to vector<8x8xf32>
    %101 = vector.extract_strided_slice %21 {offsets = [0, 72], sizes = [8, 8], strides = [1, 1]} : vector<8x96xf32> to vector<8x8xf32>
    %cst_38 = arith.constant dense<0.000000e+00> : vector<8x8xf32>
    %102 = tpu.matmul %99, %100, %cst_38 {dimension_numbers = #tpu.dot_dimension_numbers<[1], [1], [0], [0], [0, 0, 1, 0], [], []>} : vector<8x8xf32>, vector<8x8xf32>, vector<8x8xf32> -> vector<8x8xf32>
    %cst_39 = arith.constant dense<0xFF800000> : vector<8xf32>
    %103 = vector.multi_reduction <maximumf>, %102, %cst_39 [1] : vector<8x8xf32> to vector<8xf32>
    %104 = vector.shape_cast %103 : vector<8xf32> to vector<8x1xf32>
    %105 = vector.broadcast %104 : vector<8x1xf32> to vector<8x8xf32>
    %106 = arith.subf %102, %105 : vector<8x8xf32>
    %107 = math.exp %106 : vector<8x8xf32>
    %cst_40 = arith.constant dense<0.000000e+00> : vector<8xf32>
    %108 = vector.multi_reduction <add>, %107, %cst_40 [1] : vector<8x8xf32> to vector<8xf32>
    %109 = vector.shape_cast %108 : vector<8xf32> to vector<8x1xf32>
    %110 = tpu.reciprocal %109 : vector<8x1xf32> -> vector<8x1xf32>
    %111 = vector.broadcast %110 : vector<8x1xf32> to vector<8x8xf32>
    %112 = arith.mulf %107, %111 : vector<8x8xf32>
    %cst_41 = arith.constant dense<0.000000e+00> : vector<8x8xf32>
    %113 = tpu.matmul %112, %101, %cst_41 {dimension_numbers = #tpu.dot_dimension_numbers<[1], [0], [0], [1], [0, 0, 1, 1], [], []>} : vector<8x8xf32>, vector<8x8xf32>, vector<8x8xf32> -> vector<8x8xf32>
    %114 = vector.extract_strided_slice %23 {offsets = [0, 80], sizes = [8, 8], strides = [1, 1]} : vector<8x96xf32> to vector<8x8xf32>
    %115 = vector.extract_strided_slice %21 {offsets = [0, 48], sizes = [8, 8], strides = [1, 1]} : vector<8x96xf32> to vector<8x8xf32>
    %116 = vector.extract_strided_slice %21 {offsets = [0, 80], sizes = [8, 8], strides = [1, 1]} : vector<8x96xf32> to vector<8x8xf32>
    %cst_42 = arith.constant dense<0.000000e+00> : vector<8x8xf32>
    %117 = tpu.matmul %114, %115, %cst_42 {dimension_numbers = #tpu.dot_dimension_numbers<[1], [1], [0], [0], [0, 0, 1, 0], [], []>} : vector<8x8xf32>, vector<8x8xf32>, vector<8x8xf32> -> vector<8x8xf32>
    %cst_43 = arith.constant dense<0xFF800000> : vector<8xf32>
    %118 = vector.multi_reduction <maximumf>, %117, %cst_43 [1] : vector<8x8xf32> to vector<8xf32>
    %119 = vector.shape_cast %118 : vector<8xf32> to vector<8x1xf32>
    %120 = vector.broadcast %119 : vector<8x1xf32> to vector<8x8xf32>
    %121 = arith.subf %117, %120 : vector<8x8xf32>
    %122 = math.exp %121 : vector<8x8xf32>
    %cst_44 = arith.constant dense<0.000000e+00> : vector<8xf32>
    %123 = vector.multi_reduction <add>, %122, %cst_44 [1] : vector<8x8xf32> to vector<8xf32>
    %124 = vector.shape_cast %123 : vector<8xf32> to vector<8x1xf32>
    %125 = tpu.reciprocal %124 : vector<8x1xf32> -> vector<8x1xf32>
    %126 = vector.broadcast %125 : vector<8x1xf32> to vector<8x8xf32>
    %127 = arith.mulf %122, %126 : vector<8x8xf32>
    %cst_45 = arith.constant dense<0.000000e+00> : vector<8x8xf32>
    %128 = tpu.matmul %127, %116, %cst_45 {dimension_numbers = #tpu.dot_dimension_numbers<[1], [0], [0], [1], [0, 0, 1, 1], [], []>} : vector<8x8xf32>, vector<8x8xf32>, vector<8x8xf32> -> vector<8x8xf32>
    %129 = vector.extract_strided_slice %23 {offsets = [0, 88], sizes = [8, 8], strides = [1, 1]} : vector<8x96xf32> to vector<8x8xf32>
    %130 = vector.extract_strided_slice %21 {offsets = [0, 56], sizes = [8, 8], strides = [1, 1]} : vector<8x96xf32> to vector<8x8xf32>
    %131 = vector.extract_strided_slice %21 {offsets = [0, 88], sizes = [8, 8], strides = [1, 1]} : vector<8x96xf32> to vector<8x8xf32>
    %cst_46 = arith.constant dense<0.000000e+00> : vector<8x8xf32>
    %132 = tpu.matmul %129, %130, %cst_46 {dimension_numbers = #tpu.dot_dimension_numbers<[1], [1], [0], [0], [0, 0, 1, 0], [], []>} : vector<8x8xf32>, vector<8x8xf32>, vector<8x8xf32> -> vector<8x8xf32>
    %cst_47 = arith.constant dense<0xFF800000> : vector<8xf32>
    %133 = vector.multi_reduction <maximumf>, %132, %cst_47 [1] : vector<8x8xf32> to vector<8xf32>
    %134 = vector.shape_cast %133 : vector<8xf32> to vector<8x1xf32>
    %135 = vector.broadcast %134 : vector<8x1xf32> to vector<8x8xf32>
    %136 = arith.subf %132, %135 : vector<8x8xf32>
    %137 = math.exp %136 : vector<8x8xf32>
    %cst_48 = arith.constant dense<0.000000e+00> : vector<8xf32>
    %138 = vector.multi_reduction <add>, %137, %cst_48 [1] : vector<8x8xf32> to vector<8xf32>
    %139 = vector.shape_cast %138 : vector<8xf32> to vector<8x1xf32>
    %140 = tpu.reciprocal %139 : vector<8x1xf32> -> vector<8x1xf32>
    %141 = vector.broadcast %140 : vector<8x1xf32> to vector<8x8xf32>
    %142 = arith.mulf %137, %141 : vector<8x8xf32>
    %cst_49 = arith.constant dense<0.000000e+00> : vector<8x8xf32>
    %143 = tpu.matmul %142, %131, %cst_49 {dimension_numbers = #tpu.dot_dimension_numbers<[1], [0], [0], [1], [0, 0, 1, 1], [], []>} : vector<8x8xf32>, vector<8x8xf32>, vector<8x8xf32> -> vector<8x8xf32>
    %144 = tpu.concatenate %38, %53, %68, %83, %98, %113, %128, %143 in 1 : vector<8x8xf32>, vector<8x8xf32>, vector<8x8xf32>, vector<8x8xf32>, vector<8x8xf32>, vector<8x8xf32>, vector<8x8xf32>, vector<8x8xf32> -> vector<8x64xf32>
    %145 = arith.index_cast %19 : i32 to index
    %c0_50 = arith.constant 0 : index
    %146 = vector.load %arg12[%145, %c0_50] : memref<16x64xf32, #tpu.memory_space<vmem>>, vector<8x64xf32>
    tpu.vector_store %arg12[%145, %c0_50], %144 {strides = array<i32>} : memref<16x64xf32, #tpu.memory_space<vmem>>, vector<8x64xf32>,
    %c1_i32 = arith.constant 1 : i32
    %c8_i32_51 = arith.constant 8 : i32
    %147 = arith.muli %c1_i32, %c8_i32_51 : i32
    %148 = tpu.assume_multiple %147, 8 : i32
    %149 = arith.index_cast %148 : i32 to index
    %c0_52 = arith.constant 0 : index
    %150 = vector.load %arg10[%149, %c0_52] : memref<16x96xf32, #tpu.memory_space<vmem>>, vector<8x96xf32>
    %151 = arith.index_cast %148 : i32 to index
    %c0_53 = arith.constant 0 : index
    %152 = vector.load %arg11[%151, %c0_53] : memref<16x96xf32, #tpu.memory_space<vmem>>, vector<8x96xf32>
    %153 = vector.extract_strided_slice %150 {offsets = [0, 0], sizes = [8, 8], strides = [1, 1]} : vector<8x96xf32> to vector<8x8xf32>
    %154 = vector.extract_strided_slice %152 {offsets = [0, 0], sizes = [8, 8], strides = [1, 1]} : vector<8x96xf32> to vector<8x8xf32>
    %155 = vector.extract_strided_slice %152 {offsets = [0, 32], sizes = [8, 8], strides = [1, 1]} : vector<8x96xf32> to vector<8x8xf32>
    %cst_54 = arith.constant dense<0.000000e+00> : vector<8x8xf32>
    %156 = tpu.matmul %153, %154, %cst_54 {dimension_numbers = #tpu.dot_dimension_numbers<[1], [1], [0], [0], [0, 0, 1, 0], [], []>} : vector<8x8xf32>, vector<8x8xf32>, vector<8x8xf32> -> vector<8x8xf32>
    %cst_55 = arith.constant dense<0xFF800000> : vector<8xf32>
    %157 = vector.multi_reduction <maximumf>, %156, %cst_55 [1] : vector<8x8xf32> to vector<8xf32>
    %158 = vector.shape_cast %157 : vector<8xf32> to vector<8x1xf32>
    %159 = vector.broadcast %158 : vector<8x1xf32> to vector<8x8xf32>
    %160 = arith.subf %156, %159 : vector<8x8xf32>
    %161 = math.exp %160 : vector<8x8xf32>
    %cst_56 = arith.constant dense<0.000000e+00> : vector<8xf32>
    %162 = vector.multi_reduction <add>, %161, %cst_56 [1] : vector<8x8xf32> to vector<8xf32>
    %163 = vector.shape_cast %162 : vector<8xf32> to vector<8x1xf32>
    %164 = tpu.reciprocal %163 : vector<8x1xf32> -> vector<8x1xf32>
    %165 = vector.broadcast %164 : vector<8x1xf32> to vector<8x8xf32>
    %166 = arith.mulf %161, %165 : vector<8x8xf32>
    %cst_57 = arith.constant dense<0.000000e+00> : vector<8x8xf32>
    %167 = tpu.matmul %166, %155, %cst_57 {dimension_numbers = #tpu.dot_dimension_numbers<[1], [0], [0], [1], [0, 0, 1, 1], [], []>} : vector<8x8xf32>, vector<8x8xf32>, vector<8x8xf32> -> vector<8x8xf32>
    %168 = vector.extract_strided_slice %150 {offsets = [0, 8], sizes = [8, 8], strides = [1, 1]} : vector<8x96xf32> to vector<8x8xf32>
    %169 = vector.extract_strided_slice %152 {offsets = [0, 8], sizes = [8, 8], strides = [1, 1]} : vector<8x96xf32> to vector<8x8xf32>
    %170 = vector.extract_strided_slice %152 {offsets = [0, 40], sizes = [8, 8], strides = [1, 1]} : vector<8x96xf32> to vector<8x8xf32>
    %cst_58 = arith.constant dense<0.000000e+00> : vector<8x8xf32>
    %171 = tpu.matmul %168, %169, %cst_58 {dimension_numbers = #tpu.dot_dimension_numbers<[1], [1], [0], [0], [0, 0, 1, 0], [], []>} : vector<8x8xf32>, vector<8x8xf32>, vector<8x8xf32> -> vector<8x8xf32>
    %cst_59 = arith.constant dense<0xFF800000> : vector<8xf32>
    %172 = vector.multi_reduction <maximumf>, %171, %cst_59 [1] : vector<8x8xf32> to vector<8xf32>
    %173 = vector.shape_cast %172 : vector<8xf32> to vector<8x1xf32>
    %174 = vector.broadcast %173 : vector<8x1xf32> to vector<8x8xf32>
    %175 = arith.subf %171, %174 : vector<8x8xf32>
    %176 = math.exp %175 : vector<8x8xf32>
    %cst_60 = arith.constant dense<0.000000e+00> : vector<8xf32>
    %177 = vector.multi_reduction <add>, %176, %cst_60 [1] : vector<8x8xf32> to vector<8xf32>
    %178 = vector.shape_cast %177 : vector<8xf32> to vector<8x1xf32>
    %179 = tpu.reciprocal %178 : vector<8x1xf32> -> vector<8x1xf32>
    %180 = vector.broadcast %179 : vector<8x1xf32> to vector<8x8xf32>
    %181 = arith.mulf %176, %180 : vector<8x8xf32>
    %cst_61 = arith.constant dense<0.000000e+00> : vector<8x8xf32>
    %182 = tpu.matmul %181, %170, %cst_61 {dimension_numbers = #tpu.dot_dimension_numbers<[1], [0], [0], [1], [0, 0, 1, 1], [], []>} : vector<8x8xf32>, vector<8x8xf32>, vector<8x8xf32> -> vector<8x8xf32>
    %183 = vector.extract_strided_slice %150 {offsets = [0, 16], sizes = [8, 8], strides = [1, 1]} : vector<8x96xf32> to vector<8x8xf32>
    %184 = vector.extract_strided_slice %152 {offsets = [0, 16], sizes = [8, 8], strides = [1, 1]} : vector<8x96xf32> to vector<8x8xf32>
    %185 = vector.extract_strided_slice %152 {offsets = [0, 48], sizes = [8, 8], strides = [1, 1]} : vector<8x96xf32> to vector<8x8xf32>
    %cst_62 = arith.constant dense<0.000000e+00> : vector<8x8xf32>
    %186 = tpu.matmul %183, %184, %cst_62 {dimension_numbers = #tpu.dot_dimension_numbers<[1], [1], [0], [0], [0, 0, 1, 0], [], []>} : vector<8x8xf32>, vector<8x8xf32>, vector<8x8xf32> -> vector<8x8xf32>
    %cst_63 = arith.constant dense<0xFF800000> : vector<8xf32>
    %187 = vector.multi_reduction <maximumf>, %186, %cst_63 [1] : vector<8x8xf32> to vector<8xf32>
    %188 = vector.shape_cast %187 : vector<8xf32> to vector<8x1xf32>
    %189 = vector.broadcast %188 : vector<8x1xf32> to vector<8x8xf32>
    %190 = arith.subf %186, %189 : vector<8x8xf32>
    %191 = math.exp %190 : vector<8x8xf32>
    %cst_64 = arith.constant dense<0.000000e+00> : vector<8xf32>
    %192 = vector.multi_reduction <add>, %191, %cst_64 [1] : vector<8x8xf32> to vector<8xf32>
    %193 = vector.shape_cast %192 : vector<8xf32> to vector<8x1xf32>
    %194 = tpu.reciprocal %193 : vector<8x1xf32> -> vector<8x1xf32>
    %195 = vector.broadcast %194 : vector<8x1xf32> to vector<8x8xf32>
    %196 = arith.mulf %191, %195 : vector<8x8xf32>
    %cst_65 = arith.constant dense<0.000000e+00> : vector<8x8xf32>
    %197 = tpu.matmul %196, %185, %cst_65 {dimension_numbers = #tpu.dot_dimension_numbers<[1], [0], [0], [1], [0, 0, 1, 1], [], []>} : vector<8x8xf32>, vector<8x8xf32>, vector<8x8xf32> -> vector<8x8xf32>
    %198 = vector.extract_strided_slice %150 {offsets = [0, 24], sizes = [8, 8], strides = [1, 1]} : vector<8x96xf32> to vector<8x8xf32>
    %199 = vector.extract_strided_slice %152 {offsets = [0, 24], sizes = [8, 8], strides = [1, 1]} : vector<8x96xf32> to vector<8x8xf32>
    %200 = vector.extract_strided_slice %152 {offsets = [0, 56], sizes = [8, 8], strides = [1, 1]} : vector<8x96xf32> to vector<8x8xf32>
    %cst_66 = arith.constant dense<0.000000e+00> : vector<8x8xf32>
    %201 = tpu.matmul %198, %199, %cst_66 {dimension_numbers = #tpu.dot_dimension_numbers<[1], [1], [0], [0], [0, 0, 1, 0], [], []>} : vector<8x8xf32>, vector<8x8xf32>, vector<8x8xf32> -> vector<8x8xf32>
    %cst_67 = arith.constant dense<0xFF800000> : vector<8xf32>
    %202 = vector.multi_reduction <maximumf>, %201, %cst_67 [1] : vector<8x8xf32> to vector<8xf32>
    %203 = vector.shape_cast %202 : vector<8xf32> to vector<8x1xf32>
    %204 = vector.broadcast %203 : vector<8x1xf32> to vector<8x8xf32>
    %205 = arith.subf %201, %204 : vector<8x8xf32>
    %206 = math.exp %205 : vector<8x8xf32>
    %cst_68 = arith.constant dense<0.000000e+00> : vector<8xf32>
    %207 = vector.multi_reduction <add>, %206, %cst_68 [1] : vector<8x8xf32> to vector<8xf32>
    %208 = vector.shape_cast %207 : vector<8xf32> to vector<8x1xf32>
    %209 = tpu.reciprocal %208 : vector<8x1xf32> -> vector<8x1xf32>
    %210 = vector.broadcast %209 : vector<8x1xf32> to vector<8x8xf32>
    %211 = arith.mulf %206, %210 : vector<8x8xf32>
    %cst_69 = arith.constant dense<0.000000e+00> : vector<8x8xf32>
    %212 = tpu.matmul %211, %200, %cst_69 {dimension_numbers = #tpu.dot_dimension_numbers<[1], [0], [0], [1], [0, 0, 1, 1], [], []>} : vector<8x8xf32>, vector<8x8xf32>, vector<8x8xf32> -> vector<8x8xf32>
    %213 = vector.extract_strided_slice %152 {offsets = [0, 64], sizes = [8, 8], strides = [1, 1]} : vector<8x96xf32> to vector<8x8xf32>
    %214 = vector.extract_strided_slice %150 {offsets = [0, 32], sizes = [8, 8], strides = [1, 1]} : vector<8x96xf32> to vector<8x8xf32>
    %215 = vector.extract_strided_slice %150 {offsets = [0, 64], sizes = [8, 8], strides = [1, 1]} : vector<8x96xf32> to vector<8x8xf32>
    %cst_70 = arith.constant dense<0.000000e+00> : vector<8x8xf32>
    %216 = tpu.matmul %213, %214, %cst_70 {dimension_numbers = #tpu.dot_dimension_numbers<[1], [1], [0], [0], [0, 0, 1, 0], [], []>} : vector<8x8xf32>, vector<8x8xf32>, vector<8x8xf32> -> vector<8x8xf32>
    %cst_71 = arith.constant dense<0xFF800000> : vector<8xf32>
    %217 = vector.multi_reduction <maximumf>, %216, %cst_71 [1] : vector<8x8xf32> to vector<8xf32>
    %218 = vector.shape_cast %217 : vector<8xf32> to vector<8x1xf32>
    %219 = vector.broadcast %218 : vector<8x1xf32> to vector<8x8xf32>
    %220 = arith.subf %216, %219 : vector<8x8xf32>
    %221 = math.exp %220 : vector<8x8xf32>
    %cst_72 = arith.constant dense<0.000000e+00> : vector<8xf32>
    %222 = vector.multi_reduction <add>, %221, %cst_72 [1] : vector<8x8xf32> to vector<8xf32>
    %223 = vector.shape_cast %222 : vector<8xf32> to vector<8x1xf32>
    %224 = tpu.reciprocal %223 : vector<8x1xf32> -> vector<8x1xf32>
    %225 = vector.broadcast %224 : vector<8x1xf32> to vector<8x8xf32>
    %226 = arith.mulf %221, %225 : vector<8x8xf32>
    %cst_73 = arith.constant dense<0.000000e+00> : vector<8x8xf32>
    %227 = tpu.matmul %226, %215, %cst_73 {dimension_numbers = #tpu.dot_dimension_numbers<[1], [0], [0], [1], [0, 0, 1, 1], [], []>} : vector<8x8xf32>, vector<8x8xf32>, vector<8x8xf32> -> vector<8x8xf32>
    %228 = vector.extract_strided_slice %152 {offsets = [0, 72], sizes = [8, 8], strides = [1, 1]} : vector<8x96xf32> to vector<8x8xf32>
    %229 = vector.extract_strided_slice %150 {offsets = [0, 40], sizes = [8, 8], strides = [1, 1]} : vector<8x96xf32> to vector<8x8xf32>
    %230 = vector.extract_strided_slice %150 {offsets = [0, 72], sizes = [8, 8], strides = [1, 1]} : vector<8x96xf32> to vector<8x8xf32>
    %cst_74 = arith.constant dense<0.000000e+00> : vector<8x8xf32>
    %231 = tpu.matmul %228, %229, %cst_74 {dimension_numbers = #tpu.dot_dimension_numbers<[1], [1], [0], [0], [0, 0, 1, 0], [], []>} : vector<8x8xf32>, vector<8x8xf32>, vector<8x8xf32> -> vector<8x8xf32>
    %cst_75 = arith.constant dense<0xFF800000> : vector<8xf32>
    %232 = vector.multi_reduction <maximumf>, %231, %cst_75 [1] : vector<8x8xf32> to vector<8xf32>
    %233 = vector.shape_cast %232 : vector<8xf32> to vector<8x1xf32>
    %234 = vector.broadcast %233 : vector<8x1xf32> to vector<8x8xf32>
    %235 = arith.subf %231, %234 : vector<8x8xf32>
    %236 = math.exp %235 : vector<8x8xf32>
    %cst_76 = arith.constant dense<0.000000e+00> : vector<8xf32>
    %237 = vector.multi_reduction <add>, %236, %cst_76 [1] : vector<8x8xf32> to vector<8xf32>
    %238 = vector.shape_cast %237 : vector<8xf32> to vector<8x1xf32>
    %239 = tpu.reciprocal %238 : vector<8x1xf32> -> vector<8x1xf32>
    %240 = vector.broadcast %239 : vector<8x1xf32> to vector<8x8xf32>
    %241 = arith.mulf %236, %240 : vector<8x8xf32>
    %cst_77 = arith.constant dense<0.000000e+00> : vector<8x8xf32>
    %242 = tpu.matmul %241, %230, %cst_77 {dimension_numbers = #tpu.dot_dimension_numbers<[1], [0], [0], [1], [0, 0, 1, 1], [], []>} : vector<8x8xf32>, vector<8x8xf32>, vector<8x8xf32> -> vector<8x8xf32>
    %243 = vector.extract_strided_slice %152 {offsets = [0, 80], sizes = [8, 8], strides = [1, 1]} : vector<8x96xf32> to vector<8x8xf32>
    %244 = vector.extract_strided_slice %150 {offsets = [0, 48], sizes = [8, 8], strides = [1, 1]} : vector<8x96xf32> to vector<8x8xf32>
    %245 = vector.extract_strided_slice %150 {offsets = [0, 80], sizes = [8, 8], strides = [1, 1]} : vector<8x96xf32> to vector<8x8xf32>
    %cst_78 = arith.constant dense<0.000000e+00> : vector<8x8xf32>
    %246 = tpu.matmul %243, %244, %cst_78 {dimension_numbers = #tpu.dot_dimension_numbers<[1], [1], [0], [0], [0, 0, 1, 0], [], []>} : vector<8x8xf32>, vector<8x8xf32>, vector<8x8xf32> -> vector<8x8xf32>
    %cst_79 = arith.constant dense<0xFF800000> : vector<8xf32>
    %247 = vector.multi_reduction <maximumf>, %246, %cst_79 [1] : vector<8x8xf32> to vector<8xf32>
    %248 = vector.shape_cast %247 : vector<8xf32> to vector<8x1xf32>
    %249 = vector.broadcast %248 : vector<8x1xf32> to vector<8x8xf32>
    %250 = arith.subf %246, %249 : vector<8x8xf32>
    %251 = math.exp %250 : vector<8x8xf32>
    %cst_80 = arith.constant dense<0.000000e+00> : vector<8xf32>
    %252 = vector.multi_reduction <add>, %251, %cst_80 [1] : vector<8x8xf32> to vector<8xf32>
    %253 = vector.shape_cast %252 : vector<8xf32> to vector<8x1xf32>
    %254 = tpu.reciprocal %253 : vector<8x1xf32> -> vector<8x1xf32>
    %255 = vector.broadcast %254 : vector<8x1xf32> to vector<8x8xf32>
    %256 = arith.mulf %251, %255 : vector<8x8xf32>
    %cst_81 = arith.constant dense<0.000000e+00> : vector<8x8xf32>
    %257 = tpu.matmul %256, %245, %cst_81 {dimension_numbers = #tpu.dot_dimension_numbers<[1], [0], [0], [1], [0, 0, 1, 1], [], []>} : vector<8x8xf32>, vector<8x8xf32>, vector<8x8xf32> -> vector<8x8xf32>
    %258 = vector.extract_strided_slice %152 {offsets = [0, 88], sizes = [8, 8], strides = [1, 1]} : vector<8x96xf32> to vector<8x8xf32>
    %259 = vector.extract_strided_slice %150 {offsets = [0, 56], sizes = [8, 8], strides = [1, 1]} : vector<8x96xf32> to vector<8x8xf32>
    %260 = vector.extract_strided_slice %150 {offsets = [0, 88], sizes = [8, 8], strides = [1, 1]} : vector<8x96xf32> to vector<8x8xf32>
    %cst_82 = arith.constant dense<0.000000e+00> : vector<8x8xf32>
    %261 = tpu.matmul %258, %259, %cst_82 {dimension_numbers = #tpu.dot_dimension_numbers<[1], [1], [0], [0], [0, 0, 1, 0], [], []>} : vector<8x8xf32>, vector<8x8xf32>, vector<8x8xf32> -> vector<8x8xf32>
    %cst_83 = arith.constant dense<0xFF800000> : vector<8xf32>
    %262 = vector.multi_reduction <maximumf>, %261, %cst_83 [1] : vector<8x8xf32> to vector<8xf32>
    %263 = vector.shape_cast %262 : vector<8xf32> to vector<8x1xf32>
    %264 = vector.broadcast %263 : vector<8x1xf32> to vector<8x8xf32>
    %265 = arith.subf %261, %264 : vector<8x8xf32>
    %266 = math.exp %265 : vector<8x8xf32>
    %cst_84 = arith.constant dense<0.000000e+00> : vector<8xf32>
    %267 = vector.multi_reduction <add>, %266, %cst_84 [1] : vector<8x8xf32> to vector<8xf32>
    %268 = vector.shape_cast %267 : vector<8xf32> to vector<8x1xf32>
    %269 = tpu.reciprocal %268 : vector<8x1xf32> -> vector<8x1xf32>
    %270 = vector.broadcast %269 : vector<8x1xf32> to vector<8x8xf32>
    %271 = arith.mulf %266, %270 : vector<8x8xf32>
    %cst_85 = arith.constant dense<0.000000e+00> : vector<8x8xf32>
    %272 = tpu.matmul %271, %260, %cst_85 {dimension_numbers = #tpu.dot_dimension_numbers<[1], [0], [0], [1], [0, 0, 1, 1], [], []>} : vector<8x8xf32>, vector<8x8xf32>, vector<8x8xf32> -> vector<8x8xf32>
    %273 = tpu.concatenate %167, %182, %197, %212, %227, %242, %257, %272 in 1 : vector<8x8xf32>, vector<8x8xf32>, vector<8x8xf32>, vector<8x8xf32>, vector<8x8xf32>, vector<8x8xf32>, vector<8x8xf32>, vector<8x8xf32> -> vector<8x64xf32>
    %274 = arith.index_cast %148 : i32 to index
    %c0_86 = arith.constant 0 : index
    %275 = vector.load %arg12[%274, %c0_86] : memref<16x64xf32, #tpu.memory_space<vmem>>, vector<8x64xf32>
    tpu.vector_store %arg12[%274, %c0_86], %273 {strides = array<i32>} : memref<16x64xf32, #tpu.memory_space<vmem>>, vector<8x64xf32>,
    %c2_i32 = arith.constant 2 : i32
    %c0_87 = arith.constant 0 : index
    %c0_88 = arith.constant 0 : index
    %276 = vector.load %arg12[%c0_87, %c0_88] : memref<16x64xf32, #tpu.memory_space<vmem>>, vector<16x64xf32>
    %c0_89 = arith.constant 0 : index
    %c0_90 = arith.constant 0 : index
    %277 = vector.load %arg7[%c0_89, %c0_90] : memref<64x32xf32, #tpu.memory_space<vmem>>, vector<64x32xf32>
    %cst_91 = arith.constant dense<0.000000e+00> : vector<16x32xf32>
    %278 = tpu.matmul %276, %277, %cst_91 {dimension_numbers = #tpu.dot_dimension_numbers<[1], [0], [0], [1], [0, 0, 1, 1], [], []>} : vector<16x64xf32>, vector<64x32xf32>, vector<16x32xf32> -> vector<16x32xf32>
    %c0_92 = arith.constant 0 : index
    %c0_93 = arith.constant 0 : index
    %279 = vector.load %arg8[%c0_92, %c0_93] : memref<1x32xf32, #tpu.memory_space<vmem>>, vector<1x32xf32>
    %280 = vector.shape_cast %279 : vector<1x32xf32> to vector<32xf32>
    %281 = vector.shape_cast %280 : vector<32xf32> to vector<1x32xf32>
    %282 = vector.broadcast %281 : vector<1x32xf32> to vector<16x32xf32>
    %283 = arith.addf %278, %282 : vector<16x32xf32>
    %cst_94 = arith.constant 5.000000e-01 : f32
    %284 = vector.broadcast %cst_94 : f32 to vector<16x32xf32>
    %285 = arith.mulf %284, %283 : vector<16x32xf32>
    %cst_95 = arith.constant 0.707106769 : f32
    %286 = vector.broadcast %cst_95 : f32 to vector<16x32xf32>
    %287 = arith.mulf %283, %286 : vector<16x32xf32>
    %288 = math.erf %287 : vector<16x32xf32>
    %cst_96 = arith.constant 1.000000e+00 : f32
    %289 = vector.broadcast %cst_96 : f32 to vector<16x32xf32>
    %290 = arith.addf %289, %288 : vector<16x32xf32>
    %291 = arith.mulf %285, %290 : vector<16x32xf32>
    %c0_97 = arith.constant 0 : index
    %c0_98 = arith.constant 0 : index
    %292 = vector.load %arg9[%c0_97, %c0_98] : memref<16x32xf32, #tpu.memory_space<vmem>>, vector<16x32xf32>
    tpu.vector_store %arg9[%c0_97, %c0_98], %291 {strides = array<i32>} : memref<16x32xf32, #tpu.memory_space<vmem>>, vector<16x32xf32>,
    return
  }
  func.func @transform_0(%arg0: i32) -> (i32, i32) {
    %c0_i32 = arith.constant 0 : i32
    %c0_i32_0 = arith.constant 0 : i32
    return %arg0, %c0_i32 : i32, i32
  }
  func.func @transform_1(%arg0: i32) -> (i32, i32) {
    %c0_i32 = arith.constant 0 : i32
    %c0_i32_0 = arith.constant 0 : i32
    return %arg0, %c0_i32 : i32, i32
  }
  func.func @transform_2(%arg0: i32) -> (i32, i32) {
    %c0_i32 = arith.constant 0 : i32
    %c0_i32_0 = arith.constant 0 : i32
    %c0_i32_1 = arith.constant 0 : i32
    return %c0_i32, %c0_i32_0 : i32, i32
  }
  func.func @transform_3(%arg0: i32) -> (i32, i32) {
    %c0_i32 = arith.constant 0 : i32
    %c0_i32_0 = arith.constant 0 : i32
    %c0_i32_1 = arith.constant 0 : i32
    return %c0_i32, %c0_i32_0 : i32, i32
  }
  func.func @transform_4(%arg0: i32) -> (i32, i32) {
    %c0_i32 = arith.constant 0 : i32
    %c0_i32_0 = arith.constant 0 : i32
    %c0_i32_1 = arith.constant 0 : i32
    return %c0_i32, %c0_i32_0 : i32, i32
  }
  func.func @transform_5(%arg0: i32) -> (i32, i32) {
    %c0_i32 = arith.constant 0 : i32
    %c0_i32_0 = arith.constant 0 : i32
    %c0_i32_1 = arith.constant 0 : i32
    return %c0_i32, %c0_i32_0 : i32, i32
  }
  func.func @transform_6(%arg0: i32) -> (i32, i32) {
    %c0_i32 = arith.constant 0 : i32
    %c0_i32_0 = arith.constant 0 : i32
    %c0_i32_1 = arith.constant 0 : i32
    return %c0_i32, %c0_i32_0 : i32, i32
  }
  func.func @transform_7(%arg0: i32) -> (i32, i32) {
    %c0_i32 = arith.constant 0 : i32
    %c0_i32_0 = arith.constant 0 : i32
    %c0_i32_1 = arith.constant 0 : i32
    return %c0_i32, %c0_i32_0 : i32, i32
  }
  func.func @transform_8(%arg0: i32) -> (i32, i32) {
    %c0_i32 = arith.constant 0 : i32
    %c0_i32_0 = arith.constant 0 : i32
    return %arg0, %c0_i32 : i32, i32
  }
}

</mosaic_0001>

<llo_original>
// kernel: tpu_custom_call.1
$region0: #{tpu_custom_call.1}
  #allocation0 [shape = 'u32[]', space=smem, size = 0x4, offset = 0x4, fixed_abs, tag = 'smem constant byte address 0x4 - core index']
  #allocation1 [shape = 'u32[144,128]{1,0:T(1,128)}', space=vmem, size = 0x12000, scoped, tag = 'internal scratch']
  #allocation2 [shape = 'f32[16,96]{1,0:T(8,128)}', space=vmem, size = 0x2000, scoped, tag = 'scratch operand']
  #allocation3 [shape = 'f32[16,96]{1,0:T(8,128)}', space=vmem, size = 0x2000, scoped, tag = 'scratch operand']
  #allocation4 [shape = 'f32[16,64]{1,0:T(8,128)}', space=vmem, size = 0x2000, scoped, tag = 'scratch operand']
  %s0 = inlined_call_operand.vmem [shape: f32[16,32], index: 0, kind: input, shape index: {}]
  %s1 = inlined_call_operand.vmem [shape: f32[16,32], index: 1, kind: input, shape index: {}]
  %s2 = inlined_call_operand.vmem [shape: f32[32,96], index: 2, kind: input, shape index: {}]
  %s3 = inlined_call_operand.vmem [shape: f32[1,96], index: 3, kind: input, shape index: {}]
  %s4 = inlined_call_operand.vmem [shape: f32[32,96], index: 4, kind: input, shape index: {}]
  %s5 = inlined_call_operand.vmem [shape: f32[1,96], index: 5, kind: input, shape index: {}]
  %s6 = inlined_call_operand.vmem [shape: f32[64,32], index: 6, kind: input, shape index: {}]
  %s7 = inlined_call_operand.vmem [shape: f32[1,32], index: 7, kind: input, shape index: {}]
  %s8 = inlined_call_operand.hbm [shape: f32[16,32], index: 8, kind: output, shape index: {}]
  %s9 = sld [smem:[#allocation0]]
  $region42: #{tpu_custom_call.1} parent=0
    _
  %s11 = ssub.s32 1, %s9
  %s12 = scalar_select 0, %s11, %s9
  $region1: #{tpu_custom_call.1} parent=0
    #allocation5 [shape = 'u8[8192]{0}', space=vmem, size = 0x2000, scoped, tag = 'output window, operand 0, single buffered']
    #allocation6 [shape = 's32[1]{0}', space=sflag, size = 0x4, scoped, tag = 'scoped memory for tpu_custom_call.1']
    %13 = vsyncpa [#allocation6], 0
    // Predicated region
    $region2: #{tpu_custom_call.1} parent=1 // pred_check
      _
    $region3: #{tpu_custom_call.1} parent=1 // pred_check_branch
      %15 = sbr.rel (0) target = $region5
    $region4: #{tpu_custom_call.1} parent=1 // pred_region
      _
    $region5: #{tpu_custom_call.1} parent=1 // pred_fallthru
      _
    // Predicated region
    $region6: #{tpu_custom_call.1} parent=1 // pred_check
      _
    $region7: #{tpu_custom_call.1} parent=1 // pred_check_branch
      %17 = sbr.rel (0) target = $region9
    $region8: #{tpu_custom_call.1} parent=1 // pred_region
      _
    $region9: #{tpu_custom_call.1} parent=1 // pred_fallthru
      _
    // Predicated region
    $region10: #{tpu_custom_call.1} parent=1 // pred_check
      _
    $region11: #{tpu_custom_call.1} parent=1 // pred_check_branch
      %19 = sbr.rel (0) target = $region13
    $region12: #{tpu_custom_call.1} parent=1 // pred_region
      _
    $region13: #{tpu_custom_call.1} parent=1 // pred_fallthru
      _
    // Predicated region
    $region14: #{tpu_custom_call.1} parent=1 // pred_check
      _
    $region15: #{tpu_custom_call.1} parent=1 // pred_check_branch
      %21 = sbr.rel (0) target = $region17
    $region16: #{tpu_custom_call.1} parent=1 // pred_region
      _
    $region17: #{tpu_custom_call.1} parent=1 // pred_fallthru
      _
    // Predicated region
    $region18: #{tpu_custom_call.1} parent=1 // pred_check
      _
    $region19: #{tpu_custom_call.1} parent=1 // pred_check_branch
      %23 = sbr.rel (0) target = $region21
    $region20: #{tpu_custom_call.1} parent=1 // pred_region
      _
    $region21: #{tpu_custom_call.1} parent=1 // pred_fallthru
      _
    // Predicated region
    $region22: #{tpu_custom_call.1} parent=1 // pred_check
      _
    $region23: #{tpu_custom_call.1} parent=1 // pred_check_branch
      %25 = sbr.rel (0) target = $region25
    $region24: #{tpu_custom_call.1} parent=1 // pred_region
      _
    $region25: #{tpu_custom_call.1} parent=1 // pred_fallthru
      _
    // Predicated region
    $region26: #{tpu_custom_call.1} parent=1 // pred_check
      _
    $region27: #{tpu_custom_call.1} parent=1 // pred_check_branch
      %27 = sbr.rel (0) target = $region29
    $region28: #{tpu_custom_call.1} parent=1 // pred_region
      _
    $region29: #{tpu_custom_call.1} parent=1 // pred_fallthru
      _
    // Predicated region
    $region30: #{tpu_custom_call.1} parent=1 // pred_check
      _
    $region31: #{tpu_custom_call.1} parent=1 // pred_check_branch
      %29 = sbr.rel (0) target = $region33
    $region32: #{tpu_custom_call.1} parent=1 // pred_region
      _
    $region33: #{tpu_custom_call.1} parent=1 // pred_fallthru
      _
    %v30 = vld [vmem:[%s0] sm:$0xff]
    %v31 = vld [vmem:[%s0 + $0x8] sm:$0xff]
    %v32 = vld [vmem:[%s1] sm:$0xff]
    %v33 = vld [vmem:[%s1 + $0x8] sm:$0xff]
    %v34 = vld [vmem:[%s2] sm:$0xff]
    %v35 = vld [vmem:[%s2 + $0x8] sm:$0xff]
    %v36 = vld [vmem:[%s2 + $0x10] sm:$0xff]
    %v37 = vld [vmem:[%s2 + $0x18] sm:$0xff]
    %v38 = vld [vmem:[%s3] sm:$0x1]
    %v40 = vlaneseq
    %v41 = vshrl.u32 %v40, 7
    %v42 = vsub.s32 0, %v41
    %v43 = vrot.slane %v38, %v42
    %vm45 = vcmask 261120
    %v47 = vsel %vm45, %v30, 0
    %v50 = vsel %vm45, %v31, 0
    %52 = vmatprep.subr.mxu0 0.0
    %53 = vmatpush1.msra.mxu0 %v34
    %54 = vmatprep.subr.mxu0 0.0
    %55 = vmatpush1.msra.mxu0 %v35
    %56 = vmatprep.subr.mxu0 0.0
    %57 = vmatpush1.msra.mxu0 %v36
    %58 = vmatprep.subr.mxu0 0.0
    %59 = vmatpush1.msra.mxu0 %v37
    %60 = vmatprep.subr.mxu0 0.0
    %61 = vmatpush1.msra.mxu0 0.0
    %62 = vmatprep.subr.mxu0 0.0
    %63 = vmatpush1.msra.mxu0 0.0
    %64 = vmatprep.subr.mxu0 0.0
    %65 = vmatpush1.msra.mxu0 0.0
    %66 = vmatprep.subr.mxu0 0.0
    %67 = vmatpush1.msra.mxu0 0.0
    %68 = vmatprep.subr.mxu0 0.0
    %69 = vmatpush1.msra.mxu0 0.0
    %70 = vmatprep.subr.mxu0 0.0
    %71 = vmatpush1.msra.mxu0 0.0
    %72 = vmatprep.subr.mxu0 0.0
    %73 = vmatpush1.msra.mxu0 0.0
    %74 = vmatprep.subr.mxu0 0.0
    %75 = vmatpush1.msra.mxu0 0.0
    %76 = vmatprep.subr.mxu0 0.0
    %77 = vmatpush1.msra.mxu0 0.0
    %78 = vmatprep.subr.mxu0 0.0
    %79 = vmatpush1.msra.mxu0 0.0
    %80 = vmatprep.subr.mxu0 0.0
    %81 = vmatpush1.msra.mxu0 0.0
    %82 = vmatprep.subr.mxu0 0.0
    %83 = vmatpush1.msra.mxu0 0.0
    %84 = vmatprep.subr.mxu0 0.0
    %85 = vmatpush1.msra.mxu0 0.0
    %86 = vmatprep.subr.mxu0 0.0
    %87 = vmatpush1.msra.mxu0 0.0
    %88 = vmatprep.subr.mxu0 0.0
    %89 = vmatpush1.msra.mxu0 0.0
    %90 = vmatprep.subr.mxu0 0.0
    %91 = vmatpush1.msra.mxu0 0.0
    %92 = vmatprep.subr.mxu0 0.0
    %93 = vmatpush1.msra.mxu0 0.0
    %94 = vmatprep.subr.mxu0 0.0
    %95 = vmatpush1.msra.mxu0 0.0
    %96 = vmatprep.subr.mxu0 0.0
    %97 = vmatpush1.msra.mxu0 0.0
    %98 = vmatprep.subr.mxu0 0.0
    %99 = vmatpush1.msra.mxu0 0.0
    %100 = vmatprep.subr.mxu0 0.0
    %101 = vmatpush1.msra.mxu0 0.0
    %102 = vmatprep.subr.mxu0 0.0
    %103 = vmatpush1.msra.mxu0 0.0
    %104 = vmatprep.subr.mxu0 0.0
    %105 = vmatpush1.msra.mxu0 0.0
    %106 = vmatprep.subr.mxu0 0.0
    %107 = vmatpush1.msra.mxu0 0.0
    %108 = vmatprep.subr.mxu0 0.0
    %109 = vmatpush1.msra.mxu0 0.0
    %110 = vmatprep.subr.mxu0 0.0
    %111 = vmatpush1.msra.mxu0 0.0
    %112 = vmatprep.subr.mxu0 0.0
    %113 = vmatpush1.msra.mxu0 0.0
    %114 = vmatprep.subr.mxu0 0.0
    %115 = vmatpush1.msra.mxu0 0.0
    %116 = vmatprep.mubr.f32.mxu0 0.0
    %117 = vmatmul.mubr.f32.gmra.mrb[0].mxu0 %v47
    %v118 = vpop.f32.mrb[0].mxu0
    %v119 = vadd.f32 %v43, %v118
    %v120 = vpop.f32.mrb[0].mxu0
    %121 = vmatprep.mubr.f32.mxu0 0.0
    %122 = vmatmul.mubr.f32.gmra.mrb[0].mxu0 %v50
    %v123 = vpop.f32.mrb[0].mxu0
    %v124 = vadd.f32 %v43, %v123
    %v125 = vpop.f32.mrb[0].mxu0
    %126 = vdwg.mxu0
    %vm127 = vcmask 785408
    %128 = vst.msk [vmem:[#allocation2] sm:$0xff] %vm127, %v119
    %129 = vst.msk [vmem:[#allocation2 + $0x8] sm:$0xff] %vm127, %v124
    %v130 = vld [vmem:[%s4] sm:$0xff]
    %v131 = vld [vmem:[%s4 + $0x8] sm:$0xff]
    %v132 = vld [vmem:[%s4 + $0x10] sm:$0xff]
    %v133 = vld [vmem:[%s4 + $0x18] sm:$0xff]
    %v134 = vld [vmem:[%s5] sm:$0x1]
    %v136 = vlaneseq
    %v137 = vshrl.u32 %v136, 7
    %v138 = vsub.s32 0, %v137
    %v139 = vrot.slane %v134, %v138
    %v142 = vsel %vm45, %v32, 0
    %v145 = vsel %vm45, %v33, 0
    %147 = vmatprep.subr.mxu0 0.0
    %148 = vmatpush1.msra.mxu0 %v130
    %149 = vmatprep.subr.mxu0 0.0
    %150 = vmatpush1.msra.mxu0 %v131
    %151 = vmatprep.subr.mxu0 0.0
    %152 = vmatpush1.msra.mxu0 %v132
    %153 = vmatprep.subr.mxu0 0.0
    %154 = vmatpush1.msra.mxu0 %v133
    %155 = vmatprep.subr.mxu0 0.0
    %156 = vmatpush1.msra.mxu0 0.0
    %157 = vmatprep.subr.mxu0 0.0
    %158 = vmatpush1.msra.mxu0 0.0
    %159 = vmatprep.subr.mxu0 0.0
    %160 = vmatpush1.msra.mxu0 0.0
    %161 = vmatprep.subr.mxu0 0.0
    %162 = vmatpush1.msra.mxu0 0.0
    %163 = vmatprep.subr.mxu0 0.0
    %164 = vmatpush1.msra.mxu0 0.0
    %165 = vmatprep.subr.mxu0 0.0
    %166 = vmatpush1.msra.mxu0 0.0
    %167 = vmatprep.subr.mxu0 0.0
    %168 = vmatpush1.msra.mxu0 0.0
    %169 = vmatprep.subr.mxu0 0.0
    %170 = vmatpush1.msra.mxu0 0.0
    %171 = vmatprep.subr.mxu0 0.0
    %172 = vmatpush1.msra.mxu0 0.0
    %173 = vmatprep.subr.mxu0 0.0
    %174 = vmatpush1.msra.mxu0 0.0
    %175 = vmatprep.subr.mxu0 0.0
    %176 = vmatpush1.msra.mxu0 0.0
    %177 = vmatprep.subr.mxu0 0.0
    %178 = vmatpush1.msra.mxu0 0.0
    %179 = vmatprep.subr.mxu0 0.0
    %180 = vmatpush1.msra.mxu0 0.0
    %181 = vmatprep.subr.mxu0 0.0
    %182 = vmatpush1.msra.mxu0 0.0
    %183 = vmatprep.subr.mxu0 0.0
    %184 = vmatpush1.msra.mxu0 0.0
    %185 = vmatprep.subr.mxu0 0.0
    %186 = vmatpush1.msra.mxu0 0.0
    %187 = vmatprep.subr.mxu0 0.0
    %188 = vmatpush1.msra.mxu0 0.0
    %189 = vmatprep.subr.mxu0 0.0
    %190 = vmatpush1.msra.mxu0 0.0
    %191 = vmatprep.subr.mxu0 0.0
    %192 = vmatpush1.msra.mxu0 0.0
    %193 = vmatprep.subr.mxu0 0.0
    %194 = vmatpush1.msra.mxu0 0.0
    %195 = vmatprep.subr.mxu0 0.0
    %196 = vmatpush1.msra.mxu0 0.0
    %197 = vmatprep.subr.mxu0 0.0
    %198 = vmatpush1.msra.mxu0 0.0
    %199 = vmatprep.subr.mxu0 0.0
    %200 = vmatpush1.msra.mxu0 0.0
    %201 = vmatprep.subr.mxu0 0.0
    %202 = vmatpush1.msra.mxu0 0.0
    %203 = vmatprep.subr.mxu0 0.0
    %204 = vmatpush1.msra.mxu0 0.0
    %205 = vmatprep.subr.mxu0 0.0
    %206 = vmatpush1.msra.mxu0 0.0
    %207 = vmatprep.subr.mxu0 0.0
    %208 = vmatpush1.msra.mxu0 0.0
    %209 = vmatprep.subr.mxu0 0.0
    %210 = vmatpush1.msra.mxu0 0.0
    %211 = vmatprep.mubr.f32.mxu0 0.0
    %212 = vmatmul.mubr.f32.gmra.mrb[0].mxu0 %v142
    %v213 = vpop.f32.mrb[0].mxu0
    %v214 = vadd.f32 %v139, %v213
    %v215 = vpop.f32.mrb[0].mxu0
    %216 = vmatprep.mubr.f32.mxu0 0.0
    %217 = vmatmul.mubr.f32.gmra.mrb[0].mxu0 %v145
    %v218 = vpop.f32.mrb[0].mxu0
    %v219 = vadd.f32 %v139, %v218
    %v220 = vpop.f32.mrb[0].mxu0
    %221 = vdwg.mxu0
    %222 = vst.msk [vmem:[#allocation3] sm:$0xff] %vm127, %v214
    %223 = vst.msk [vmem:[#allocation3 + $0x8] sm:$0xff] %vm127, %v219
    %v224 = vld [vmem:[#allocation2] sm:$0xff]
    %v225 = vld [vmem:[#allocation3] sm:$0xff]
    %vm226 = vcmask 64512
    %v228 = vsel %vm226, %v224, 0
    %v231 = vsel %vm226, %v225, 0
    %233 = vmatprep.subr.mxu0 0.0
    %234 = vmatpush1.xpose.msra.mxu0 %v231
    %235 = vmatprep.subr.mxu0 0.0
    %236 = vmatpush1.xpose.msra.mxu0 0.0
    %237 = vmatprep.subr.mxu0 0.0
    %238 = vmatpush1.xpose.msra.mxu0 0.0
    %239 = vmatprep.subr.mxu0 0.0
    %240 = vmatpush1.xpose.msra.mxu0 0.0
    %241 = vmatprep.subr.mxu0 0.0
    %242 = vmatpush1.xpose.msra.mxu0 0.0
    %243 = vmatprep.subr.mxu0 0.0
    %244 = vmatpush1.xpose.msra.mxu0 0.0
    %245 = vmatprep.subr.mxu0 0.0
    %246 = vmatpush1.xpose.msra.mxu0 0.0
    %247 = vmatprep.subr.mxu0 0.0
    %248 = vmatpush1.xpose.msra.mxu0 0.0
    %249 = vmatprep.subr.mxu0 0.0
    %250 = vmatpush1.xpose.msra.mxu0 0.0
    %251 = vmatprep.subr.mxu0 0.0
    %252 = vmatpush1.xpose.msra.mxu0 0.0
    %253 = vmatprep.subr.mxu0 0.0
    %254 = vmatpush1.xpose.msra.mxu0 0.0
    %255 = vmatprep.subr.mxu0 0.0
    %256 = vmatpush1.xpose.msra.mxu0 0.0
    %257 = vmatprep.subr.mxu0 0.0
    %258 = vmatpush1.xpose.msra.mxu0 0.0
    %259 = vmatprep.subr.mxu0 0.0
    %260 = vmatpush1.xpose.msra.mxu0 0.0
    %261 = vmatprep.subr.mxu0 0.0
    %262 = vmatpush1.xpose.msra.mxu0 0.0
    %263 = vmatprep.subr.mxu0 0.0
    %264 = vmatpush1.xpose.msra.mxu0 0.0
    %265 = vmatprep.subr.mxu0 0.0
    %266 = vmatpush1.xpose.msra.mxu0 0.0
    %267 = vmatprep.subr.mxu0 0.0
    %268 = vmatpush1.xpose.msra.mxu0 0.0
    %269 = vmatprep.subr.mxu0 0.0
    %270 = vmatpush1.xpose.msra.mxu0 0.0
    %271 = vmatprep.subr.mxu0 0.0
    %272 = vmatpush1.xpose.msra.mxu0 0.0
    %273 = vmatprep.subr.mxu0 0.0
    %274 = vmatpush1.xpose.msra.mxu0 0.0
    %275 = vmatprep.subr.mxu0 0.0
    %276 = vmatpush1.xpose.msra.mxu0 0.0
    %277 = vmatprep.subr.mxu0 0.0
    %278 = vmatpush1.xpose.msra.mxu0 0.0
    %279 = vmatprep.subr.mxu0 0.0
    %280 = vmatpush1.xpose.msra.mxu0 0.0
    %281 = vmatprep.subr.mxu0 0.0
    %282 = vmatpush1.xpose.msra.mxu0 0.0
    %283 = vmatprep.subr.mxu0 0.0
    %284 = vmatpush1.xpose.msra.mxu0 0.0
    %285 = vmatprep.subr.mxu0 0.0
    %286 = vmatpush1.xpose.msra.mxu0 0.0
    %287 = vmatprep.subr.mxu0 0.0
    %288 = vmatpush1.xpose.msra.mxu0 0.0
    %289 = vmatprep.subr.mxu0 0.0
    %290 = vmatpush1.xpose.msra.mxu0 0.0
    %291 = vmatprep.subr.mxu0 0.0
    %292 = vmatpush1.xpose.msra.mxu0 0.0
    %293 = vmatprep.subr.mxu0 0.0
    %294 = vmatpush1.xpose.msra.mxu0 0.0
    %295 = vmatprep.subr.mxu0 0.0
    %296 = vmatpush1.xpose.msra.mxu0 0.0
    %297 = vmatprep.mubr.f32.mxu0 0.0
    %298 = vmatmul.mubr.f32.gmra.mrb[0].mxu0 %v228
    %v299 = vpop.f32.mrb[0].mxu0
    %v300 = vadd.f32 0.0, %v299
    %v301 = vpop.f32.mrb[0].mxu0
    %302 = vdwg.mxu0
    %v303 = vsel %vm226, %v300, -inf
    %304 = vmax.xlane.f32.xlu0 %v303
    %v305 = vpop.xlane.xlu0 %304
    %v306 = vsub.f32 %v300, %v305
    %v307 = vmul.f32 %v306, 1.442695
    %v308 = vpow.pop %v307
    %v309 = vsel %vm226, %v308, 0.0
    %310 = vadd.xlane.f32.xlu0 %v309
    %v311 = vpop.xlane.xlu0 %310
    %v312 = vrcp.pop %v311
    %v313 = vmul.f32 %v308, %v312
    %314 = vrot.lane.b32.xlu0 %v225, 96
    %v315 = vpop.permute.xlu0 %314
    %v318 = vsel %vm226, %v313, 0
    %320 = vmatprep.subr.mxu0 0.0
    %321 = vmatpush1.msra.mxu0 %v315
    %322 = vmatprep.subr.mxu0 0.0
    %323 = vmatpush1.msra.mxu0 0.0
    %324 = vmatprep.subr.mxu0 0.0
    %325 = vmatpush1.msra.mxu0 0.0
    %326 = vmatprep.subr.mxu0 0.0
    %327 = vmatpush1.msra.mxu0 0.0
    %328 = vmatprep.subr.mxu0 0.0
    %329 = vmatpush1.msra.mxu0 0.0
    %330 = vmatprep.subr.mxu0 0.0
    %331 = vmatpush1.msra.mxu0 0.0
    %332 = vmatprep.subr.mxu0 0.0
    %333 = vmatpush1.msra.mxu0 0.0
    %334 = vmatprep.subr.mxu0 0.0
    %335 = vmatpush1.msra.mxu0 0.0
    %336 = vmatprep.subr.mxu0 0.0
    %337 = vmatpush1.msra.mxu0 0.0
    %338 = vmatprep.subr.mxu0 0.0
    %339 = vmatpush1.msra.mxu0 0.0
    %340 = vmatprep.subr.mxu0 0.0
    %341 = vmatpush1.msra.mxu0 0.0
    %342 = vmatprep.subr.mxu0 0.0
    %343 = vmatpush1.msra.mxu0 0.0
    %344 = vmatprep.subr.mxu0 0.0
    %345 = vmatpush1.msra.mxu0 0.0
    %346 = vmatprep.subr.mxu0 0.0
    %347 = vmatpush1.msra.mxu0 0.0
    %348 = vmatprep.subr.mxu0 0.0
    %349 = vmatpush1.msra.mxu0 0.0
    %350 = vmatprep.subr.mxu0 0.0
    %351 = vmatpush1.msra.mxu0 0.0
    %352 = vmatprep.subr.mxu0 0.0
    %353 = vmatpush1.msra.mxu0 0.0
    %354 = vmatprep.subr.mxu0 0.0
    %355 = vmatpush1.msra.mxu0 0.0
    %356 = vmatprep.subr.mxu0 0.0
    %357 = vmatpush1.msra.mxu0 0.0
    %358 = vmatprep.subr.mxu0 0.0
    %359 = vmatpush1.msra.mxu0 0.0
    %360 = vmatprep.subr.mxu0 0.0
    %361 = vmatpush1.msra.mxu0 0.0
    %362 = vmatprep.subr.mxu0 0.0
    %363 = vmatpush1.msra.mxu0 0.0
    %364 = vmatprep.subr.mxu0 0.0
    %365 = vmatpush1.msra.mxu0 0.0
    %366 = vmatprep.subr.mxu0 0.0
    %367 = vmatpush1.msra.mxu0 0.0
    %368 = vmatprep.subr.mxu0 0.0
    %369 = vmatpush1.msra.mxu0 0.0
    %370 = vmatprep.subr.mxu0 0.0
    %371 = vmatpush1.msra.mxu0 0.0
    %372 = vmatprep.subr.mxu0 0.0
    %373 = vmatpush1.msra.mxu0 0.0
    %374 = vmatprep.subr.mxu0 0.0
    %375 = vmatpush1.msra.mxu0 0.0
    %376 = vmatprep.subr.mxu0 0.0
    %377 = vmatpush1.msra.mxu0 0.0
    %378 = vmatprep.subr.mxu0 0.0
    %379 = vmatpush1.msra.mxu0 0.0
    %380 = vmatprep.subr.mxu0 0.0
    %381 = vmatpush1.msra.mxu0 0.0
    %382 = vmatprep.subr.mxu0 0.0
    %383 = vmatpush1.msra.mxu0 0.0
    %384 = vmatprep.mubr.f32.mxu0 0.0
    %385 = vmatmul.mubr.f32.gmra.mrb[0].mxu0 %v318
    %v386 = vpop.f32.mrb[0].mxu0
    %v387 = vadd.f32 0.0, %v386
    %v388 = vpop.f32.mrb[0].mxu0
    %389 = vdwg.mxu0
    %390 = vrot.lane.b32.xlu0 %v224, 120
    %v391 = vpop.permute.xlu0 %390
    %392 = vrot.lane.b32.xlu0 %v225, 120
    %v393 = vpop.permute.xlu0 %392
    %v394 = vsel %vm226, %v391, 0
    %v396 = vsel %vm226, %v393, 0
    %398 = vmatprep.subr.mxu0 0.0
    %399 = vmatpush1.xpose.msra.mxu0 %v396
    %400 = vmatprep.subr.mxu0 0.0
    %401 = vmatpush1.xpose.msra.mxu0 0.0
    %402 = vmatprep.subr.mxu0 0.0
    %403 = vmatpush1.xpose.msra.mxu0 0.0
    %404 = vmatprep.subr.mxu0 0.0
    %405 = vmatpush1.xpose.msra.mxu0 0.0
    %406 = vmatprep.subr.mxu0 0.0
    %407 = vmatpush1.xpose.msra.mxu0 0.0
    %408 = vmatprep.subr.mxu0 0.0
    %409 = vmatpush1.xpose.msra.mxu0 0.0
    %410 = vmatprep.subr.mxu0 0.0
    %411 = vmatpush1.xpose.msra.mxu0 0.0
    %412 = vmatprep.subr.mxu0 0.0
    %413 = vmatpush1.xpose.msra.mxu0 0.0
    %414 = vmatprep.subr.mxu0 0.0
    %415 = vmatpush1.xpose.msra.mxu0 0.0
    %416 = vmatprep.subr.mxu0 0.0
    %417 = vmatpush1.xpose.msra.mxu0 0.0
    %418 = vmatprep.subr.mxu0 0.0
    %419 = vmatpush1.xpose.msra.mxu0 0.0
    %420 = vmatprep.subr.mxu0 0.0
    %421 = vmatpush1.xpose.msra.mxu0 0.0
    %422 = vmatprep.subr.mxu0 0.0
    %423 = vmatpush1.xpose.msra.mxu0 0.0
    %424 = vmatprep.subr.mxu0 0.0
    %425 = vmatpush1.xpose.msra.mxu0 0.0
    %426 = vmatprep.subr.mxu0 0.0
    %427 = vmatpush1.xpose.msra.mxu0 0.0
    %428 = vmatprep.subr.mxu0 0.0
    %429 = vmatpush1.xpose.msra.mxu0 0.0
    %430 = vmatprep.subr.mxu0 0.0
    %431 = vmatpush1.xpose.msra.mxu0 0.0
    %432 = vmatprep.subr.mxu0 0.0
    %433 = vmatpush1.xpose.msra.mxu0 0.0
    %434 = vmatprep.subr.mxu0 0.0
    %435 = vmatpush1.xpose.msra.mxu0 0.0
    %436 = vmatprep.subr.mxu0 0.0
    %437 = vmatpush1.xpose.msra.mxu0 0.0
    %438 = vmatprep.subr.mxu0 0.0
    %439 = vmatpush1.xpose.msra.mxu0 0.0
    %440 = vmatprep.subr.mxu0 0.0
    %441 = vmatpush1.xpose.msra.mxu0 0.0
    %442 = vmatprep.subr.mxu0 0.0
    %443 = vmatpush1.xpose.msra.mxu0 0.0
    %444 = vmatprep.subr.mxu0 0.0
    %445 = vmatpush1.xpose.msra.mxu0 0.0
    %446 = vmatprep.subr.mxu0 0.0
    %447 = vmatpush1.xpose.msra.mxu0 0.0
    %448 = vmatprep.subr.mxu0 0.0
    %449 = vmatpush1.xpose.msra.mxu0 0.0
    %450 = vmatprep.subr.mxu0 0.0
    %451 = vmatpush1.xpose.msra.mxu0 0.0
    %452 = vmatprep.subr.mxu0 0.0
    %453 = vmatpush1.xpose.msra.mxu0 0.0
    %454 = vmatprep.subr.mxu0 0.0
    %455 = vmatpush1.xpose.msra.mxu0 0.0
    %456 = vmatprep.subr.mxu0 0.0
    %457 = vmatpush1.xpose.msra.mxu0 0.0
    %458 = vmatprep.subr.mxu0 0.0
    %459 = vmatpush1.xpose.msra.mxu0 0.0
    %460 = vmatprep.subr.mxu0 0.0
    %461 = vmatpush1.xpose.msra.mxu0 0.0
    %462 = vmatprep.mubr.f32.mxu0 0.0
    %463 = vmatmul.mubr.f32.gmra.mrb[0].mxu0 %v394
    %v464 = vpop.f32.mrb[0].mxu0
    %v465 = vadd.f32 0.0, %v464
    %v466 = vpop.f32.mrb[0].mxu0
    %467 = vdwg.mxu0
    %v468 = vsel %vm226, %v465, -inf
    %469 = vmax.xlane.f32.xlu0 %v468
    %v470 = vpop.xlane.xlu0 %469
    %v471 = vsub.f32 %v465, %v470
    %v472 = vmul.f32 %v471, 1.442695
    %v473 = vpow.pop %v472
    %v474 = vsel %vm226, %v473, 0.0
    %475 = vadd.xlane.f32.xlu0 %v474
    %v476 = vpop.xlane.xlu0 %475
    %v477 = vrcp.pop %v476
    %v478 = vmul.f32 %v473, %v477
    %479 = vrot.lane.b32.xlu0 %v225, 88
    %v480 = vpop.permute.xlu0 %479
    %v483 = vsel %vm226, %v478, 0
    %485 = vmatprep.subr.mxu0 0.0
    %486 = vmatpush1.msra.mxu0 %v480
    %487 = vmatprep.subr.mxu0 0.0
    %488 = vmatpush1.msra.mxu0 0.0
    %489 = vmatprep.subr.mxu0 0.0
    %490 = vmatpush1.msra.mxu0 0.0
    %491 = vmatprep.subr.mxu0 0.0
    %492 = vmatpush1.msra.mxu0 0.0
    %493 = vmatprep.subr.mxu0 0.0
    %494 = vmatpush1.msra.mxu0 0.0
    %495 = vmatprep.subr.mxu0 0.0
    %496 = vmatpush1.msra.mxu0 0.0
    %497 = vmatprep.subr.mxu0 0.0
    %498 = vmatpush1.msra.mxu0 0.0
    %499 = vmatprep.subr.mxu0 0.0
    %500 = vmatpush1.msra.mxu0 0.0
    %501 = vmatprep.subr.mxu0 0.0
    %502 = vmatpush1.msra.mxu0 0.0
    %503 = vmatprep.subr.mxu0 0.0
    %504 = vmatpush1.msra.mxu0 0.0
    %505 = vmatprep.subr.mxu0 0.0
    %506 = vmatpush1.msra.mxu0 0.0
    %507 = vmatprep.subr.mxu0 0.0
    %508 = vmatpush1.msra.mxu0 0.0
    %509 = vmatprep.subr.mxu0 0.0
    %510 = vmatpush1.msra.mxu0 0.0
    %511 = vmatprep.subr.mxu0 0.0
    %512 = vmatpush1.msra.mxu0 0.0
    %513 = vmatprep.subr.mxu0 0.0
    %514 = vmatpush1.msra.mxu0 0.0
    %515 = vmatprep.subr.mxu0 0.0
    %516 = vmatpush1.msra.mxu0 0.0
    %517 = vmatprep.subr.mxu0 0.0
    %518 = vmatpush1.msra.mxu0 0.0
    %519 = vmatprep.subr.mxu0 0.0
    %520 = vmatpush1.msra.mxu0 0.0
    %521 = vmatprep.subr.mxu0 0.0
    %522 = vmatpush1.msra.mxu0 0.0
    %523 = vmatprep.subr.mxu0 0.0
    %524 = vmatpush1.msra.mxu0 0.0
    %525 = vmatprep.subr.mxu0 0.0
    %526 = vmatpush1.msra.mxu0 0.0
    %527 = vmatprep.subr.mxu0 0.0
    %528 = vmatpush1.msra.mxu0 0.0
    %529 = vmatprep.subr.mxu0 0.0
    %530 = vmatpush1.msra.mxu0 0.0
    %531 = vmatprep.subr.mxu0 0.0
    %532 = vmatpush1.msra.mxu0 0.0
    %533 = vmatprep.subr.mxu0 0.0
    %534 = vmatpush1.msra.mxu0 0.0
    %535 = vmatprep.subr.mxu0 0.0
    %536 = vmatpush1.msra.mxu0 0.0
    %537 = vmatprep.subr.mxu0 0.0
    %538 = vmatpush1.msra.mxu0 0.0
    %539 = vmatprep.subr.mxu0 0.0
    %540 = vmatpush1.msra.mxu0 0.0
    %541 = vmatprep.subr.mxu0 0.0
    %542 = vmatpush1.msra.mxu0 0.0
    %543 = vmatprep.subr.mxu0 0.0
    %544 = vmatpush1.msra.mxu0 0.0
    %545 = vmatprep.subr.mxu0 0.0
    %546 = vmatpush1.msra.mxu0 0.0
    %547 = vmatprep.subr.mxu0 0.0
    %548 = vmatpush1.msra.mxu0 0.0
    %549 = vmatprep.mubr.f32.mxu0 0.0
    %550 = vmatmul.mubr.f32.gmra.mrb[0].mxu0 %v483
    %v551 = vpop.f32.mrb[0].mxu0
    %v552 = vadd.f32 0.0, %v551
    %v553 = vpop.f32.mrb[0].mxu0
    %554 = vdwg.mxu0
    %555 = vrot.lane.b32.xlu0 %v224, 112
    %v556 = vpop.permute.xlu0 %555
    %557 = vrot.lane.b32.xlu0 %v225, 112
    %v558 = vpop.permute.xlu0 %557
    %v559 = vsel %vm226, %v556, 0
    %v561 = vsel %vm226, %v558, 0
    %563 = vmatprep.subr.mxu0 0.0
    %564 = vmatpush1.xpose.msra.mxu0 %v561
    %565 = vmatprep.subr.mxu0 0.0
    %566 = vmatpush1.xpose.msra.mxu0 0.0
    %567 = vmatprep.subr.mxu0 0.0
    %568 = vmatpush1.xpose.msra.mxu0 0.0
    %569 = vmatprep.subr.mxu0 0.0
    %570 = vmatpush1.xpose.msra.mxu0 0.0
    %571 = vmatprep.subr.mxu0 0.0
    %572 = vmatpush1.xpose.msra.mxu0 0.0
    %573 = vmatprep.subr.mxu0 0.0
    %574 = vmatpush1.xpose.msra.mxu0 0.0
    %575 = vmatprep.subr.mxu0 0.0
    %576 = vmatpush1.xpose.msra.mxu0 0.0
    %577 = vmatprep.subr.mxu0 0.0
    %578 = vmatpush1.xpose.msra.mxu0 0.0
    %579 = vmatprep.subr.mxu0 0.0
    %580 = vmatpush1.xpose.msra.mxu0 0.0
    %581 = vmatprep.subr.mxu0 0.0
    %582 = vmatpush1.xpose.msra.mxu0 0.0
    %583 = vmatprep.subr.mxu0 0.0
    %584 = vmatpush1.xpose.msra.mxu0 0.0
    %585 = vmatprep.subr.mxu0 0.0
    %586 = vmatpush1.xpose.msra.mxu0 0.0
    %587 = vmatprep.subr.mxu0 0.0
    %588 = vmatpush1.xpose.msra.mxu0 0.0
    %589 = vmatprep.subr.mxu0 0.0
    %590 = vmatpush1.xpose.msra.mxu0 0.0
    %591 = vmatprep.subr.mxu0 0.0
    %592 = vmatpush1.xpose.msra.mxu0 0.0
    %593 = vmatprep.subr.mxu0 0.0
    %594 = vmatpush1.xpose.msra.mxu0 0.0
    %595 = vmatprep.subr.mxu0 0.0
    %596 = vmatpush1.xpose.msra.mxu0 0.0
    %597 = vmatprep.subr.mxu0 0.0
    %598 = vmatpush1.xpose.msra.mxu0 0.0
    %599 = vmatprep.subr.mxu0 0.0
    %600 = vmatpush1.xpose.msra.mxu0 0.0
    %601 = vmatprep.subr.mxu0 0.0
    %602 = vmatpush1.xpose.msra.mxu0 0.0
    %603 = vmatprep.subr.mxu0 0.0
    %604 = vmatpush1.xpose.msra.mxu0 0.0
    %605 = vmatprep.subr.mxu0 0.0
    %606 = vmatpush1.xpose.msra.mxu0 0.0
    %607 = vmatprep.subr.mxu0 0.0
    %608 = vmatpush1.xpose.msra.mxu0 0.0
    %609 = vmatprep.subr.mxu0 0.0
    %610 = vmatpush1.xpose.msra.mxu0 0.0
    %611 = vmatprep.subr.mxu0 0.0
    %612 = vmatpush1.xpose.msra.mxu0 0.0
    %613 = vmatprep.subr.mxu0 0.0
    %614 = vmatpush1.xpose.msra.mxu0 0.0
    %615 = vmatprep.subr.mxu0 0.0
    %616 = vmatpush1.xpose.msra.mxu0 0.0
    %617 = vmatprep.subr.mxu0 0.0
    %618 = vmatpush1.xpose.msra.mxu0 0.0
    %619 = vmatprep.subr.mxu0 0.0
    %620 = vmatpush1.xpose.msra.mxu0 0.0
    %621 = vmatprep.subr.mxu0 0.0
    %622 = vmatpush1.xpose.msra.mxu0 0.0
    %623 = vmatprep.subr.mxu0 0.0
    %624 = vmatpush1.xpose.msra.mxu0 0.0
    %625 = vmatprep.subr.mxu0 0.0
    %626 = vmatpush1.xpose.msra.mxu0 0.0
    %627 = vmatprep.mubr.f32.mxu0 0.0
    %628 = vmatmul.mubr.f32.gmra.mrb[0].mxu0 %v559
    %v629 = vpop.f32.mrb[0].mxu0
    %v630 = vadd.f32 0.0, %v629
    %v631 = vpop.f32.mrb[0].mxu0
    %632 = vdwg.mxu0
    %v633 = vsel %vm226, %v630, -inf
    %634 = vmax.xlane.f32.xlu0 %v633
    %v635 = vpop.xlane.xlu0 %634
    %v636 = vsub.f32 %v630, %v635
    %v637 = vmul.f32 %v636, 1.442695
    %v638 = vpow.pop %v637
    %v639 = vsel %vm226, %v638, 0.0
    %640 = vadd.xlane.f32.xlu0 %v639
    %v641 = vpop.xlane.xlu0 %640
    %v642 = vrcp.pop %v641
    %v643 = vmul.f32 %v638, %v642
    %644 = vrot.lane.b32.xlu0 %v225, 80
    %v645 = vpop.permute.xlu0 %644
    %v648 = vsel %vm226, %v643, 0
    %650 = vmatprep.subr.mxu0 0.0
    %651 = vmatpush1.msra.mxu0 %v645
    %652 = vmatprep.subr.mxu0 0.0
    %653 = vmatpush1.msra.mxu0 0.0
    %654 = vmatprep.subr.mxu0 0.0
    %655 = vmatpush1.msra.mxu0 0.0
    %656 = vmatprep.subr.mxu0 0.0
    %657 = vmatpush1.msra.mxu0 0.0
    %658 = vmatprep.subr.mxu0 0.0
    %659 = vmatpush1.msra.mxu0 0.0
    %660 = vmatprep.subr.mxu0 0.0
    %661 = vmatpush1.msra.mxu0 0.0
    %662 = vmatprep.subr.mxu0 0.0
    %663 = vmatpush1.msra.mxu0 0.0
    %664 = vmatprep.subr.mxu0 0.0
    %665 = vmatpush1.msra.mxu0 0.0
    %666 = vmatprep.subr.mxu0 0.0
    %667 = vmatpush1.msra.mxu0 0.0
    %668 = vmatprep.subr.mxu0 0.0
    %669 = vmatpush1.msra.mxu0 0.0
    %670 = vmatprep.subr.mxu0 0.0
    %671 = vmatpush1.msra.mxu0 0.0
    %672 = vmatprep.subr.mxu0 0.0
    %673 = vmatpush1.msra.mxu0 0.0
    %674 = vmatprep.subr.mxu0 0.0
    %675 = vmatpush1.msra.mxu0 0.0
    %676 = vmatprep.subr.mxu0 0.0
    %677 = vmatpush1.msra.mxu0 0.0
    %678 = vmatprep.subr.mxu0 0.0
    %679 = vmatpush1.msra.mxu0 0.0
    %680 = vmatprep.subr.mxu0 0.0
    %681 = vmatpush1.msra.mxu0 0.0
    %682 = vmatprep.subr.mxu0 0.0
    %683 = vmatpush1.msra.mxu0 0.0
    %684 = vmatprep.subr.mxu0 0.0
    %685 = vmatpush1.msra.mxu0 0.0
    %686 = vmatprep.subr.mxu0 0.0
    %687 = vmatpush1.msra.mxu0 0.0
    %688 = vmatprep.subr.mxu0 0.0
    %689 = vmatpush1.msra.mxu0 0.0
    %690 = vmatprep.subr.mxu0 0.0
    %691 = vmatpush1.msra.mxu0 0.0
    %692 = vmatprep.subr.mxu0 0.0
    %693 = vmatpush1.msra.mxu0 0.0
    %694 = vmatprep.subr.mxu0 0.0
    %695 = vmatpush1.msra.mxu0 0.0
    %696 = vmatprep.subr.mxu0 0.0
    %697 = vmatpush1.msra.mxu0 0.0
    %698 = vmatprep.subr.mxu0 0.0
    %699 = vmatpush1.msra.mxu0 0.0
    %700 = vmatprep.subr.mxu0 0.0
    %701 = vmatpush1.msra.mxu0 0.0
    %702 = vmatprep.subr.mxu0 0.0
    %703 = vmatpush1.msra.mxu0 0.0
    %704 = vmatprep.subr.mxu0 0.0
    %705 = vmatpush1.msra.mxu0 0.0
    %706 = vmatprep.subr.mxu0 0.0
    %707 = vmatpush1.msra.mxu0 0.0
    %708 = vmatprep.subr.mxu0 0.0
    %709 = vmatpush1.msra.mxu0 0.0
    %710 = vmatprep.subr.mxu0 0.0
    %711 = vmatpush1.msra.mxu0 0.0
    %712 = vmatprep.subr.mxu0 0.0
    %713 = vmatpush1.msra.mxu0 0.0
    %714 = vmatprep.mubr.f32.mxu0 0.0
    %715 = vmatmul.mubr.f32.gmra.mrb[0].mxu0 %v648
    %v716 = vpop.f32.mrb[0].mxu0
    %v717 = vadd.f32 0.0, %v716
    %v718 = vpop.f32.mrb[0].mxu0
    %719 = vdwg.mxu0
    %720 = vrot.lane.b32.xlu0 %v224, 104
    %v721 = vpop.permute.xlu0 %720
    %722 = vrot.lane.b32.xlu0 %v225, 104
    %v723 = vpop.permute.xlu0 %722
    %v724 = vsel %vm226, %v721, 0
    %v726 = vsel %vm226, %v723, 0
    %728 = vmatprep.subr.mxu0 0.0
    %729 = vmatpush1.xpose.msra.mxu0 %v726
    %730 = vmatprep.subr.mxu0 0.0
    %731 = vmatpush1.xpose.msra.mxu0 0.0
    %732 = vmatprep.subr.mxu0 0.0
    %733 = vmatpush1.xpose.msra.mxu0 0.0
    %734 = vmatprep.subr.mxu0 0.0
    %735 = vmatpush1.xpose.msra.mxu0 0.0
    %736 = vmatprep.subr.mxu0 0.0
    %737 = vmatpush1.xpose.msra.mxu0 0.0
    %738 = vmatprep.subr.mxu0 0.0
    %739 = vmatpush1.xpose.msra.mxu0 0.0
    %740 = vmatprep.subr.mxu0 0.0
    %741 = vmatpush1.xpose.msra.mxu0 0.0
    %742 = vmatprep.subr.mxu0 0.0
    %743 = vmatpush1.xpose.msra.mxu0 0.0
    %744 = vmatprep.subr.mxu0 0.0
    %745 = vmatpush1.xpose.msra.mxu0 0.0
    %746 = vmatprep.subr.mxu0 0.0
    %747 = vmatpush1.xpose.msra.mxu0 0.0
    %748 = vmatprep.subr.mxu0 0.0
    %749 = vmatpush1.xpose.msra.mxu0 0.0
    %750 = vmatprep.subr.mxu0 0.0
    %751 = vmatpush1.xpose.msra.mxu0 0.0
    %752 = vmatprep.subr.mxu0 0.0
    %753 = vmatpush1.xpose.msra.mxu0 0.0
    %754 = vmatprep.subr.mxu0 0.0
    %755 = vmatpush1.xpose.msra.mxu0 0.0
    %756 = vmatprep.subr.mxu0 0.0
    %757 = vmatpush1.xpose.msra.mxu0 0.0
    %758 = vmatprep.subr.mxu0 0.0
    %759 = vmatpush1.xpose.msra.mxu0 0.0
    %760 = vmatprep.subr.mxu0 0.0
    %761 = vmatpush1.xpose.msra.mxu0 0.0
    %762 = vmatprep.subr.mxu0 0.0
    %763 = vmatpush1.xpose.msra.mxu0 0.0
    %764 = vmatprep.subr.mxu0 0.0
    %765 = vmatpush1.xpose.msra.mxu0 0.0
    %766 = vmatprep.subr.mxu0 0.0
    %767 = vmatpush1.xpose.msra.mxu0 0.0
    %768 = vmatprep.subr.mxu0 0.0
    %769 = vmatpush1.xpose.msra.mxu0 0.0
    %770 = vmatprep.subr.mxu0 0.0
    %771 = vmatpush1.xpose.msra.mxu0 0.0
    %772 = vmatprep.subr.mxu0 0.0
    %773 = vmatpush1.xpose.msra.mxu0 0.0
    %774 = vmatprep.subr.mxu0 0.0
    %775 = vmatpush1.xpose.msra.mxu0 0.0
    %776 = vmatprep.subr.mxu0 0.0
    %777 = vmatpush1.xpose.msra.mxu0 0.0
    %778 = vmatprep.subr.mxu0 0.0
    %779 = vmatpush1.xpose.msra.mxu0 0.0
    %780 = vmatprep.subr.mxu0 0.0
    %781 = vmatpush1.xpose.msra.mxu0 0.0
    %782 = vmatprep.subr.mxu0 0.0
    %783 = vmatpush1.xpose.msra.mxu0 0.0
    %784 = vmatprep.subr.mxu0 0.0
    %785 = vmatpush1.xpose.msra.mxu0 0.0
    %786 = vmatprep.subr.mxu0 0.0
    %787 = vmatpush1.xpose.msra.mxu0 0.0
    %788 = vmatprep.subr.mxu0 0.0
    %789 = vmatpush1.xpose.msra.mxu0 0.0
    %790 = vmatprep.subr.mxu0 0.0
    %791 = vmatpush1.xpose.msra.mxu0 0.0
    %792 = vmatprep.mubr.f32.mxu0 0.0
    %793 = vmatmul.mubr.f32.gmra.mrb[0].mxu0 %v724
    %v794 = vpop.f32.mrb[0].mxu0
    %v795 = vadd.f32 0.0, %v794
    %v796 = vpop.f32.mrb[0].mxu0
    %797 = vdwg.mxu0
    %v798 = vsel %vm226, %v795, -inf
    %799 = vmax.xlane.f32.xlu0 %v798
    %v800 = vpop.xlane.xlu0 %799
    %v801 = vsub.f32 %v795, %v800
    %v802 = vmul.f32 %v801, 1.442695
    %v803 = vpow.pop %v802
    %v804 = vsel %vm226, %v803, 0.0
    %805 = vadd.xlane.f32.xlu0 %v804
    %v806 = vpop.xlane.xlu0 %805
    %v807 = vrcp.pop %v806
    %v808 = vmul.f32 %v803, %v807
    %809 = vrot.lane.b32.xlu0 %v225, 72
    %v810 = vpop.permute.xlu0 %809
    %v813 = vsel %vm226, %v808, 0
    %815 = vmatprep.subr.mxu0 0.0
    %816 = vmatpush1.msra.mxu0 %v810
    %817 = vmatprep.subr.mxu0 0.0
    %818 = vmatpush1.msra.mxu0 0.0
    %819 = vmatprep.subr.mxu0 0.0
    %820 = vmatpush1.msra.mxu0 0.0
    %821 = vmatprep.subr.mxu0 0.0
    %822 = vmatpush1.msra.mxu0 0.0
    %823 = vmatprep.subr.mxu0 0.0
    %824 = vmatpush1.msra.mxu0 0.0
    %825 = vmatprep.subr.mxu0 0.0
    %826 = vmatpush1.msra.mxu0 0.0
    %827 = vmatprep.subr.mxu0 0.0
    %828 = vmatpush1.msra.mxu0 0.0
    %829 = vmatprep.subr.mxu0 0.0
    %830 = vmatpush1.msra.mxu0 0.0
    %831 = vmatprep.subr.mxu0 0.0
    %832 = vmatpush1.msra.mxu0 0.0
    %833 = vmatprep.subr.mxu0 0.0
    %834 = vmatpush1.msra.mxu0 0.0
    %835 = vmatprep.subr.mxu0 0.0
    %836 = vmatpush1.msra.mxu0 0.0
    %837 = vmatprep.subr.mxu0 0.0
    %838 = vmatpush1.msra.mxu0 0.0
    %839 = vmatprep.subr.mxu0 0.0
    %840 = vmatpush1.msra.mxu0 0.0
    %841 = vmatprep.subr.mxu0 0.0
    %842 = vmatpush1.msra.mxu0 0.0
    %843 = vmatprep.subr.mxu0 0.0
    %844 = vmatpush1.msra.mxu0 0.0
    %845 = vmatprep.subr.mxu0 0.0
    %846 = vmatpush1.msra.mxu0 0.0
    %847 = vmatprep.subr.mxu0 0.0
    %848 = vmatpush1.msra.mxu0 0.0
    %849 = vmatprep.subr.mxu0 0.0
    %850 = vmatpush1.msra.mxu0 0.0
    %851 = vmatprep.subr.mxu0 0.0
    %852 = vmatpush1.msra.mxu0 0.0
    %853 = vmatprep.subr.mxu0 0.0
    %854 = vmatpush1.msra.mxu0 0.0
    %855 = vmatprep.subr.mxu0 0.0
    %856 = vmatpush1.msra.mxu0 0.0
    %857 = vmatprep.subr.mxu0 0.0
    %858 = vmatpush1.msra.mxu0 0.0
    %859 = vmatprep.subr.mxu0 0.0
    %860 = vmatpush1.msra.mxu0 0.0
    %861 = vmatprep.subr.mxu0 0.0
    %862 = vmatpush1.msra.mxu0 0.0
    %863 = vmatprep.subr.mxu0 0.0
    %864 = vmatpush1.msra.mxu0 0.0
    %865 = vmatprep.subr.mxu0 0.0
    %866 = vmatpush1.msra.mxu0 0.0
    %867 = vmatprep.subr.mxu0 0.0
    %868 = vmatpush1.msra.mxu0 0.0
    %869 = vmatprep.subr.mxu0 0.0
    %870 = vmatpush1.msra.mxu0 0.0
    %871 = vmatprep.subr.mxu0 0.0
    %872 = vmatpush1.msra.mxu0 0.0
    %873 = vmatprep.subr.mxu0 0.0
    %874 = vmatpush1.msra.mxu0 0.0
    %875 = vmatprep.subr.mxu0 0.0
    %876 = vmatpush1.msra.mxu0 0.0
    %877 = vmatprep.subr.mxu0 0.0
    %878 = vmatpush1.msra.mxu0 0.0
    %879 = vmatprep.mubr.f32.mxu0 0.0
    %880 = vmatmul.mubr.f32.gmra.mrb[0].mxu0 %v813
    %v881 = vpop.f32.mrb[0].mxu0
    %v882 = vadd.f32 0.0, %v881
    %v883 = vpop.f32.mrb[0].mxu0
    %884 = vdwg.mxu0
    %885 = vrot.lane.b32.xlu0 %v225, 64
    %v886 = vpop.permute.xlu0 %885
    %887 = vrot.lane.b32.xlu0 %v224, 96
    %v888 = vpop.permute.xlu0 %887
    %v889 = vsel %vm226, %v886, 0
    %v891 = vsel %vm226, %v888, 0
    %893 = vmatprep.subr.mxu0 0.0
    %894 = vmatpush1.xpose.msra.mxu0 %v891
    %895 = vmatprep.subr.mxu0 0.0
    %896 = vmatpush1.xpose.msra.mxu0 0.0
    %897 = vmatprep.subr.mxu0 0.0
    %898 = vmatpush1.xpose.msra.mxu0 0.0
    %899 = vmatprep.subr.mxu0 0.0
    %900 = vmatpush1.xpose.msra.mxu0 0.0
    %901 = vmatprep.subr.mxu0 0.0
    %902 = vmatpush1.xpose.msra.mxu0 0.0
    %903 = vmatprep.subr.mxu0 0.0
    %904 = vmatpush1.xpose.msra.mxu0 0.0
    %905 = vmatprep.subr.mxu0 0.0
    %906 = vmatpush1.xpose.msra.mxu0 0.0
    %907 = vmatprep.subr.mxu0 0.0
    %908 = vmatpush1.xpose.msra.mxu0 0.0
    %909 = vmatprep.subr.mxu0 0.0
    %910 = vmatpush1.xpose.msra.mxu0 0.0
    %911 = vmatprep.subr.mxu0 0.0
    %912 = vmatpush1.xpose.msra.mxu0 0.0
    %913 = vmatprep.subr.mxu0 0.0
    %914 = vmatpush1.xpose.msra.mxu0 0.0
    %915 = vmatprep.subr.mxu0 0.0
    %916 = vmatpush1.xpose.msra.mxu0 0.0
    %917 = vmatprep.subr.mxu0 0.0
    %918 = vmatpush1.xpose.msra.mxu0 0.0
    %919 = vmatprep.subr.mxu0 0.0
    %920 = vmatpush1.xpose.msra.mxu0 0.0
    %921 = vmatprep.subr.mxu0 0.0
    %922 = vmatpush1.xpose.msra.mxu0 0.0
    %923 = vmatprep.subr.mxu0 0.0
    %924 = vmatpush1.xpose.msra.mxu0 0.0
    %925 = vmatprep.subr.mxu0 0.0
    %926 = vmatpush1.xpose.msra.mxu0 0.0
    %927 = vmatprep.subr.mxu0 0.0
    %928 = vmatpush1.xpose.msra.mxu0 0.0
    %929 = vmatprep.subr.mxu0 0.0
    %930 = vmatpush1.xpose.msra.mxu0 0.0
    %931 = vmatprep.subr.mxu0 0.0
    %932 = vmatpush1.xpose.msra.mxu0 0.0
    %933 = vmatprep.subr.mxu0 0.0
    %934 = vmatpush1.xpose.msra.mxu0 0.0
    %935 = vmatprep.subr.mxu0 0.0
    %936 = vmatpush1.xpose.msra.mxu0 0.0
    %937 = vmatprep.subr.mxu0 0.0
    %938 = vmatpush1.xpose.msra.mxu0 0.0
    %939 = vmatprep.subr.mxu0 0.0
    %940 = vmatpush1.xpose.msra.mxu0 0.0
    %941 = vmatprep.subr.mxu0 0.0
    %942 = vmatpush1.xpose.msra.mxu0 0.0
    %943 = vmatprep.subr.mxu0 0.0
    %944 = vmatpush1.xpose.msra.mxu0 0.0
    %945 = vmatprep.subr.mxu0 0.0
    %946 = vmatpush1.xpose.msra.mxu0 0.0
    %947 = vmatprep.subr.mxu0 0.0
    %948 = vmatpush1.xpose.msra.mxu0 0.0
    %949 = vmatprep.subr.mxu0 0.0
    %950 = vmatpush1.xpose.msra.mxu0 0.0
    %951 = vmatprep.subr.mxu0 0.0
    %952 = vmatpush1.xpose.msra.mxu0 0.0
    %953 = vmatprep.subr.mxu0 0.0
    %954 = vmatpush1.xpose.msra.mxu0 0.0
    %955 = vmatprep.subr.mxu0 0.0
    %956 = vmatpush1.xpose.msra.mxu0 0.0
    %957 = vmatprep.mubr.f32.mxu0 0.0
    %958 = vmatmul.mubr.f32.gmra.mrb[0].mxu0 %v889
    %v959 = vpop.f32.mrb[0].mxu0
    %v960 = vadd.f32 0.0, %v959
    %v961 = vpop.f32.mrb[0].mxu0
    %962 = vdwg.mxu0
    %v963 = vsel %vm226, %v960, -inf
    %964 = vmax.xlane.f32.xlu0 %v963
    %v965 = vpop.xlane.xlu0 %964
    %v966 = vsub.f32 %v960, %v965
    %v967 = vmul.f32 %v966, 1.442695
    %v968 = vpow.pop %v967
    %v969 = vsel %vm226, %v968, 0.0
    %970 = vadd.xlane.f32.xlu0 %v969
    %v971 = vpop.xlane.xlu0 %970
    %v972 = vrcp.pop %v971
    %v973 = vmul.f32 %v968, %v972
    %974 = vrot.lane.b32.xlu0 %v224, 64
    %v975 = vpop.permute.xlu0 %974
    %v978 = vsel %vm226, %v973, 0
    %980 = vmatprep.subr.mxu0 0.0
    %981 = vmatpush1.msra.mxu0 %v975
    %982 = vmatprep.subr.mxu0 0.0
    %983 = vmatpush1.msra.mxu0 0.0
    %984 = vmatprep.subr.mxu0 0.0
    %985 = vmatpush1.msra.mxu0 0.0
    %986 = vmatprep.subr.mxu0 0.0
    %987 = vmatpush1.msra.mxu0 0.0
    %988 = vmatprep.subr.mxu0 0.0
    %989 = vmatpush1.msra.mxu0 0.0
    %990 = vmatprep.subr.mxu0 0.0
    %991 = vmatpush1.msra.mxu0 0.0
    %992 = vmatprep.subr.mxu0 0.0
    %993 = vmatpush1.msra.mxu0 0.0
    %994 = vmatprep.subr.mxu0 0.0
    %995 = vmatpush1.msra.mxu0 0.0
    %996 = vmatprep.subr.mxu0 0.0
    %997 = vmatpush1.msra.mxu0 0.0
    %998 = vmatprep.subr.mxu0 0.0
    %999 = vmatpush1.msra.mxu0 0.0
    %1000 = vmatprep.subr.mxu0 0.0
    %1001 = vmatpush1.msra.mxu0 0.0
    %1002 = vmatprep.subr.mxu0 0.0
    %1003 = vmatpush1.msra.mxu0 0.0
    %1004 = vmatprep.subr.mxu0 0.0
    %1005 = vmatpush1.msra.mxu0 0.0
    %1006 = vmatprep.subr.mxu0 0.0
    %1007 = vmatpush1.msra.mxu0 0.0
    %1008 = vmatprep.subr.mxu0 0.0
    %1009 = vmatpush1.msra.mxu0 0.0
    %1010 = vmatprep.subr.mxu0 0.0
    %1011 = vmatpush1.msra.mxu0 0.0
    %1012 = vmatprep.subr.mxu0 0.0
    %1013 = vmatpush1.msra.mxu0 0.0
    %1014 = vmatprep.subr.mxu0 0.0
    %1015 = vmatpush1.msra.mxu0 0.0
    %1016 = vmatprep.subr.mxu0 0.0
    %1017 = vmatpush1.msra.mxu0 0.0
    %1018 = vmatprep.subr.mxu0 0.0
    %1019 = vmatpush1.msra.mxu0 0.0
    %1020 = vmatprep.subr.mxu0 0.0
    %1021 = vmatpush1.msra.mxu0 0.0
    %1022 = vmatprep.subr.mxu0 0.0
    %1023 = vmatpush1.msra.mxu0 0.0
    %1024 = vmatprep.subr.mxu0 0.0
    %1025 = vmatpush1.msra.mxu0 0.0
    %1026 = vmatprep.subr.mxu0 0.0
    %1027 = vmatpush1.msra.mxu0 0.0
    %1028 = vmatprep.subr.mxu0 0.0
    %1029 = vmatpush1.msra.mxu0 0.0
    %1030 = vmatprep.subr.mxu0 0.0
    %1031 = vmatpush1.msra.mxu0 0.0
    %1032 = vmatprep.subr.mxu0 0.0
    %1033 = vmatpush1.msra.mxu0 0.0
    %1034 = vmatprep.subr.mxu0 0.0
    %1035 = vmatpush1.msra.mxu0 0.0
    %1036 = vmatprep.subr.mxu0 0.0
    %1037 = vmatpush1.msra.mxu0 0.0
    %1038 = vmatprep.subr.mxu0 0.0
    %1039 = vmatpush1.msra.mxu0 0.0
    %1040 = vmatprep.subr.mxu0 0.0
    %1041 = vmatpush1.msra.mxu0 0.0
    %1042 = vmatprep.subr.mxu0 0.0
    %1043 = vmatpush1.msra.mxu0 0.0
    %1044 = vmatprep.mubr.f32.mxu0 0.0
    %1045 = vmatmul.mubr.f32.gmra.mrb[0].mxu0 %v978
    %v1046 = vpop.f32.mrb[0].mxu0
    %v1047 = vadd.f32 0.0, %v1046
    %v1048 = vpop.f32.mrb[0].mxu0
    %1049 = vdwg.mxu0
    %1050 = vrot.lane.b32.xlu0 %v225, 56
    %v1051 = vpop.permute.xlu0 %1050
    %1052 = vrot.lane.b32.xlu0 %v224, 88
    %v1053 = vpop.permute.xlu0 %1052
    %v1054 = vsel %vm226, %v1051, 0
    %v1056 = vsel %vm226, %v1053, 0
    %1058 = vmatprep.subr.mxu0 0.0
    %1059 = vmatpush1.xpose.msra.mxu0 %v1056
    %1060 = vmatprep.subr.mxu0 0.0
    %1061 = vmatpush1.xpose.msra.mxu0 0.0
    %1062 = vmatprep.subr.mxu0 0.0
    %1063 = vmatpush1.xpose.msra.mxu0 0.0
    %1064 = vmatprep.subr.mxu0 0.0
    %1065 = vmatpush1.xpose.msra.mxu0 0.0
    %1066 = vmatprep.subr.mxu0 0.0
    %1067 = vmatpush1.xpose.msra.mxu0 0.0
    %1068 = vmatprep.subr.mxu0 0.0
    %1069 = vmatpush1.xpose.msra.mxu0 0.0
    %1070 = vmatprep.subr.mxu0 0.0
    %1071 = vmatpush1.xpose.msra.mxu0 0.0
    %1072 = vmatprep.subr.mxu0 0.0
    %1073 = vmatpush1.xpose.msra.mxu0 0.0
    %1074 = vmatprep.subr.mxu0 0.0
    %1075 = vmatpush1.xpose.msra.mxu0 0.0
    %1076 = vmatprep.subr.mxu0 0.0
    %1077 = vmatpush1.xpose.msra.mxu0 0.0
    %1078 = vmatprep.subr.mxu0 0.0
    %1079 = vmatpush1.xpose.msra.mxu0 0.0
    %1080 = vmatprep.subr.mxu0 0.0
    %1081 = vmatpush1.xpose.msra.mxu0 0.0
    %1082 = vmatprep.subr.mxu0 0.0
    %1083 = vmatpush1.xpose.msra.mxu0 0.0
    %1084 = vmatprep.subr.mxu0 0.0
    %1085 = vmatpush1.xpose.msra.mxu0 0.0
    %1086 = vmatprep.subr.mxu0 0.0
    %1087 = vmatpush1.xpose.msra.mxu0 0.0
    %1088 = vmatprep.subr.mxu0 0.0
    %1089 = vmatpush1.xpose.msra.mxu0 0.0
    %1090 = vmatprep.subr.mxu0 0.0
    %1091 = vmatpush1.xpose.msra.mxu0 0.0
    %1092 = vmatprep.subr.mxu0 0.0
    %1093 = vmatpush1.xpose.msra.mxu0 0.0
    %1094 = vmatprep.subr.mxu0 0.0
    %1095 = vmatpush1.xpose.msra.mxu0 0.0
    %1096 = vmatprep.subr.mxu0 0.0
    %1097 = vmatpush1.xpose.msra.mxu0 0.0
    %1098 = vmatprep.subr.mxu0 0.0
    %1099 = vmatpush1.xpose.msra.mxu0 0.0
    %1100 = vmatprep.subr.mxu0 0.0
    %1101 = vmatpush1.xpose.msra.mxu0 0.0
    %1102 = vmatprep.subr.mxu0 0.0
    %1103 = vmatpush1.xpose.msra.mxu0 0.0
    %1104 = vmatprep.subr.mxu0 0.0
    %1105 = vmatpush1.xpose.msra.mxu0 0.0
    %1106 = vmatprep.subr.mxu0 0.0
    %1107 = vmatpush1.xpose.msra.mxu0 0.0
    %1108 = vmatprep.subr.mxu0 0.0
    %1109 = vmatpush1.xpose.msra.mxu0 0.0
    %1110 = vmatprep.subr.mxu0 0.0
    %1111 = vmatpush1.xpose.msra.mxu0 0.0
    %1112 = vmatprep.subr.mxu0 0.0
    %1113 = vmatpush1.xpose.msra.mxu0 0.0
    %1114 = vmatprep.subr.mxu0 0.0
    %1115 = vmatpush1.xpose.msra.mxu0 0.0
    %1116 = vmatprep.subr.mxu0 0.0
    %1117 = vmatpush1.xpose.msra.mxu0 0.0
    %1118 = vmatprep.subr.mxu0 0.0
    %1119 = vmatpush1.xpose.msra.mxu0 0.0
    %1120 = vmatprep.subr.mxu0 0.0
    %1121 = vmatpush1.xpose.msra.mxu0 0.0
    %1122 = vmatprep.mubr.f32.mxu0 0.0
    %1123 = vmatmul.mubr.f32.gmra.mrb[0].mxu0 %v1054
    %v1124 = vpop.f32.mrb[0].mxu0
    %v1125 = vadd.f32 0.0, %v1124
    %v1126 = vpop.f32.mrb[0].mxu0
    %1127 = vdwg.mxu0
    %v1128 = vsel %vm226, %v1125, -inf
    %1129 = vmax.xlane.f32.xlu0 %v1128
    %v1130 = vpop.xlane.xlu0 %1129
    %v1131 = vsub.f32 %v1125, %v1130
    %v1132 = vmul.f32 %v1131, 1.442695
    %v1133 = vpow.pop %v1132
    %v1134 = vsel %vm226, %v1133, 0.0
    %1135 = vadd.xlane.f32.xlu0 %v1134
    %v1136 = vpop.xlane.xlu0 %1135
    %v1137 = vrcp.pop %v1136
    %v1138 = vmul.f32 %v1133, %v1137
    %1139 = vrot.lane.b32.xlu0 %v224, 56
    %v1140 = vpop.permute.xlu0 %1139
    %v1143 = vsel %vm226, %v1138, 0
    %1145 = vmatprep.subr.mxu0 0.0
    %1146 = vmatpush1.msra.mxu0 %v1140
    %1147 = vmatprep.subr.mxu0 0.0
    %1148 = vmatpush1.msra.mxu0 0.0
    %1149 = vmatprep.subr.mxu0 0.0
    %1150 = vmatpush1.msra.mxu0 0.0
    %1151 = vmatprep.subr.mxu0 0.0
    %1152 = vmatpush1.msra.mxu0 0.0
    %1153 = vmatprep.subr.mxu0 0.0
    %1154 = vmatpush1.msra.mxu0 0.0
    %1155 = vmatprep.subr.mxu0 0.0
    %1156 = vmatpush1.msra.mxu0 0.0
    %1157 = vmatprep.subr.mxu0 0.0
    %1158 = vmatpush1.msra.mxu0 0.0
    %1159 = vmatprep.subr.mxu0 0.0
    %1160 = vmatpush1.msra.mxu0 0.0
    %1161 = vmatprep.subr.mxu0 0.0
    %1162 = vmatpush1.msra.mxu0 0.0
    %1163 = vmatprep.subr.mxu0 0.0
    %1164 = vmatpush1.msra.mxu0 0.0
    %1165 = vmatprep.subr.mxu0 0.0
    %1166 = vmatpush1.msra.mxu0 0.0
    %1167 = vmatprep.subr.mxu0 0.0
    %1168 = vmatpush1.msra.mxu0 0.0
    %1169 = vmatprep.subr.mxu0 0.0
    %1170 = vmatpush1.msra.mxu0 0.0
    %1171 = vmatprep.subr.mxu0 0.0
    %1172 = vmatpush1.msra.mxu0 0.0
    %1173 = vmatprep.subr.mxu0 0.0
    %1174 = vmatpush1.msra.mxu0 0.0
    %1175 = vmatprep.subr.mxu0 0.0
    %1176 = vmatpush1.msra.mxu0 0.0
    %1177 = vmatprep.subr.mxu0 0.0
    %1178 = vmatpush1.msra.mxu0 0.0
    %1179 = vmatprep.subr.mxu0 0.0
    %1180 = vmatpush1.msra.mxu0 0.0
    %1181 = vmatprep.subr.mxu0 0.0
    %1182 = vmatpush1.msra.mxu0 0.0
    %1183 = vmatprep.subr.mxu0 0.0
    %1184 = vmatpush1.msra.mxu0 0.0
    %1185 = vmatprep.subr.mxu0 0.0
    %1186 = vmatpush1.msra.mxu0 0.0
    %1187 = vmatprep.subr.mxu0 0.0
    %1188 = vmatpush1.msra.mxu0 0.0
    %1189 = vmatprep.subr.mxu0 0.0
    %1190 = vmatpush1.msra.mxu0 0.0
    %1191 = vmatprep.subr.mxu0 0.0
    %1192 = vmatpush1.msra.mxu0 0.0
    %1193 = vmatprep.subr.mxu0 0.0
    %1194 = vmatpush1.msra.mxu0 0.0
    %1195 = vmatprep.subr.mxu0 0.0
    %1196 = vmatpush1.msra.mxu0 0.0
    %1197 = vmatprep.subr.mxu0 0.0
    %1198 = vmatpush1.msra.mxu0 0.0
    %1199 = vmatprep.subr.mxu0 0.0
    %1200 = vmatpush1.msra.mxu0 0.0
    %1201 = vmatprep.subr.mxu0 0.0
    %1202 = vmatpush1.msra.mxu0 0.0
    %1203 = vmatprep.subr.mxu0 0.0
    %1204 = vmatpush1.msra.mxu0 0.0
    %1205 = vmatprep.subr.mxu0 0.0
    %1206 = vmatpush1.msra.mxu0 0.0
    %1207 = vmatprep.subr.mxu0 0.0
    %1208 = vmatpush1.msra.mxu0 0.0
    %1209 = vmatprep.mubr.f32.mxu0 0.0
    %1210 = vmatmul.mubr.f32.gmra.mrb[0].mxu0 %v1143
    %v1211 = vpop.f32.mrb[0].mxu0
    %v1212 = vadd.f32 0.0, %v1211
    %v1213 = vpop.f32.mrb[0].mxu0
    %1214 = vdwg.mxu0
    %1215 = vrot.lane.b32.xlu0 %v225, 48
    %v1216 = vpop.permute.xlu0 %1215
    %1217 = vrot.lane.b32.xlu0 %v224, 80
    %v1218 = vpop.permute.xlu0 %1217
    %v1219 = vsel %vm226, %v1216, 0
    %v1221 = vsel %vm226, %v1218, 0
    %1223 = vmatprep.subr.mxu0 0.0
    %1224 = vmatpush1.xpose.msra.mxu0 %v1221
    %1225 = vmatprep.subr.mxu0 0.0
    %1226 = vmatpush1.xpose.msra.mxu0 0.0
    %1227 = vmatprep.subr.mxu0 0.0
    %1228 = vmatpush1.xpose.msra.mxu0 0.0
    %1229 = vmatprep.subr.mxu0 0.0
    %1230 = vmatpush1.xpose.msra.mxu0 0.0
    %1231 = vmatprep.subr.mxu0 0.0
    %1232 = vmatpush1.xpose.msra.mxu0 0.0
    %1233 = vmatprep.subr.mxu0 0.0
    %1234 = vmatpush1.xpose.msra.mxu0 0.0
    %1235 = vmatprep.subr.mxu0 0.0
    %1236 = vmatpush1.xpose.msra.mxu0 0.0
    %1237 = vmatprep.subr.mxu0 0.0
    %1238 = vmatpush1.xpose.msra.mxu0 0.0
    %1239 = vmatprep.subr.mxu0 0.0
    %1240 = vmatpush1.xpose.msra.mxu0 0.0
    %1241 = vmatprep.subr.mxu0 0.0
    %1242 = vmatpush1.xpose.msra.mxu0 0.0
    %1243 = vmatprep.subr.mxu0 0.0
    %1244 = vmatpush1.xpose.msra.mxu0 0.0
    %1245 = vmatprep.subr.mxu0 0.0
    %1246 = vmatpush1.xpose.msra.mxu0 0.0
    %1247 = vmatprep.subr.mxu0 0.0
    %1248 = vmatpush1.xpose.msra.mxu0 0.0
    %1249 = vmatprep.subr.mxu0 0.0
    %1250 = vmatpush1.xpose.msra.mxu0 0.0
    %1251 = vmatprep.subr.mxu0 0.0
    %1252 = vmatpush1.xpose.msra.mxu0 0.0
    %1253 = vmatprep.subr.mxu0 0.0
    %1254 = vmatpush1.xpose.msra.mxu0 0.0
    %1255 = vmatprep.subr.mxu0 0.0
    %1256 = vmatpush1.xpose.msra.mxu0 0.0
    %1257 = vmatprep.subr.mxu0 0.0
    %1258 = vmatpush1.xpose.msra.mxu0 0.0
    %1259 = vmatprep.subr.mxu0 0.0
    %1260 = vmatpush1.xpose.msra.mxu0 0.0
    %1261 = vmatprep.subr.mxu0 0.0
    %1262 = vmatpush1.xpose.msra.mxu0 0.0
    %1263 = vmatprep.subr.mxu0 0.0
    %1264 = vmatpush1.xpose.msra.mxu0 0.0
    %1265 = vmatprep.subr.mxu0 0.0
    %1266 = vmatpush1.xpose.msra.mxu0 0.0
    %1267 = vmatprep.subr.mxu0 0.0
    %1268 = vmatpush1.xpose.msra.mxu0 0.0
    %1269 = vmatprep.subr.mxu0 0.0
    %1270 = vmatpush1.xpose.msra.mxu0 0.0
    %1271 = vmatprep.subr.mxu0 0.0
    %1272 = vmatpush1.xpose.msra.mxu0 0.0
    %1273 = vmatprep.subr.mxu0 0.0
    %1274 = vmatpush1.xpose.msra.mxu0 0.0
    %1275 = vmatprep.subr.mxu0 0.0
    %1276 = vmatpush1.xpose.msra.mxu0 0.0
    %1277 = vmatprep.subr.mxu0 0.0
    %1278 = vmatpush1.xpose.msra.mxu0 0.0
    %1279 = vmatprep.subr.mxu0 0.0
    %1280 = vmatpush1.xpose.msra.mxu0 0.0
    %1281 = vmatprep.subr.mxu0 0.0
    %1282 = vmatpush1.xpose.msra.mxu0 0.0
    %1283 = vmatprep.subr.mxu0 0.0
    %1284 = vmatpush1.xpose.msra.mxu0 0.0
    %1285 = vmatprep.subr.mxu0 0.0
    %1286 = vmatpush1.xpose.msra.mxu0 0.0
    %1287 = vmatprep.mubr.f32.mxu0 0.0
    %1288 = vmatmul.mubr.f32.gmra.mrb[0].mxu0 %v1219
    %v1289 = vpop.f32.mrb[0].mxu0
    %v1290 = vadd.f32 0.0, %v1289
    %v1291 = vpop.f32.mrb[0].mxu0
    %1292 = vdwg.mxu0
    %v1293 = vsel %vm226, %v1290, -inf
    %1294 = vmax.xlane.f32.xlu0 %v1293
    %v1295 = vpop.xlane.xlu0 %1294
    %v1296 = vsub.f32 %v1290, %v1295
    %v1297 = vmul.f32 %v1296, 1.442695
    %v1298 = vpow.pop %v1297
    %v1299 = vsel %vm226, %v1298, 0.0
    %1300 = vadd.xlane.f32.xlu0 %v1299
    %v1301 = vpop.xlane.xlu0 %1300
    %v1302 = vrcp.pop %v1301
    %v1303 = vmul.f32 %v1298, %v1302
    %1304 = vrot.lane.b32.xlu0 %v224, 48
    %v1305 = vpop.permute.xlu0 %1304
    %v1308 = vsel %vm226, %v1303, 0
    %1310 = vmatprep.subr.mxu0 0.0
    %1311 = vmatpush1.msra.mxu0 %v1305
    %1312 = vmatprep.subr.mxu0 0.0
    %1313 = vmatpush1.msra.mxu0 0.0
    %1314 = vmatprep.subr.mxu0 0.0
    %1315 = vmatpush1.msra.mxu0 0.0
    %1316 = vmatprep.subr.mxu0 0.0
    %1317 = vmatpush1.msra.mxu0 0.0
    %1318 = vmatprep.subr.mxu0 0.0
    %1319 = vmatpush1.msra.mxu0 0.0
    %1320 = vmatprep.subr.mxu0 0.0
    %1321 = vmatpush1.msra.mxu0 0.0
    %1322 = vmatprep.subr.mxu0 0.0
    %1323 = vmatpush1.msra.mxu0 0.0
    %1324 = vmatprep.subr.mxu0 0.0
    %1325 = vmatpush1.msra.mxu0 0.0
    %1326 = vmatprep.subr.mxu0 0.0
    %1327 = vmatpush1.msra.mxu0 0.0
    %1328 = vmatprep.subr.mxu0 0.0
    %1329 = vmatpush1.msra.mxu0 0.0
    %1330 = vmatprep.subr.mxu0 0.0
    %1331 = vmatpush1.msra.mxu0 0.0
    %1332 = vmatprep.subr.mxu0 0.0
    %1333 = vmatpush1.msra.mxu0 0.0
    %1334 = vmatprep.subr.mxu0 0.0
    %1335 = vmatpush1.msra.mxu0 0.0
    %1336 = vmatprep.subr.mxu0 0.0
    %1337 = vmatpush1.msra.mxu0 0.0
    %1338 = vmatprep.subr.mxu0 0.0
    %1339 = vmatpush1.msra.mxu0 0.0
    %1340 = vmatprep.subr.mxu0 0.0
    %1341 = vmatpush1.msra.mxu0 0.0
    %1342 = vmatprep.subr.mxu0 0.0
    %1343 = vmatpush1.msra.mxu0 0.0
    %1344 = vmatprep.subr.mxu0 0.0
    %1345 = vmatpush1.msra.mxu0 0.0
    %1346 = vmatprep.subr.mxu0 0.0
    %1347 = vmatpush1.msra.mxu0 0.0
    %1348 = vmatprep.subr.mxu0 0.0
    %1349 = vmatpush1.msra.mxu0 0.0
    %1350 = vmatprep.subr.mxu0 0.0
    %1351 = vmatpush1.msra.mxu0 0.0
    %1352 = vmatprep.subr.mxu0 0.0
    %1353 = vmatpush1.msra.mxu0 0.0
    %1354 = vmatprep.subr.mxu0 0.0
    %1355 = vmatpush1.msra.mxu0 0.0
    %1356 = vmatprep.subr.mxu0 0.0
    %1357 = vmatpush1.msra.mxu0 0.0
    %1358 = vmatprep.subr.mxu0 0.0
    %1359 = vmatpush1.msra.mxu0 0.0
    %1360 = vmatprep.subr.mxu0 0.0
    %1361 = vmatpush1.msra.mxu0 0.0
    %1362 = vmatprep.subr.mxu0 0.0
    %1363 = vmatpush1.msra.mxu0 0.0
    %1364 = vmatprep.subr.mxu0 0.0
    %1365 = vmatpush1.msra.mxu0 0.0
    %1366 = vmatprep.subr.mxu0 0.0
    %1367 = vmatpush1.msra.mxu0 0.0
    %1368 = vmatprep.subr.mxu0 0.0
    %1369 = vmatpush1.msra.mxu0 0.0
    %1370 = vmatprep.subr.mxu0 0.0
    %1371 = vmatpush1.msra.mxu0 0.0
    %1372 = vmatprep.subr.mxu0 0.0
    %1373 = vmatpush1.msra.mxu0 0.0
    %1374 = vmatprep.mubr.f32.mxu0 0.0
    %1375 = vmatmul.mubr.f32.gmra.mrb[0].mxu0 %v1308
    %v1376 = vpop.f32.mrb[0].mxu0
    %v1377 = vadd.f32 0.0, %v1376
    %v1378 = vpop.f32.mrb[0].mxu0
    %1379 = vdwg.mxu0
    %1380 = vrot.lane.b32.xlu0 %v225, 40
    %v1381 = vpop.permute.xlu0 %1380
    %1382 = vrot.lane.b32.xlu0 %v224, 72
    %v1383 = vpop.permute.xlu0 %1382
    %v1384 = vsel %vm226, %v1381, 0
    %v1386 = vsel %vm226, %v1383, 0
    %1388 = vmatprep.subr.mxu0 0.0
    %1389 = vmatpush1.xpose.msra.mxu0 %v1386
    %1390 = vmatprep.subr.mxu0 0.0
    %1391 = vmatpush1.xpose.msra.mxu0 0.0
    %1392 = vmatprep.subr.mxu0 0.0
    %1393 = vmatpush1.xpose.msra.mxu0 0.0
    %1394 = vmatprep.subr.mxu0 0.0
    %1395 = vmatpush1.xpose.msra.mxu0 0.0
    %1396 = vmatprep.subr.mxu0 0.0
    %1397 = vmatpush1.xpose.msra.mxu0 0.0
    %1398 = vmatprep.subr.mxu0 0.0
    %1399 = vmatpush1.xpose.msra.mxu0 0.0
    %1400 = vmatprep.subr.mxu0 0.0
    %1401 = vmatpush1.xpose.msra.mxu0 0.0
    %1402 = vmatprep.subr.mxu0 0.0
    %1403 = vmatpush1.xpose.msra.mxu0 0.0
    %1404 = vmatprep.subr.mxu0 0.0
    %1405 = vmatpush1.xpose.msra.mxu0 0.0
    %1406 = vmatprep.subr.mxu0 0.0
    %1407 = vmatpush1.xpose.msra.mxu0 0.0
    %1408 = vmatprep.subr.mxu0 0.0
    %1409 = vmatpush1.xpose.msra.mxu0 0.0
    %1410 = vmatprep.subr.mxu0 0.0
    %1411 = vmatpush1.xpose.msra.mxu0 0.0
    %1412 = vmatprep.subr.mxu0 0.0
    %1413 = vmatpush1.xpose.msra.mxu0 0.0
    %1414 = vmatprep.subr.mxu0 0.0
    %1415 = vmatpush1.xpose.msra.mxu0 0.0
    %1416 = vmatprep.subr.mxu0 0.0
    %1417 = vmatpush1.xpose.msra.mxu0 0.0
    %1418 = vmatprep.subr.mxu0 0.0
    %1419 = vmatpush1.xpose.msra.mxu0 0.0
    %1420 = vmatprep.subr.mxu0 0.0
    %1421 = vmatpush1.xpose.msra.mxu0 0.0
    %1422 = vmatprep.subr.mxu0 0.0
    %1423 = vmatpush1.xpose.msra.mxu0 0.0
    %1424 = vmatprep.subr.mxu0 0.0
    %1425 = vmatpush1.xpose.msra.mxu0 0.0
    %1426 = vmatprep.subr.mxu0 0.0
    %1427 = vmatpush1.xpose.msra.mxu0 0.0
    %1428 = vmatprep.subr.mxu0 0.0
    %1429 = vmatpush1.xpose.msra.mxu0 0.0
    %1430 = vmatprep.subr.mxu0 0.0
    %1431 = vmatpush1.xpose.msra.mxu0 0.0
    %1432 = vmatprep.subr.mxu0 0.0
    %1433 = vmatpush1.xpose.msra.mxu0 0.0
    %1434 = vmatprep.subr.mxu0 0.0
    %1435 = vmatpush1.xpose.msra.mxu0 0.0
    %1436 = vmatprep.subr.mxu0 0.0
    %1437 = vmatpush1.xpose.msra.mxu0 0.0
    %1438 = vmatprep.subr.mxu0 0.0
    %1439 = vmatpush1.xpose.msra.mxu0 0.0
    %1440 = vmatprep.subr.mxu0 0.0
    %1441 = vmatpush1.xpose.msra.mxu0 0.0
    %1442 = vmatprep.subr.mxu0 0.0
    %1443 = vmatpush1.xpose.msra.mxu0 0.0
    %1444 = vmatprep.subr.mxu0 0.0
    %1445 = vmatpush1.xpose.msra.mxu0 0.0
    %1446 = vmatprep.subr.mxu0 0.0
    %1447 = vmatpush1.xpose.msra.mxu0 0.0
    %1448 = vmatprep.subr.mxu0 0.0
    %1449 = vmatpush1.xpose.msra.mxu0 0.0
    %1450 = vmatprep.subr.mxu0 0.0
    %1451 = vmatpush1.xpose.msra.mxu0 0.0
    %1452 = vmatprep.mubr.f32.mxu0 0.0
    %1453 = vmatmul.mubr.f32.gmra.mrb[0].mxu0 %v1384
    %v1454 = vpop.f32.mrb[0].mxu0
    %v1455 = vadd.f32 0.0, %v1454
    %v1456 = vpop.f32.mrb[0].mxu0
    %1457 = vdwg.mxu0
    %v1458 = vsel %vm226, %v1455, -inf
    %1459 = vmax.xlane.f32.xlu0 %v1458
    %v1460 = vpop.xlane.xlu0 %1459
    %v1461 = vsub.f32 %v1455, %v1460
    %v1462 = vmul.f32 %v1461, 1.442695
    %v1463 = vpow.pop %v1462
    %v1464 = vsel %vm226, %v1463, 0.0
    %1465 = vadd.xlane.f32.xlu0 %v1464
    %v1466 = vpop.xlane.xlu0 %1465
    %v1467 = vrcp.pop %v1466
    %v1468 = vmul.f32 %v1463, %v1467
    %1469 = vrot.lane.b32.xlu0 %v224, 40
    %v1470 = vpop.permute.xlu0 %1469
    %v1473 = vsel %vm226, %v1468, 0
    %1475 = vmatprep.subr.mxu0 0.0
    %1476 = vmatpush1.msra.mxu0 %v1470
    %1477 = vmatprep.subr.mxu0 0.0
    %1478 = vmatpush1.msra.mxu0 0.0
    %1479 = vmatprep.subr.mxu0 0.0
    %1480 = vmatpush1.msra.mxu0 0.0
    %1481 = vmatprep.subr.mxu0 0.0
    %1482 = vmatpush1.msra.mxu0 0.0
    %1483 = vmatprep.subr.mxu0 0.0
    %1484 = vmatpush1.msra.mxu0 0.0
    %1485 = vmatprep.subr.mxu0 0.0
    %1486 = vmatpush1.msra.mxu0 0.0
    %1487 = vmatprep.subr.mxu0 0.0
    %1488 = vmatpush1.msra.mxu0 0.0
    %1489 = vmatprep.subr.mxu0 0.0
    %1490 = vmatpush1.msra.mxu0 0.0
    %1491 = vmatprep.subr.mxu0 0.0
    %1492 = vmatpush1.msra.mxu0 0.0
    %1493 = vmatprep.subr.mxu0 0.0
    %1494 = vmatpush1.msra.mxu0 0.0
    %1495 = vmatprep.subr.mxu0 0.0
    %1496 = vmatpush1.msra.mxu0 0.0
    %1497 = vmatprep.subr.mxu0 0.0
    %1498 = vmatpush1.msra.mxu0 0.0
    %1499 = vmatprep.subr.mxu0 0.0
    %1500 = vmatpush1.msra.mxu0 0.0
    %1501 = vmatprep.subr.mxu0 0.0
    %1502 = vmatpush1.msra.mxu0 0.0
    %1503 = vmatprep.subr.mxu0 0.0
    %1504 = vmatpush1.msra.mxu0 0.0
    %1505 = vmatprep.subr.mxu0 0.0
    %1506 = vmatpush1.msra.mxu0 0.0
    %1507 = vmatprep.subr.mxu0 0.0
    %1508 = vmatpush1.msra.mxu0 0.0
    %1509 = vmatprep.subr.mxu0 0.0
    %1510 = vmatpush1.msra.mxu0 0.0
    %1511 = vmatprep.subr.mxu0 0.0
    %1512 = vmatpush1.msra.mxu0 0.0
    %1513 = vmatprep.subr.mxu0 0.0
    %1514 = vmatpush1.msra.mxu0 0.0
    %1515 = vmatprep.subr.mxu0 0.0
    %1516 = vmatpush1.msra.mxu0 0.0
    %1517 = vmatprep.subr.mxu0 0.0
    %1518 = vmatpush1.msra.mxu0 0.0
    %1519 = vmatprep.subr.mxu0 0.0
    %1520 = vmatpush1.msra.mxu0 0.0
    %1521 = vmatprep.subr.mxu0 0.0
    %1522 = vmatpush1.msra.mxu0 0.0
    %1523 = vmatprep.subr.mxu0 0.0
    %1524 = vmatpush1.msra.mxu0 0.0
    %1525 = vmatprep.subr.mxu0 0.0
    %1526 = vmatpush1.msra.mxu0 0.0
    %1527 = vmatprep.subr.mxu0 0.0
    %1528 = vmatpush1.msra.mxu0 0.0
    %1529 = vmatprep.subr.mxu0 0.0
    %1530 = vmatpush1.msra.mxu0 0.0
    %1531 = vmatprep.subr.mxu0 0.0
    %1532 = vmatpush1.msra.mxu0 0.0
    %1533 = vmatprep.subr.mxu0 0.0
    %1534 = vmatpush1.msra.mxu0 0.0
    %1535 = vmatprep.subr.mxu0 0.0
    %1536 = vmatpush1.msra.mxu0 0.0
    %1537 = vmatprep.subr.mxu0 0.0
    %1538 = vmatpush1.msra.mxu0 0.0
    %1539 = vmatprep.mubr.f32.mxu0 0.0
    %1540 = vmatmul.mubr.f32.gmra.mrb[0].mxu0 %v1473
    %v1541 = vpop.f32.mrb[0].mxu0
    %v1542 = vadd.f32 0.0, %v1541
    %v1543 = vpop.f32.mrb[0].mxu0
    %1544 = vdwg.mxu0
    %1546 = vrot.lane.b32.xlu0 %v552, 8
    %v1547 = vpop.permute.xlu0 %1546
    %1550 = vrot.lane.b32.xlu0 %v717, 16
    %v1551 = vpop.permute.xlu0 %1550
    %1554 = vrot.lane.b32.xlu0 %v882, 24
    %v1555 = vpop.permute.xlu0 %1554
    %1558 = vrot.lane.b32.xlu0 %v1047, 32
    %v1559 = vpop.permute.xlu0 %1558
    %1562 = vrot.lane.b32.xlu0 %v1212, 40
    %v1563 = vpop.permute.xlu0 %1562
    %1566 = vrot.lane.b32.xlu0 %v1377, 48
    %v1567 = vpop.permute.xlu0 %1566
    %1570 = vrot.lane.b32.xlu0 %v1542, 56
    %v1571 = vpop.permute.xlu0 %1570
    %v1573 = vsel %vm226, %v387, %v1547
    %vm1574 = vcmask 130048
    %v1575 = vsel %vm1574, %v1573, %v1551
    %vm1576 = vcmask 195584
    %v1577 = vsel %vm1576, %v1575, %v1555
    %v1578 = vsel %vm45, %v1577, %v1559
    %vm1579 = vcmask 326656
    %v1580 = vsel %vm1579, %v1578, %v1563
    %vm1581 = vcmask 392192
    %v1582 = vsel %vm1581, %v1580, %v1567
    %vm1583 = vcmask 457728
    %v1584 = vsel %vm1583, %v1582, %v1571
    %vm1585 = vcmask 523264
    %1586 = vst.msk [vmem:[#allocation4] sm:$0xff] %vm1585, %v1584
    %s1587 = scalar_lea.vmem [#allocation2], 8
    %v1588 = vld [vmem:[%s1587] sm:$0xff]
    %s1589 = scalar_lea.vmem [#allocation3], 8
    %v1590 = vld [vmem:[%s1589] sm:$0xff]
    %v1592 = vsel %vm226, %v1588, 0
    %v1595 = vsel %vm226, %v1590, 0
    %1597 = vmatprep.subr.mxu0 0.0
    %1598 = vmatpush1.xpose.msra.mxu0 %v1595
    %1599 = vmatprep.subr.mxu0 0.0
    %1600 = vmatpush1.xpose.msra.mxu0 0.0
    %1601 = vmatprep.subr.mxu0 0.0
    %1602 = vmatpush1.xpose.msra.mxu0 0.0
    %1603 = vmatprep.subr.mxu0 0.0
    %1604 = vmatpush1.xpose.msra.mxu0 0.0
    %1605 = vmatprep.subr.mxu0 0.0
    %1606 = vmatpush1.xpose.msra.mxu0 0.0
    %1607 = vmatprep.subr.mxu0 0.0
    %1608 = vmatpush1.xpose.msra.mxu0 0.0
    %1609 = vmatprep.subr.mxu0 0.0
    %1610 = vmatpush1.xpose.msra.mxu0 0.0
    %1611 = vmatprep.subr.mxu0 0.0
    %1612 = vmatpush1.xpose.msra.mxu0 0.0
    %1613 = vmatprep.subr.mxu0 0.0
    %1614 = vmatpush1.xpose.msra.mxu0 0.0
    %1615 = vmatprep.subr.mxu0 0.0
    %1616 = vmatpush1.xpose.msra.mxu0 0.0
    %1617 = vmatprep.subr.mxu0 0.0
    %1618 = vmatpush1.xpose.msra.mxu0 0.0
    %1619 = vmatprep.subr.mxu0 0.0
    %1620 = vmatpush1.xpose.msra.mxu0 0.0
    %1621 = vmatprep.subr.mxu0 0.0
    %1622 = vmatpush1.xpose.msra.mxu0 0.0
    %1623 = vmatprep.subr.mxu0 0.0
    %1624 = vmatpush1.xpose.msra.mxu0 0.0
    %1625 = vmatprep.subr.mxu0 0.0
    %1626 = vmatpush1.xpose.msra.mxu0 0.0
    %1627 = vmatprep.subr.mxu0 0.0
    %1628 = vmatpush1.xpose.msra.mxu0 0.0
    %1629 = vmatprep.subr.mxu0 0.0
    %1630 = vmatpush1.xpose.msra.mxu0 0.0
    %1631 = vmatprep.subr.mxu0 0.0
    %1632 = vmatpush1.xpose.msra.mxu0 0.0
    %1633 = vmatprep.subr.mxu0 0.0
    %1634 = vmatpush1.xpose.msra.mxu0 0.0
    %1635 = vmatprep.subr.mxu0 0.0
    %1636 = vmatpush1.xpose.msra.mxu0 0.0
    %1637 = vmatprep.subr.mxu0 0.0
    %1638 = vmatpush1.xpose.msra.mxu0 0.0
    %1639 = vmatprep.subr.mxu0 0.0
    %1640 = vmatpush1.xpose.msra.mxu0 0.0
    %1641 = vmatprep.subr.mxu0 0.0
    %1642 = vmatpush1.xpose.msra.mxu0 0.0
    %1643 = vmatprep.subr.mxu0 0.0
    %1644 = vmatpush1.xpose.msra.mxu0 0.0
    %1645 = vmatprep.subr.mxu0 0.0
    %1646 = vmatpush1.xpose.msra.mxu0 0.0
    %1647 = vmatprep.subr.mxu0 0.0
    %1648 = vmatpush1.xpose.msra.mxu0 0.0
    %1649 = vmatprep.subr.mxu0 0.0
    %1650 = vmatpush1.xpose.msra.mxu0 0.0
    %1651 = vmatprep.subr.mxu0 0.0
    %1652 = vmatpush1.xpose.msra.mxu0 0.0
    %1653 = vmatprep.subr.mxu0 0.0
    %1654 = vmatpush1.xpose.msra.mxu0 0.0
    %1655 = vmatprep.subr.mxu0 0.0
    %1656 = vmatpush1.xpose.msra.mxu0 0.0
    %1657 = vmatprep.subr.mxu0 0.0
    %1658 = vmatpush1.xpose.msra.mxu0 0.0
    %1659 = vmatprep.subr.mxu0 0.0
    %1660 = vmatpush1.xpose.msra.mxu0 0.0
    %1661 = vmatprep.mubr.f32.mxu0 0.0
    %1662 = vmatmul.mubr.f32.gmra.mrb[0].mxu0 %v1592
    %v1663 = vpop.f32.mrb[0].mxu0
    %v1664 = vadd.f32 0.0, %v1663
    %v1665 = vpop.f32.mrb[0].mxu0
    %1666 = vdwg.mxu0
    %v1667 = vsel %vm226, %v1664, -inf
    %1668 = vmax.xlane.f32.xlu0 %v1667
    %v1669 = vpop.xlane.xlu0 %1668
    %v1670 = vsub.f32 %v1664, %v1669
    %v1671 = vmul.f32 %v1670, 1.442695
    %v1672 = vpow.pop %v1671
    %v1673 = vsel %vm226, %v1672, 0.0
    %1674 = vadd.xlane.f32.xlu0 %v1673
    %v1675 = vpop.xlane.xlu0 %1674
    %v1676 = vrcp.pop %v1675
    %v1677 = vmul.f32 %v1672, %v1676
    %1678 = vrot.lane.b32.xlu0 %v1590, 96
    %v1679 = vpop.permute.xlu0 %1678
    %v1682 = vsel %vm226, %v1677, 0
    %1684 = vmatprep.subr.mxu0 0.0
    %1685 = vmatpush1.msra.mxu0 %v1679
    %1686 = vmatprep.subr.mxu0 0.0
    %1687 = vmatpush1.msra.mxu0 0.0
    %1688 = vmatprep.subr.mxu0 0.0
    %1689 = vmatpush1.msra.mxu0 0.0
    %1690 = vmatprep.subr.mxu0 0.0
    %1691 = vmatpush1.msra.mxu0 0.0
    %1692 = vmatprep.subr.mxu0 0.0
    %1693 = vmatpush1.msra.mxu0 0.0
    %1694 = vmatprep.subr.mxu0 0.0
    %1695 = vmatpush1.msra.mxu0 0.0
    %1696 = vmatprep.subr.mxu0 0.0
    %1697 = vmatpush1.msra.mxu0 0.0
    %1698 = vmatprep.subr.mxu0 0.0
    %1699 = vmatpush1.msra.mxu0 0.0
    %1700 = vmatprep.subr.mxu0 0.0
    %1701 = vmatpush1.msra.mxu0 0.0
    %1702 = vmatprep.subr.mxu0 0.0
    %1703 = vmatpush1.msra.mxu0 0.0
    %1704 = vmatprep.subr.mxu0 0.0
    %1705 = vmatpush1.msra.mxu0 0.0
    %1706 = vmatprep.subr.mxu0 0.0
    %1707 = vmatpush1.msra.mxu0 0.0
    %1708 = vmatprep.subr.mxu0 0.0
    %1709 = vmatpush1.msra.mxu0 0.0
    %1710 = vmatprep.subr.mxu0 0.0
    %1711 = vmatpush1.msra.mxu0 0.0
    %1712 = vmatprep.subr.mxu0 0.0
    %1713 = vmatpush1.msra.mxu0 0.0
    %1714 = vmatprep.subr.mxu0 0.0
    %1715 = vmatpush1.msra.mxu0 0.0
    %1716 = vmatprep.subr.mxu0 0.0
    %1717 = vmatpush1.msra.mxu0 0.0
    %1718 = vmatprep.subr.mxu0 0.0
    %1719 = vmatpush1.msra.mxu0 0.0
    %1720 = vmatprep.subr.mxu0 0.0
    %1721 = vmatpush1.msra.mxu0 0.0
    %1722 = vmatprep.subr.mxu0 0.0
    %1723 = vmatpush1.msra.mxu0 0.0
    %1724 = vmatprep.subr.mxu0 0.0
    %1725 = vmatpush1.msra.mxu0 0.0
    %1726 = vmatprep.subr.mxu0 0.0
    %1727 = vmatpush1.msra.mxu0 0.0
    %1728 = vmatprep.subr.mxu0 0.0
    %1729 = vmatpush1.msra.mxu0 0.0
    %1730 = vmatprep.subr.mxu0 0.0
    %1731 = vmatpush1.msra.mxu0 0.0
    %1732 = vmatprep.subr.mxu0 0.0
    %1733 = vmatpush1.msra.mxu0 0.0
    %1734 = vmatprep.subr.mxu0 0.0
    %1735 = vmatpush1.msra.mxu0 0.0
    %1736 = vmatprep.subr.mxu0 0.0
    %1737 = vmatpush1.msra.mxu0 0.0
    %1738 = vmatprep.subr.mxu0 0.0
    %1739 = vmatpush1.msra.mxu0 0.0
    %1740 = vmatprep.subr.mxu0 0.0
    %1741 = vmatpush1.msra.mxu0 0.0
    %1742 = vmatprep.subr.mxu0 0.0
    %1743 = vmatpush1.msra.mxu0 0.0
    %1744 = vmatprep.subr.mxu0 0.0
    %1745 = vmatpush1.msra.mxu0 0.0
    %1746 = vmatprep.subr.mxu0 0.0
    %1747 = vmatpush1.msra.mxu0 0.0
    %1748 = vmatprep.mubr.f32.mxu0 0.0
    %1749 = vmatmul.mubr.f32.gmra.mrb[0].mxu0 %v1682
    %v1750 = vpop.f32.mrb[0].mxu0
    %v1751 = vadd.f32 0.0, %v1750
    %v1752 = vpop.f32.mrb[0].mxu0
    %1753 = vdwg.mxu0
    %1754 = vrot.lane.b32.xlu0 %v1588, 120
    %v1755 = vpop.permute.xlu0 %1754
    %1756 = vrot.lane.b32.xlu0 %v1590, 120
    %v1757 = vpop.permute.xlu0 %1756
    %v1758 = vsel %vm226, %v1755, 0
    %v1760 = vsel %vm226, %v1757, 0
    %1762 = vmatprep.subr.mxu0 0.0
    %1763 = vmatpush1.xpose.msra.mxu0 %v1760
    %1764 = vmatprep.subr.mxu0 0.0
    %1765 = vmatpush1.xpose.msra.mxu0 0.0
    %1766 = vmatprep.subr.mxu0 0.0
    %1767 = vmatpush1.xpose.msra.mxu0 0.0
    %1768 = vmatprep.subr.mxu0 0.0
    %1769 = vmatpush1.xpose.msra.mxu0 0.0
    %1770 = vmatprep.subr.mxu0 0.0
    %1771 = vmatpush1.xpose.msra.mxu0 0.0
    %1772 = vmatprep.subr.mxu0 0.0
    %1773 = vmatpush1.xpose.msra.mxu0 0.0
    %1774 = vmatprep.subr.mxu0 0.0
    %1775 = vmatpush1.xpose.msra.mxu0 0.0
    %1776 = vmatprep.subr.mxu0 0.0
    %1777 = vmatpush1.xpose.msra.mxu0 0.0
    %1778 = vmatprep.subr.mxu0 0.0
    %1779 = vmatpush1.xpose.msra.mxu0 0.0
    %1780 = vmatprep.subr.mxu0 0.0
    %1781 = vmatpush1.xpose.msra.mxu0 0.0
    %1782 = vmatprep.subr.mxu0 0.0
    %1783 = vmatpush1.xpose.msra.mxu0 0.0
    %1784 = vmatprep.subr.mxu0 0.0
    %1785 = vmatpush1.xpose.msra.mxu0 0.0
    %1786 = vmatprep.subr.mxu0 0.0
    %1787 = vmatpush1.xpose.msra.mxu0 0.0
    %1788 = vmatprep.subr.mxu0 0.0
    %1789 = vmatpush1.xpose.msra.mxu0 0.0
    %1790 = vmatprep.subr.mxu0 0.0
    %1791 = vmatpush1.xpose.msra.mxu0 0.0
    %1792 = vmatprep.subr.mxu0 0.0
    %1793 = vmatpush1.xpose.msra.mxu0 0.0
    %1794 = vmatprep.subr.mxu0 0.0
    %1795 = vmatpush1.xpose.msra.mxu0 0.0
    %1796 = vmatprep.subr.mxu0 0.0
    %1797 = vmatpush1.xpose.msra.mxu0 0.0
    %1798 = vmatprep.subr.mxu0 0.0
    %1799 = vmatpush1.xpose.msra.mxu0 0.0
    %1800 = vmatprep.subr.mxu0 0.0
    %1801 = vmatpush1.xpose.msra.mxu0 0.0
    %1802 = vmatprep.subr.mxu0 0.0
    %1803 = vmatpush1.xpose.msra.mxu0 0.0
    %1804 = vmatprep.subr.mxu0 0.0
    %1805 = vmatpush1.xpose.msra.mxu0 0.0
    %1806 = vmatprep.subr.mxu0 0.0
    %1807 = vmatpush1.xpose.msra.mxu0 0.0
    %1808 = vmatprep.subr.mxu0 0.0
    %1809 = vmatpush1.xpose.msra.mxu0 0.0
    %1810 = vmatprep.subr.mxu0 0.0
    %1811 = vmatpush1.xpose.msra.mxu0 0.0
    %1812 = vmatprep.subr.mxu0 0.0
    %1813 = vmatpush1.xpose.msra.mxu0 0.0
    %1814 = vmatprep.subr.mxu0 0.0
    %1815 = vmatpush1.xpose.msra.mxu0 0.0
    %1816 = vmatprep.subr.mxu0 0.0
    %1817 = vmatpush1.xpose.msra.mxu0 0.0
    %1818 = vmatprep.subr.mxu0 0.0
    %1819 = vmatpush1.xpose.msra.mxu0 0.0
    %1820 = vmatprep.subr.mxu0 0.0
    %1821 = vmatpush1.xpose.msra.mxu0 0.0
    %1822 = vmatprep.subr.mxu0 0.0
    %1823 = vmatpush1.xpose.msra.mxu0 0.0
    %1824 = vmatprep.subr.mxu0 0.0
    %1825 = vmatpush1.xpose.msra.mxu0 0.0
    %1826 = vmatprep.mubr.f32.mxu0 0.0
    %1827 = vmatmul.mubr.f32.gmra.mrb[0].mxu0 %v1758
    %v1828 = vpop.f32.mrb[0].mxu0
    %v1829 = vadd.f32 0.0, %v1828
    %v1830 = vpop.f32.mrb[0].mxu0
    %1831 = vdwg.mxu0
    %v1832 = vsel %vm226, %v1829, -inf
    %1833 = vmax.xlane.f32.xlu0 %v1832
    %v1834 = vpop.xlane.xlu0 %1833
    %v1835 = vsub.f32 %v1829, %v1834
    %v1836 = vmul.f32 %v1835, 1.442695
    %v1837 = vpow.pop %v1836
    %v1838 = vsel %vm226, %v1837, 0.0
    %1839 = vadd.xlane.f32.xlu0 %v1838
    %v1840 = vpop.xlane.xlu0 %1839
    %v1841 = vrcp.pop %v1840
    %v1842 = vmul.f32 %v1837, %v1841
    %1843 = vrot.lane.b32.xlu0 %v1590, 88
    %v1844 = vpop.permute.xlu0 %1843
    %v1847 = vsel %vm226, %v1842, 0
    %1849 = vmatprep.subr.mxu0 0.0
    %1850 = vmatpush1.msra.mxu0 %v1844
    %1851 = vmatprep.subr.mxu0 0.0
    %1852 = vmatpush1.msra.mxu0 0.0
    %1853 = vmatprep.subr.mxu0 0.0
    %1854 = vmatpush1.msra.mxu0 0.0
    %1855 = vmatprep.subr.mxu0 0.0
    %1856 = vmatpush1.msra.mxu0 0.0
    %1857 = vmatprep.subr.mxu0 0.0
    %1858 = vmatpush1.msra.mxu0 0.0
    %1859 = vmatprep.subr.mxu0 0.0
    %1860 = vmatpush1.msra.mxu0 0.0
    %1861 = vmatprep.subr.mxu0 0.0
    %1862 = vmatpush1.msra.mxu0 0.0
    %1863 = vmatprep.subr.mxu0 0.0
    %1864 = vmatpush1.msra.mxu0 0.0
    %1865 = vmatprep.subr.mxu0 0.0
    %1866 = vmatpush1.msra.mxu0 0.0
    %1867 = vmatprep.subr.mxu0 0.0
    %1868 = vmatpush1.msra.mxu0 0.0
    %1869 = vmatprep.subr.mxu0 0.0
    %1870 = vmatpush1.msra.mxu0 0.0
    %1871 = vmatprep.subr.mxu0 0.0
    %1872 = vmatpush1.msra.mxu0 0.0
    %1873 = vmatprep.subr.mxu0 0.0
    %1874 = vmatpush1.msra.mxu0 0.0
    %1875 = vmatprep.subr.mxu0 0.0
    %1876 = vmatpush1.msra.mxu0 0.0
    %1877 = vmatprep.subr.mxu0 0.0
    %1878 = vmatpush1.msra.mxu0 0.0
    %1879 = vmatprep.subr.mxu0 0.0
    %1880 = vmatpush1.msra.mxu0 0.0
    %1881 = vmatprep.subr.mxu0 0.0
    %1882 = vmatpush1.msra.mxu0 0.0
    %1883 = vmatprep.subr.mxu0 0.0
    %1884 = vmatpush1.msra.mxu0 0.0
    %1885 = vmatprep.subr.mxu0 0.0
    %1886 = vmatpush1.msra.mxu0 0.0
    %1887 = vmatprep.subr.mxu0 0.0
    %1888 = vmatpush1.msra.mxu0 0.0
    %1889 = vmatprep.subr.mxu0 0.0
    %1890 = vmatpush1.msra.mxu0 0.0
    %1891 = vmatprep.subr.mxu0 0.0
    %1892 = vmatpush1.msra.mxu0 0.0
    %1893 = vmatprep.subr.mxu0 0.0
    %1894 = vmatpush1.msra.mxu0 0.0
    %1895 = vmatprep.subr.mxu0 0.0
    %1896 = vmatpush1.msra.mxu0 0.0
    %1897 = vmatprep.subr.mxu0 0.0
    %1898 = vmatpush1.msra.mxu0 0.0
    %1899 = vmatprep.subr.mxu0 0.0
    %1900 = vmatpush1.msra.mxu0 0.0
    %1901 = vmatprep.subr.mxu0 0.0
    %1902 = vmatpush1.msra.mxu0 0.0
    %1903 = vmatprep.subr.mxu0 0.0
    %1904 = vmatpush1.msra.mxu0 0.0
    %1905 = vmatprep.subr.mxu0 0.0
    %1906 = vmatpush1.msra.mxu0 0.0
    %1907 = vmatprep.subr.mxu0 0.0
    %1908 = vmatpush1.msra.mxu0 0.0
    %1909 = vmatprep.subr.mxu0 0.0
    %1910 = vmatpush1.msra.mxu0 0.0
    %1911 = vmatprep.subr.mxu0 0.0
    %1912 = vmatpush1.msra.mxu0 0.0
    %1913 = vmatprep.mubr.f32.mxu0 0.0
    %1914 = vmatmul.mubr.f32.gmra.mrb[0].mxu0 %v1847
    %v1915 = vpop.f32.mrb[0].mxu0
    %v1916 = vadd.f32 0.0, %v1915
    %v1917 = vpop.f32.mrb[0].mxu0
    %1918 = vdwg.mxu0
    %1919 = vrot.lane.b32.xlu0 %v1588, 112
    %v1920 = vpop.permute.xlu0 %1919
    %1921 = vrot.lane.b32.xlu0 %v1590, 112
    %v1922 = vpop.permute.xlu0 %1921
    %v1923 = vsel %vm226, %v1920, 0
    %v1925 = vsel %vm226, %v1922, 0
    %1927 = vmatprep.subr.mxu0 0.0
    %1928 = vmatpush1.xpose.msra.mxu0 %v1925
    %1929 = vmatprep.subr.mxu0 0.0
    %1930 = vmatpush1.xpose.msra.mxu0 0.0
    %1931 = vmatprep.subr.mxu0 0.0
    %1932 = vmatpush1.xpose.msra.mxu0 0.0
    %1933 = vmatprep.subr.mxu0 0.0
    %1934 = vmatpush1.xpose.msra.mxu0 0.0
    %1935 = vmatprep.subr.mxu0 0.0
    %1936 = vmatpush1.xpose.msra.mxu0 0.0
    %1937 = vmatprep.subr.mxu0 0.0
    %1938 = vmatpush1.xpose.msra.mxu0 0.0
    %1939 = vmatprep.subr.mxu0 0.0
    %1940 = vmatpush1.xpose.msra.mxu0 0.0
    %1941 = vmatprep.subr.mxu0 0.0
    %1942 = vmatpush1.xpose.msra.mxu0 0.0
    %1943 = vmatprep.subr.mxu0 0.0
    %1944 = vmatpush1.xpose.msra.mxu0 0.0
    %1945 = vmatprep.subr.mxu0 0.0
    %1946 = vmatpush1.xpose.msra.mxu0 0.0
    %1947 = vmatprep.subr.mxu0 0.0
    %1948 = vmatpush1.xpose.msra.mxu0 0.0
    %1949 = vmatprep.subr.mxu0 0.0
    %1950 = vmatpush1.xpose.msra.mxu0 0.0
    %1951 = vmatprep.subr.mxu0 0.0
    %1952 = vmatpush1.xpose.msra.mxu0 0.0
    %1953 = vmatprep.subr.mxu0 0.0
    %1954 = vmatpush1.xpose.msra.mxu0 0.0
    %1955 = vmatprep.subr.mxu0 0.0
    %1956 = vmatpush1.xpose.msra.mxu0 0.0
    %1957 = vmatprep.subr.mxu0 0.0
    %1958 = vmatpush1.xpose.msra.mxu0 0.0
    %1959 = vmatprep.subr.mxu0 0.0
    %1960 = vmatpush1.xpose.msra.mxu0 0.0
    %1961 = vmatprep.subr.mxu0 0.0
    %1962 = vmatpush1.xpose.msra.mxu0 0.0
    %1963 = vmatprep.subr.mxu0 0.0
    %1964 = vmatpush1.xpose.msra.mxu0 0.0
    %1965 = vmatprep.subr.mxu0 0.0
    %1966 = vmatpush1.xpose.msra.mxu0 0.0
    %1967 = vmatprep.subr.mxu0 0.0
    %1968 = vmatpush1.xpose.msra.mxu0 0.0
    %1969 = vmatprep.subr.mxu0 0.0
    %1970 = vmatpush1.xpose.msra.mxu0 0.0
    %1971 = vmatprep.subr.mxu0 0.0
    %1972 = vmatpush1.xpose.msra.mxu0 0.0
    %1973 = vmatprep.subr.mxu0 0.0
    %1974 = vmatpush1.xpose.msra.mxu0 0.0
    %1975 = vmatprep.subr.mxu0 0.0
    %1976 = vmatpush1.xpose.msra.mxu0 0.0
    %1977 = vmatprep.subr.mxu0 0.0
    %1978 = vmatpush1.xpose.msra.mxu0 0.0
    %1979 = vmatprep.subr.mxu0 0.0
    %1980 = vmatpush1.xpose.msra.mxu0 0.0
    %1981 = vmatprep.subr.mxu0 0.0
    %1982 = vmatpush1.xpose.msra.mxu0 0.0
    %1983 = vmatprep.subr.mxu0 0.0
    %1984 = vmatpush1.xpose.msra.mxu0 0.0
    %1985 = vmatprep.subr.mxu0 0.0
    %1986 = vmatpush1.xpose.msra.mxu0 0.0
    %1987 = vmatprep.subr.mxu0 0.0
    %1988 = vmatpush1.xpose.msra.mxu0 0.0
    %1989 = vmatprep.subr.mxu0 0.0
    %1990 = vmatpush1.xpose.msra.mxu0 0.0
    %1991 = vmatprep.mubr.f32.mxu0 0.0
    %1992 = vmatmul.mubr.f32.gmra.mrb[0].mxu0 %v1923
    %v1993 = vpop.f32.mrb[0].mxu0
    %v1994 = vadd.f32 0.0, %v1993
    %v1995 = vpop.f32.mrb[0].mxu0
    %1996 = vdwg.mxu0
    %v1997 = vsel %vm226, %v1994, -inf
    %1998 = vmax.xlane.f32.xlu0 %v1997
    %v1999 = vpop.xlane.xlu0 %1998
    %v2000 = vsub.f32 %v1994, %v1999
    %v2001 = vmul.f32 %v2000, 1.442695
    %v2002 = vpow.pop %v2001
    %v2003 = vsel %vm226, %v2002, 0.0
    %2004 = vadd.xlane.f32.xlu0 %v2003
    %v2005 = vpop.xlane.xlu0 %2004
    %v2006 = vrcp.pop %v2005
    %v2007 = vmul.f32 %v2002, %v2006
    %2008 = vrot.lane.b32.xlu0 %v1590, 80
    %v2009 = vpop.permute.xlu0 %2008
    %v2012 = vsel %vm226, %v2007, 0
    %2014 = vmatprep.subr.mxu0 0.0
    %2015 = vmatpush1.msra.mxu0 %v2009
    %2016 = vmatprep.subr.mxu0 0.0
    %2017 = vmatpush1.msra.mxu0 0.0
    %2018 = vmatprep.subr.mxu0 0.0
    %2019 = vmatpush1.msra.mxu0 0.0
    %2020 = vmatprep.subr.mxu0 0.0
    %2021 = vmatpush1.msra.mxu0 0.0
    %2022 = vmatprep.subr.mxu0 0.0
    %2023 = vmatpush1.msra.mxu0 0.0
    %2024 = vmatprep.subr.mxu0 0.0
    %2025 = vmatpush1.msra.mxu0 0.0
    %2026 = vmatprep.subr.mxu0 0.0
    %2027 = vmatpush1.msra.mxu0 0.0
    %2028 = vmatprep.subr.mxu0 0.0
    %2029 = vmatpush1.msra.mxu0 0.0
    %2030 = vmatprep.subr.mxu0 0.0
    %2031 = vmatpush1.msra.mxu0 0.0
    %2032 = vmatprep.subr.mxu0 0.0
    %2033 = vmatpush1.msra.mxu0 0.0
    %2034 = vmatprep.subr.mxu0 0.0
    %2035 = vmatpush1.msra.mxu0 0.0
    %2036 = vmatprep.subr.mxu0 0.0
    %2037 = vmatpush1.msra.mxu0 0.0
    %2038 = vmatprep.subr.mxu0 0.0
    %2039 = vmatpush1.msra.mxu0 0.0
    %2040 = vmatprep.subr.mxu0 0.0
    %2041 = vmatpush1.msra.mxu0 0.0
    %2042 = vmatprep.subr.mxu0 0.0
    %2043 = vmatpush1.msra.mxu0 0.0
    %2044 = vmatprep.subr.mxu0 0.0
    %2045 = vmatpush1.msra.mxu0 0.0
    %2046 = vmatprep.subr.mxu0 0.0
    %2047 = vmatpush1.msra.mxu0 0.0
    %2048 = vmatprep.subr.mxu0 0.0
    %2049 = vmatpush1.msra.mxu0 0.0
    %2050 = vmatprep.subr.mxu0 0.0
    %2051 = vmatpush1.msra.mxu0 0.0
    %2052 = vmatprep.subr.mxu0 0.0
    %2053 = vmatpush1.msra.mxu0 0.0
    %2054 = vmatprep.subr.mxu0 0.0
    %2055 = vmatpush1.msra.mxu0 0.0
    %2056 = vmatprep.subr.mxu0 0.0
    %2057 = vmatpush1.msra.mxu0 0.0
    %2058 = vmatprep.subr.mxu0 0.0
    %2059 = vmatpush1.msra.mxu0 0.0
    %2060 = vmatprep.subr.mxu0 0.0
    %2061 = vmatpush1.msra.mxu0 0.0
    %2062 = vmatprep.subr.mxu0 0.0
    %2063 = vmatpush1.msra.mxu0 0.0
    %2064 = vmatprep.subr.mxu0 0.0
    %2065 = vmatpush1.msra.mxu0 0.0
    %2066 = vmatprep.subr.mxu0 0.0
    %2067 = vmatpush1.msra.mxu0 0.0
    %2068 = vmatprep.subr.mxu0 0.0
    %2069 = vmatpush1.msra.mxu0 0.0
    %2070 = vmatprep.subr.mxu0 0.0
    %2071 = vmatpush1.msra.mxu0 0.0
    %2072 = vmatprep.subr.mxu0 0.0
    %2073 = vmatpush1.msra.mxu0 0.0
    %2074 = vmatprep.subr.mxu0 0.0
    %2075 = vmatpush1.msra.mxu0 0.0
    %2076 = vmatprep.subr.mxu0 0.0
    %2077 = vmatpush1.msra.mxu0 0.0
    %2078 = vmatprep.mubr.f32.mxu0 0.0
    %2079 = vmatmul.mubr.f32.gmra.mrb[0].mxu0 %v2012
    %v2080 = vpop.f32.mrb[0].mxu0
    %v2081 = vadd.f32 0.0, %v2080
    %v2082 = vpop.f32.mrb[0].mxu0
    %2083 = vdwg.mxu0
    %2084 = vrot.lane.b32.xlu0 %v1588, 104
    %v2085 = vpop.permute.xlu0 %2084
    %2086 = vrot.lane.b32.xlu0 %v1590, 104
    %v2087 = vpop.permute.xlu0 %2086
    %v2088 = vsel %vm226, %v2085, 0
    %v2090 = vsel %vm226, %v2087, 0
    %2092 = vmatprep.subr.mxu0 0.0
    %2093 = vmatpush1.xpose.msra.mxu0 %v2090
    %2094 = vmatprep.subr.mxu0 0.0
    %2095 = vmatpush1.xpose.msra.mxu0 0.0
    %2096 = vmatprep.subr.mxu0 0.0
    %2097 = vmatpush1.xpose.msra.mxu0 0.0
    %2098 = vmatprep.subr.mxu0 0.0
    %2099 = vmatpush1.xpose.msra.mxu0 0.0
    %2100 = vmatprep.subr.mxu0 0.0
    %2101 = vmatpush1.xpose.msra.mxu0 0.0
    %2102 = vmatprep.subr.mxu0 0.0
    %2103 = vmatpush1.xpose.msra.mxu0 0.0
    %2104 = vmatprep.subr.mxu0 0.0
    %2105 = vmatpush1.xpose.msra.mxu0 0.0
    %2106 = vmatprep.subr.mxu0 0.0
    %2107 = vmatpush1.xpose.msra.mxu0 0.0
    %2108 = vmatprep.subr.mxu0 0.0
    %2109 = vmatpush1.xpose.msra.mxu0 0.0
    %2110 = vmatprep.subr.mxu0 0.0
    %2111 = vmatpush1.xpose.msra.mxu0 0.0
    %2112 = vmatprep.subr.mxu0 0.0
    %2113 = vmatpush1.xpose.msra.mxu0 0.0
    %2114 = vmatprep.subr.mxu0 0.0
    %2115 = vmatpush1.xpose.msra.mxu0 0.0
    %2116 = vmatprep.subr.mxu0 0.0
    %2117 = vmatpush1.xpose.msra.mxu0 0.0
    %2118 = vmatprep.subr.mxu0 0.0
    %2119 = vmatpush1.xpose.msra.mxu0 0.0
    %2120 = vmatprep.subr.mxu0 0.0
    %2121 = vmatpush1.xpose.msra.mxu0 0.0
    %2122 = vmatprep.subr.mxu0 0.0
    %2123 = vmatpush1.xpose.msra.mxu0 0.0
    %2124 = vmatprep.subr.mxu0 0.0
    %2125 = vmatpush1.xpose.msra.mxu0 0.0
    %2126 = vmatprep.subr.mxu0 0.0
    %2127 = vmatpush1.xpose.msra.mxu0 0.0
    %2128 = vmatprep.subr.mxu0 0.0
    %2129 = vmatpush1.xpose.msra.mxu0 0.0
    %2130 = vmatprep.subr.mxu0 0.0
    %2131 = vmatpush1.xpose.msra.mxu0 0.0
    %2132 = vmatprep.subr.mxu0 0.0
    %2133 = vmatpush1.xpose.msra.mxu0 0.0
    %2134 = vmatprep.subr.mxu0 0.0
    %2135 = vmatpush1.xpose.msra.mxu0 0.0
    %2136 = vmatprep.subr.mxu0 0.0
    %2137 = vmatpush1.xpose.msra.mxu0 0.0
    %2138 = vmatprep.subr.mxu0 0.0
    %2139 = vmatpush1.xpose.msra.mxu0 0.0
    %2140 = vmatprep.subr.mxu0 0.0
    %2141 = vmatpush1.xpose.msra.mxu0 0.0
    %2142 = vmatprep.subr.mxu0 0.0
    %2143 = vmatpush1.xpose.msra.mxu0 0.0
    %2144 = vmatprep.subr.mxu0 0.0
    %2145 = vmatpush1.xpose.msra.mxu0 0.0
    %2146 = vmatprep.subr.mxu0 0.0
    %2147 = vmatpush1.xpose.msra.mxu0 0.0
    %2148 = vmatprep.subr.mxu0 0.0
    %2149 = vmatpush1.xpose.msra.mxu0 0.0
    %2150 = vmatprep.subr.mxu0 0.0
    %2151 = vmatpush1.xpose.msra.mxu0 0.0
    %2152 = vmatprep.subr.mxu0 0.0
    %2153 = vmatpush1.xpose.msra.mxu0 0.0
    %2154 = vmatprep.subr.mxu0 0.0
    %2155 = vmatpush1.xpose.msra.mxu0 0.0
    %2156 = vmatprep.mubr.f32.mxu0 0.0
    %2157 = vmatmul.mubr.f32.gmra.mrb[0].mxu0 %v2088
    %v2158 = vpop.f32.mrb[0].mxu0
    %v2159 = vadd.f32 0.0, %v2158
    %v2160 = vpop.f32.mrb[0].mxu0
    %2161 = vdwg.mxu0
    %v2162 = vsel %vm226, %v2159, -inf
    %2163 = vmax.xlane.f32.xlu0 %v2162
    %v2164 = vpop.xlane.xlu0 %2163
    %v2165 = vsub.f32 %v2159, %v2164
    %v2166 = vmul.f32 %v2165, 1.442695
    %v2167 = vpow.pop %v2166
    %v2168 = vsel %vm226, %v2167, 0.0
    %2169 = vadd.xlane.f32.xlu0 %v2168
    %v2170 = vpop.xlane.xlu0 %2169
    %v2171 = vrcp.pop %v2170
    %v2172 = vmul.f32 %v2167, %v2171
    %2173 = vrot.lane.b32.xlu0 %v1590, 72
    %v2174 = vpop.permute.xlu0 %2173
    %v2177 = vsel %vm226, %v2172, 0
    %2179 = vmatprep.subr.mxu0 0.0
    %2180 = vmatpush1.msra.mxu0 %v2174
    %2181 = vmatprep.subr.mxu0 0.0
    %2182 = vmatpush1.msra.mxu0 0.0
    %2183 = vmatprep.subr.mxu0 0.0
    %2184 = vmatpush1.msra.mxu0 0.0
    %2185 = vmatprep.subr.mxu0 0.0
    %2186 = vmatpush1.msra.mxu0 0.0
    %2187 = vmatprep.subr.mxu0 0.0
    %2188 = vmatpush1.msra.mxu0 0.0
    %2189 = vmatprep.subr.mxu0 0.0
    %2190 = vmatpush1.msra.mxu0 0.0
    %2191 = vmatprep.subr.mxu0 0.0
    %2192 = vmatpush1.msra.mxu0 0.0
    %2193 = vmatprep.subr.mxu0 0.0
    %2194 = vmatpush1.msra.mxu0 0.0
    %2195 = vmatprep.subr.mxu0 0.0
    %2196 = vmatpush1.msra.mxu0 0.0
    %2197 = vmatprep.subr.mxu0 0.0
    %2198 = vmatpush1.msra.mxu0 0.0
    %2199 = vmatprep.subr.mxu0 0.0
    %2200 = vmatpush1.msra.mxu0 0.0
    %2201 = vmatprep.subr.mxu0 0.0
    %2202 = vmatpush1.msra.mxu0 0.0
    %2203 = vmatprep.subr.mxu0 0.0
    %2204 = vmatpush1.msra.mxu0 0.0
    %2205 = vmatprep.subr.mxu0 0.0
    %2206 = vmatpush1.msra.mxu0 0.0
    %2207 = vmatprep.subr.mxu0 0.0
    %2208 = vmatpush1.msra.mxu0 0.0
    %2209 = vmatprep.subr.mxu0 0.0
    %2210 = vmatpush1.msra.mxu0 0.0
    %2211 = vmatprep.subr.mxu0 0.0
    %2212 = vmatpush1.msra.mxu0 0.0
    %2213 = vmatprep.subr.mxu0 0.0
    %2214 = vmatpush1.msra.mxu0 0.0
    %2215 = vmatprep.subr.mxu0 0.0
    %2216 = vmatpush1.msra.mxu0 0.0
    %2217 = vmatprep.subr.mxu0 0.0
    %2218 = vmatpush1.msra.mxu0 0.0
    %2219 = vmatprep.subr.mxu0 0.0
    %2220 = vmatpush1.msra.mxu0 0.0
    %2221 = vmatprep.subr.mxu0 0.0
    %2222 = vmatpush1.msra.mxu0 0.0
    %2223 = vmatprep.subr.mxu0 0.0
    %2224 = vmatpush1.msra.mxu0 0.0
    %2225 = vmatprep.subr.mxu0 0.0
    %2226 = vmatpush1.msra.mxu0 0.0
    %2227 = vmatprep.subr.mxu0 0.0
    %2228 = vmatpush1.msra.mxu0 0.0
    %2229 = vmatprep.subr.mxu0 0.0
    %2230 = vmatpush1.msra.mxu0 0.0
    %2231 = vmatprep.subr.mxu0 0.0
    %2232 = vmatpush1.msra.mxu0 0.0
    %2233 = vmatprep.subr.mxu0 0.0
    %2234 = vmatpush1.msra.mxu0 0.0
    %2235 = vmatprep.subr.mxu0 0.0
    %2236 = vmatpush1.msra.mxu0 0.0
    %2237 = vmatprep.subr.mxu0 0.0
    %2238 = vmatpush1.msra.mxu0 0.0
    %2239 = vmatprep.subr.mxu0 0.0
    %2240 = vmatpush1.msra.mxu0 0.0
    %2241 = vmatprep.subr.mxu0 0.0
    %2242 = vmatpush1.msra.mxu0 0.0
    %2243 = vmatprep.mubr.f32.mxu0 0.0
    %2244 = vmatmul.mubr.f32.gmra.mrb[0].mxu0 %v2177
    %v2245 = vpop.f32.mrb[0].mxu0
    %v2246 = vadd.f32 0.0, %v2245
    %v2247 = vpop.f32.mrb[0].mxu0
    %2248 = vdwg.mxu0
    %2249 = vrot.lane.b32.xlu0 %v1590, 64
    %v2250 = vpop.permute.xlu0 %2249
    %2251 = vrot.lane.b32.xlu0 %v1588, 96
    %v2252 = vpop.permute.xlu0 %2251
    %v2253 = vsel %vm226, %v2250, 0
    %v2255 = vsel %vm226, %v2252, 0
    %2257 = vmatprep.subr.mxu0 0.0
    %2258 = vmatpush1.xpose.msra.mxu0 %v2255
    %2259 = vmatprep.subr.mxu0 0.0
    %2260 = vmatpush1.xpose.msra.mxu0 0.0
    %2261 = vmatprep.subr.mxu0 0.0
    %2262 = vmatpush1.xpose.msra.mxu0 0.0
    %2263 = vmatprep.subr.mxu0 0.0
    %2264 = vmatpush1.xpose.msra.mxu0 0.0
    %2265 = vmatprep.subr.mxu0 0.0
    %2266 = vmatpush1.xpose.msra.mxu0 0.0
    %2267 = vmatprep.subr.mxu0 0.0
    %2268 = vmatpush1.xpose.msra.mxu0 0.0
    %2269 = vmatprep.subr.mxu0 0.0
    %2270 = vmatpush1.xpose.msra.mxu0 0.0
    %2271 = vmatprep.subr.mxu0 0.0
    %2272 = vmatpush1.xpose.msra.mxu0 0.0
    %2273 = vmatprep.subr.mxu0 0.0
    %2274 = vmatpush1.xpose.msra.mxu0 0.0
    %2275 = vmatprep.subr.mxu0 0.0
    %2276 = vmatpush1.xpose.msra.mxu0 0.0
    %2277 = vmatprep.subr.mxu0 0.0
    %2278 = vmatpush1.xpose.msra.mxu0 0.0
    %2279 = vmatprep.subr.mxu0 0.0
    %2280 = vmatpush1.xpose.msra.mxu0 0.0
    %2281 = vmatprep.subr.mxu0 0.0
    %2282 = vmatpush1.xpose.msra.mxu0 0.0
    %2283 = vmatprep.subr.mxu0 0.0
    %2284 = vmatpush1.xpose.msra.mxu0 0.0
    %2285 = vmatprep.subr.mxu0 0.0
    %2286 = vmatpush1.xpose.msra.mxu0 0.0
    %2287 = vmatprep.subr.mxu0 0.0
    %2288 = vmatpush1.xpose.msra.mxu0 0.0
    %2289 = vmatprep.subr.mxu0 0.0
    %2290 = vmatpush1.xpose.msra.mxu0 0.0
    %2291 = vmatprep.subr.mxu0 0.0
    %2292 = vmatpush1.xpose.msra.mxu0 0.0
    %2293 = vmatprep.subr.mxu0 0.0
    %2294 = vmatpush1.xpose.msra.mxu0 0.0
    %2295 = vmatprep.subr.mxu0 0.0
    %2296 = vmatpush1.xpose.msra.mxu0 0.0
    %2297 = vmatprep.subr.mxu0 0.0
    %2298 = vmatpush1.xpose.msra.mxu0 0.0
    %2299 = vmatprep.subr.mxu0 0.0
    %2300 = vmatpush1.xpose.msra.mxu0 0.0
    %2301 = vmatprep.subr.mxu0 0.0
    %2302 = vmatpush1.xpose.msra.mxu0 0.0
    %2303 = vmatprep.subr.mxu0 0.0
    %2304 = vmatpush1.xpose.msra.mxu0 0.0
    %2305 = vmatprep.subr.mxu0 0.0
    %2306 = vmatpush1.xpose.msra.mxu0 0.0
    %2307 = vmatprep.subr.mxu0 0.0
    %2308 = vmatpush1.xpose.msra.mxu0 0.0
    %2309 = vmatprep.subr.mxu0 0.0
    %2310 = vmatpush1.xpose.msra.mxu0 0.0
    %2311 = vmatprep.subr.mxu0 0.0
    %2312 = vmatpush1.xpose.msra.mxu0 0.0
    %2313 = vmatprep.subr.mxu0 0.0
    %2314 = vmatpush1.xpose.msra.mxu0 0.0
    %2315 = vmatprep.subr.mxu0 0.0
    %2316 = vmatpush1.xpose.msra.mxu0 0.0
    %2317 = vmatprep.subr.mxu0 0.0
    %2318 = vmatpush1.xpose.msra.mxu0 0.0
    %2319 = vmatprep.subr.mxu0 0.0
    %2320 = vmatpush1.xpose.msra.mxu0 0.0
    %2321 = vmatprep.mubr.f32.mxu0 0.0
    %2322 = vmatmul.mubr.f32.gmra.mrb[0].mxu0 %v2253
    %v2323 = vpop.f32.mrb[0].mxu0
    %v2324 = vadd.f32 0.0, %v2323
    %v2325 = vpop.f32.mrb[0].mxu0
    %2326 = vdwg.mxu0
    %v2327 = vsel %vm226, %v2324, -inf
    %2328 = vmax.xlane.f32.xlu0 %v2327
    %v2329 = vpop.xlane.xlu0 %2328
    %v2330 = vsub.f32 %v2324, %v2329
    %v2331 = vmul.f32 %v2330, 1.442695
    %v2332 = vpow.pop %v2331
    %v2333 = vsel %vm226, %v2332, 0.0
    %2334 = vadd.xlane.f32.xlu0 %v2333
    %v2335 = vpop.xlane.xlu0 %2334
    %v2336 = vrcp.pop %v2335
    %v2337 = vmul.f32 %v2332, %v2336
    %2338 = vrot.lane.b32.xlu0 %v1588, 64
    %v2339 = vpop.permute.xlu0 %2338
    %v2342 = vsel %vm226, %v2337, 0
    %2344 = vmatprep.subr.mxu0 0.0
    %2345 = vmatpush1.msra.mxu0 %v2339
    %2346 = vmatprep.subr.mxu0 0.0
    %2347 = vmatpush1.msra.mxu0 0.0
    %2348 = vmatprep.subr.mxu0 0.0
    %2349 = vmatpush1.msra.mxu0 0.0
    %2350 = vmatprep.subr.mxu0 0.0
    %2351 = vmatpush1.msra.mxu0 0.0
    %2352 = vmatprep.subr.mxu0 0.0
    %2353 = vmatpush1.msra.mxu0 0.0
    %2354 = vmatprep.subr.mxu0 0.0
    %2355 = vmatpush1.msra.mxu0 0.0
    %2356 = vmatprep.subr.mxu0 0.0
    %2357 = vmatpush1.msra.mxu0 0.0
    %2358 = vmatprep.subr.mxu0 0.0
    %2359 = vmatpush1.msra.mxu0 0.0
    %2360 = vmatprep.subr.mxu0 0.0
    %2361 = vmatpush1.msra.mxu0 0.0
    %2362 = vmatprep.subr.mxu0 0.0
    %2363 = vmatpush1.msra.mxu0 0.0
    %2364 = vmatprep.subr.mxu0 0.0
    %2365 = vmatpush1.msra.mxu0 0.0
    %2366 = vmatprep.subr.mxu0 0.0
    %2367 = vmatpush1.msra.mxu0 0.0
    %2368 = vmatprep.subr.mxu0 0.0
    %2369 = vmatpush1.msra.mxu0 0.0
    %2370 = vmatprep.subr.mxu0 0.0
    %2371 = vmatpush1.msra.mxu0 0.0
    %2372 = vmatprep.subr.mxu0 0.0
    %2373 = vmatpush1.msra.mxu0 0.0
    %2374 = vmatprep.subr.mxu0 0.0
    %2375 = vmatpush1.msra.mxu0 0.0
    %2376 = vmatprep.subr.mxu0 0.0
    %2377 = vmatpush1.msra.mxu0 0.0
    %2378 = vmatprep.subr.mxu0 0.0
    %2379 = vmatpush1.msra.mxu0 0.0
    %2380 = vmatprep.subr.mxu0 0.0
    %2381 = vmatpush1.msra.mxu0 0.0
    %2382 = vmatprep.subr.mxu0 0.0
    %2383 = vmatpush1.msra.mxu0 0.0
    %2384 = vmatprep.subr.mxu0 0.0
    %2385 = vmatpush1.msra.mxu0 0.0
    %2386 = vmatprep.subr.mxu0 0.0
    %2387 = vmatpush1.msra.mxu0 0.0
    %2388 = vmatprep.subr.mxu0 0.0
    %2389 = vmatpush1.msra.mxu0 0.0
    %2390 = vmatprep.subr.mxu0 0.0
    %2391 = vmatpush1.msra.mxu0 0.0
    %2392 = vmatprep.subr.mxu0 0.0
    %2393 = vmatpush1.msra.mxu0 0.0
    %2394 = vmatprep.subr.mxu0 0.0
    %2395 = vmatpush1.msra.mxu0 0.0
    %2396 = vmatprep.subr.mxu0 0.0
    %2397 = vmatpush1.msra.mxu0 0.0
    %2398 = vmatprep.subr.mxu0 0.0
    %2399 = vmatpush1.msra.mxu0 0.0
    %2400 = vmatprep.subr.mxu0 0.0
    %2401 = vmatpush1.msra.mxu0 0.0
    %2402 = vmatprep.subr.mxu0 0.0
    %2403 = vmatpush1.msra.mxu0 0.0
    %2404 = vmatprep.subr.mxu0 0.0
    %2405 = vmatpush1.msra.mxu0 0.0
    %2406 = vmatprep.subr.mxu0 0.0
    %2407 = vmatpush1.msra.mxu0 0.0
    %2408 = vmatprep.mubr.f32.mxu0 0.0
    %2409 = vmatmul.mubr.f32.gmra.mrb[0].mxu0 %v2342
    %v2410 = vpop.f32.mrb[0].mxu0
    %v2411 = vadd.f32 0.0, %v2410
    %v2412 = vpop.f32.mrb[0].mxu0
    %2413 = vdwg.mxu0
    %2414 = vrot.lane.b32.xlu0 %v1590, 56
    %v2415 = vpop.permute.xlu0 %2414
    %2416 = vrot.lane.b32.xlu0 %v1588, 88
    %v2417 = vpop.permute.xlu0 %2416
    %v2418 = vsel %vm226, %v2415, 0
    %v2420 = vsel %vm226, %v2417, 0
    %2422 = vmatprep.subr.mxu0 0.0
    %2423 = vmatpush1.xpose.msra.mxu0 %v2420
    %2424 = vmatprep.subr.mxu0 0.0
    %2425 = vmatpush1.xpose.msra.mxu0 0.0
    %2426 = vmatprep.subr.mxu0 0.0
    %2427 = vmatpush1.xpose.msra.mxu0 0.0
    %2428 = vmatprep.subr.mxu0 0.0
    %2429 = vmatpush1.xpose.msra.mxu0 0.0
    %2430 = vmatprep.subr.mxu0 0.0
    %2431 = vmatpush1.xpose.msra.mxu0 0.0
    %2432 = vmatprep.subr.mxu0 0.0
    %2433 = vmatpush1.xpose.msra.mxu0 0.0
    %2434 = vmatprep.subr.mxu0 0.0
    %2435 = vmatpush1.xpose.msra.mxu0 0.0
    %2436 = vmatprep.subr.mxu0 0.0
    %2437 = vmatpush1.xpose.msra.mxu0 0.0
    %2438 = vmatprep.subr.mxu0 0.0
    %2439 = vmatpush1.xpose.msra.mxu0 0.0
    %2440 = vmatprep.subr.mxu0 0.0
    %2441 = vmatpush1.xpose.msra.mxu0 0.0
    %2442 = vmatprep.subr.mxu0 0.0
    %2443 = vmatpush1.xpose.msra.mxu0 0.0
    %2444 = vmatprep.subr.mxu0 0.0
    %2445 = vmatpush1.xpose.msra.mxu0 0.0
    %2446 = vmatprep.subr.mxu0 0.0
    %2447 = vmatpush1.xpose.msra.mxu0 0.0
    %2448 = vmatprep.subr.mxu0 0.0
    %2449 = vmatpush1.xpose.msra.mxu0 0.0
    %2450 = vmatprep.subr.mxu0 0.0
    %2451 = vmatpush1.xpose.msra.mxu0 0.0
    %2452 = vmatprep.subr.mxu0 0.0
    %2453 = vmatpush1.xpose.msra.mxu0 0.0
    %2454 = vmatprep.subr.mxu0 0.0
    %2455 = vmatpush1.xpose.msra.mxu0 0.0
    %2456 = vmatprep.subr.mxu0 0.0
    %2457 = vmatpush1.xpose.msra.mxu0 0.0
    %2458 = vmatprep.subr.mxu0 0.0
    %2459 = vmatpush1.xpose.msra.mxu0 0.0
    %2460 = vmatprep.subr.mxu0 0.0
    %2461 = vmatpush1.xpose.msra.mxu0 0.0
    %2462 = vmatprep.subr.mxu0 0.0
    %2463 = vmatpush1.xpose.msra.mxu0 0.0
    %2464 = vmatprep.subr.mxu0 0.0
    %2465 = vmatpush1.xpose.msra.mxu0 0.0
    %2466 = vmatprep.subr.mxu0 0.0
    %2467 = vmatpush1.xpose.msra.mxu0 0.0
    %2468 = vmatprep.subr.mxu0 0.0
    %2469 = vmatpush1.xpose.msra.mxu0 0.0
    %2470 = vmatprep.subr.mxu0 0.0
    %2471 = vmatpush1.xpose.msra.mxu0 0.0
    %2472 = vmatprep.subr.mxu0 0.0
    %2473 = vmatpush1.xpose.msra.mxu0 0.0
    %2474 = vmatprep.subr.mxu0 0.0
    %2475 = vmatpush1.xpose.msra.mxu0 0.0
    %2476 = vmatprep.subr.mxu0 0.0
    %2477 = vmatpush1.xpose.msra.mxu0 0.0
    %2478 = vmatprep.subr.mxu0 0.0
    %2479 = vmatpush1.xpose.msra.mxu0 0.0
    %2480 = vmatprep.subr.mxu0 0.0
    %2481 = vmatpush1.xpose.msra.mxu0 0.0
    %2482 = vmatprep.subr.mxu0 0.0
    %2483 = vmatpush1.xpose.msra.mxu0 0.0
    %2484 = vmatprep.subr.mxu0 0.0
    %2485 = vmatpush1.xpose.msra.mxu0 0.0
    %2486 = vmatprep.mubr.f32.mxu0 0.0
    %2487 = vmatmul.mubr.f32.gmra.mrb[0].mxu0 %v2418
    %v2488 = vpop.f32.mrb[0].mxu0
    %v2489 = vadd.f32 0.0, %v2488
    %v2490 = vpop.f32.mrb[0].mxu0
    %2491 = vdwg.mxu0
    %v2492 = vsel %vm226, %v2489, -inf
    %2493 = vmax.xlane.f32.xlu0 %v2492
    %v2494 = vpop.xlane.xlu0 %2493
    %v2495 = vsub.f32 %v2489, %v2494
    %v2496 = vmul.f32 %v2495, 1.442695
    %v2497 = vpow.pop %v2496
    %v2498 = vsel %vm226, %v2497, 0.0
    %2499 = vadd.xlane.f32.xlu0 %v2498
    %v2500 = vpop.xlane.xlu0 %2499
    %v2501 = vrcp.pop %v2500
    %v2502 = vmul.f32 %v2497, %v2501
    %2503 = vrot.lane.b32.xlu0 %v1588, 56
    %v2504 = vpop.permute.xlu0 %2503
    %v2507 = vsel %vm226, %v2502, 0
    %2509 = vmatprep.subr.mxu0 0.0
    %2510 = vmatpush1.msra.mxu0 %v2504
    %2511 = vmatprep.subr.mxu0 0.0
    %2512 = vmatpush1.msra.mxu0 0.0
    %2513 = vmatprep.subr.mxu0 0.0
    %2514 = vmatpush1.msra.mxu0 0.0
    %2515 = vmatprep.subr.mxu0 0.0
    %2516 = vmatpush1.msra.mxu0 0.0
    %2517 = vmatprep.subr.mxu0 0.0
    %2518 = vmatpush1.msra.mxu0 0.0
    %2519 = vmatprep.subr.mxu0 0.0
    %2520 = vmatpush1.msra.mxu0 0.0
    %2521 = vmatprep.subr.mxu0 0.0
    %2522 = vmatpush1.msra.mxu0 0.0
    %2523 = vmatprep.subr.mxu0 0.0
    %2524 = vmatpush1.msra.mxu0 0.0
    %2525 = vmatprep.subr.mxu0 0.0
    %2526 = vmatpush1.msra.mxu0 0.0
    %2527 = vmatprep.subr.mxu0 0.0
    %2528 = vmatpush1.msra.mxu0 0.0
    %2529 = vmatprep.subr.mxu0 0.0
    %2530 = vmatpush1.msra.mxu0 0.0
    %2531 = vmatprep.subr.mxu0 0.0
    %2532 = vmatpush1.msra.mxu0 0.0
    %2533 = vmatprep.subr.mxu0 0.0
    %2534 = vmatpush1.msra.mxu0 0.0
    %2535 = vmatprep.subr.mxu0 0.0
    %2536 = vmatpush1.msra.mxu0 0.0
    %2537 = vmatprep.subr.mxu0 0.0
    %2538 = vmatpush1.msra.mxu0 0.0
    %2539 = vmatprep.subr.mxu0 0.0
    %2540 = vmatpush1.msra.mxu0 0.0
    %2541 = vmatprep.subr.mxu0 0.0
    %2542 = vmatpush1.msra.mxu0 0.0
    %2543 = vmatprep.subr.mxu0 0.0
    %2544 = vmatpush1.msra.mxu0 0.0
    %2545 = vmatprep.subr.mxu0 0.0
    %2546 = vmatpush1.msra.mxu0 0.0
    %2547 = vmatprep.subr.mxu0 0.0
    %2548 = vmatpush1.msra.mxu0 0.0
    %2549 = vmatprep.subr.mxu0 0.0
    %2550 = vmatpush1.msra.mxu0 0.0
    %2551 = vmatprep.subr.mxu0 0.0
    %2552 = vmatpush1.msra.mxu0 0.0
    %2553 = vmatprep.subr.mxu0 0.0
    %2554 = vmatpush1.msra.mxu0 0.0
    %2555 = vmatprep.subr.mxu0 0.0
    %2556 = vmatpush1.msra.mxu0 0.0
    %2557 = vmatprep.subr.mxu0 0.0
    %2558 = vmatpush1.msra.mxu0 0.0
    %2559 = vmatprep.subr.mxu0 0.0
    %2560 = vmatpush1.msra.mxu0 0.0
    %2561 = vmatprep.subr.mxu0 0.0
    %2562 = vmatpush1.msra.mxu0 0.0
    %2563 = vmatprep.subr.mxu0 0.0
    %2564 = vmatpush1.msra.mxu0 0.0
    %2565 = vmatprep.subr.mxu0 0.0
    %2566 = vmatpush1.msra.mxu0 0.0
    %2567 = vmatprep.subr.mxu0 0.0
    %2568 = vmatpush1.msra.mxu0 0.0
    %2569 = vmatprep.subr.mxu0 0.0
    %2570 = vmatpush1.msra.mxu0 0.0
    %2571 = vmatprep.subr.mxu0 0.0
    %2572 = vmatpush1.msra.mxu0 0.0
    %2573 = vmatprep.mubr.f32.mxu0 0.0
    %2574 = vmatmul.mubr.f32.gmra.mrb[0].mxu0 %v2507
    %v2575 = vpop.f32.mrb[0].mxu0
    %v2576 = vadd.f32 0.0, %v2575
    %v2577 = vpop.f32.mrb[0].mxu0
    %2578 = vdwg.mxu0
    %2579 = vrot.lane.b32.xlu0 %v1590, 48
    %v2580 = vpop.permute.xlu0 %2579
    %2581 = vrot.lane.b32.xlu0 %v1588, 80
    %v2582 = vpop.permute.xlu0 %2581
    %v2583 = vsel %vm226, %v2580, 0
    %v2585 = vsel %vm226, %v2582, 0
    %2587 = vmatprep.subr.mxu0 0.0
    %2588 = vmatpush1.xpose.msra.mxu0 %v2585
    %2589 = vmatprep.subr.mxu0 0.0
    %2590 = vmatpush1.xpose.msra.mxu0 0.0
    %2591 = vmatprep.subr.mxu0 0.0
    %2592 = vmatpush1.xpose.msra.mxu0 0.0
    %2593 = vmatprep.subr.mxu0 0.0
    %2594 = vmatpush1.xpose.msra.mxu0 0.0
    %2595 = vmatprep.subr.mxu0 0.0
    %2596 = vmatpush1.xpose.msra.mxu0 0.0
    %2597 = vmatprep.subr.mxu0 0.0
    %2598 = vmatpush1.xpose.msra.mxu0 0.0
    %2599 = vmatprep.subr.mxu0 0.0
    %2600 = vmatpush1.xpose.msra.mxu0 0.0
    %2601 = vmatprep.subr.mxu0 0.0
    %2602 = vmatpush1.xpose.msra.mxu0 0.0
    %2603 = vmatprep.subr.mxu0 0.0
    %2604 = vmatpush1.xpose.msra.mxu0 0.0
    %2605 = vmatprep.subr.mxu0 0.0
    %2606 = vmatpush1.xpose.msra.mxu0 0.0
    %2607 = vmatprep.subr.mxu0 0.0
    %2608 = vmatpush1.xpose.msra.mxu0 0.0
    %2609 = vmatprep.subr.mxu0 0.0
    %2610 = vmatpush1.xpose.msra.mxu0 0.0
    %2611 = vmatprep.subr.mxu0 0.0
    %2612 = vmatpush1.xpose.msra.mxu0 0.0
    %2613 = vmatprep.subr.mxu0 0.0
    %2614 = vmatpush1.xpose.msra.mxu0 0.0
    %2615 = vmatprep.subr.mxu0 0.0
    %2616 = vmatpush1.xpose.msra.mxu0 0.0
    %2617 = vmatprep.subr.mxu0 0.0
    %2618 = vmatpush1.xpose.msra.mxu0 0.0
    %2619 = vmatprep.subr.mxu0 0.0
    %2620 = vmatpush1.xpose.msra.mxu0 0.0
    %2621 = vmatprep.subr.mxu0 0.0
    %2622 = vmatpush1.xpose.msra.mxu0 0.0
    %2623 = vmatprep.subr.mxu0 0.0
    %2624 = vmatpush1.xpose.msra.mxu0 0.0
    %2625 = vmatprep.subr.mxu0 0.0
    %2626 = vmatpush1.xpose.msra.mxu0 0.0
    %2627 = vmatprep.subr.mxu0 0.0
    %2628 = vmatpush1.xpose.msra.mxu0 0.0
    %2629 = vmatprep.subr.mxu0 0.0
    %2630 = vmatpush1.xpose.msra.mxu0 0.0
    %2631 = vmatprep.subr.mxu0 0.0
    %2632 = vmatpush1.xpose.msra.mxu0 0.0
    %2633 = vmatprep.subr.mxu0 0.0
    %2634 = vmatpush1.xpose.msra.mxu0 0.0
    %2635 = vmatprep.subr.mxu0 0.0
    %2636 = vmatpush1.xpose.msra.mxu0 0.0
    %2637 = vmatprep.subr.mxu0 0.0
    %2638 = vmatpush1.xpose.msra.mxu0 0.0
    %2639 = vmatprep.subr.mxu0 0.0
    %2640 = vmatpush1.xpose.msra.mxu0 0.0
    %2641 = vmatprep.subr.mxu0 0.0
    %2642 = vmatpush1.xpose.msra.mxu0 0.0
    %2643 = vmatprep.subr.mxu0 0.0
    %2644 = vmatpush1.xpose.msra.mxu0 0.0
    %2645 = vmatprep.subr.mxu0 0.0
    %2646 = vmatpush1.xpose.msra.mxu0 0.0
    %2647 = vmatprep.subr.mxu0 0.0
    %2648 = vmatpush1.xpose.msra.mxu0 0.0
    %2649 = vmatprep.subr.mxu0 0.0
    %2650 = vmatpush1.xpose.msra.mxu0 0.0
    %2651 = vmatprep.mubr.f32.mxu0 0.0
    %2652 = vmatmul.mubr.f32.gmra.mrb[0].mxu0 %v2583
    %v2653 = vpop.f32.mrb[0].mxu0
    %v2654 = vadd.f32 0.0, %v2653
    %v2655 = vpop.f32.mrb[0].mxu0
    %2656 = vdwg.mxu0
    %v2657 = vsel %vm226, %v2654, -inf
    %2658 = vmax.xlane.f32.xlu0 %v2657
    %v2659 = vpop.xlane.xlu0 %2658
    %v2660 = vsub.f32 %v2654, %v2659
    %v2661 = vmul.f32 %v2660, 1.442695
    %v2662 = vpow.pop %v2661
    %v2663 = vsel %vm226, %v2662, 0.0
    %2664 = vadd.xlane.f32.xlu0 %v2663
    %v2665 = vpop.xlane.xlu0 %2664
    %v2666 = vrcp.pop %v2665
    %v2667 = vmul.f32 %v2662, %v2666
    %2668 = vrot.lane.b32.xlu0 %v1588, 48
    %v2669 = vpop.permute.xlu0 %2668
    %v2672 = vsel %vm226, %v2667, 0
    %2674 = vmatprep.subr.mxu0 0.0
    %2675 = vmatpush1.msra.mxu0 %v2669
    %2676 = vmatprep.subr.mxu0 0.0
    %2677 = vmatpush1.msra.mxu0 0.0
    %2678 = vmatprep.subr.mxu0 0.0
    %2679 = vmatpush1.msra.mxu0 0.0
    %2680 = vmatprep.subr.mxu0 0.0
    %2681 = vmatpush1.msra.mxu0 0.0
    %2682 = vmatprep.subr.mxu0 0.0
    %2683 = vmatpush1.msra.mxu0 0.0
    %2684 = vmatprep.subr.mxu0 0.0
    %2685 = vmatpush1.msra.mxu0 0.0
    %2686 = vmatprep.subr.mxu0 0.0
    %2687 = vmatpush1.msra.mxu0 0.0
    %2688 = vmatprep.subr.mxu0 0.0
    %2689 = vmatpush1.msra.mxu0 0.0
    %2690 = vmatprep.subr.mxu0 0.0
    %2691 = vmatpush1.msra.mxu0 0.0
    %2692 = vmatprep.subr.mxu0 0.0
    %2693 = vmatpush1.msra.mxu0 0.0
    %2694 = vmatprep.subr.mxu0 0.0
    %2695 = vmatpush1.msra.mxu0 0.0
    %2696 = vmatprep.subr.mxu0 0.0
    %2697 = vmatpush1.msra.mxu0 0.0
    %2698 = vmatprep.subr.mxu0 0.0
    %2699 = vmatpush1.msra.mxu0 0.0
    %2700 = vmatprep.subr.mxu0 0.0
    %2701 = vmatpush1.msra.mxu0 0.0
    %2702 = vmatprep.subr.mxu0 0.0
    %2703 = vmatpush1.msra.mxu0 0.0
    %2704 = vmatprep.subr.mxu0 0.0
    %2705 = vmatpush1.msra.mxu0 0.0
    %2706 = vmatprep.subr.mxu0 0.0
    %2707 = vmatpush1.msra.mxu0 0.0
    %2708 = vmatprep.subr.mxu0 0.0
    %2709 = vmatpush1.msra.mxu0 0.0
    %2710 = vmatprep.subr.mxu0 0.0
    %2711 = vmatpush1.msra.mxu0 0.0
    %2712 = vmatprep.subr.mxu0 0.0
    %2713 = vmatpush1.msra.mxu0 0.0
    %2714 = vmatprep.subr.mxu0 0.0
    %2715 = vmatpush1.msra.mxu0 0.0
    %2716 = vmatprep.subr.mxu0 0.0
    %2717 = vmatpush1.msra.mxu0 0.0
    %2718 = vmatprep.subr.mxu0 0.0
    %2719 = vmatpush1.msra.mxu0 0.0
    %2720 = vmatprep.subr.mxu0 0.0
    %2721 = vmatpush1.msra.mxu0 0.0
    %2722 = vmatprep.subr.mxu0 0.0
    %2723 = vmatpush1.msra.mxu0 0.0
    %2724 = vmatprep.subr.mxu0 0.0
    %2725 = vmatpush1.msra.mxu0 0.0
    %2726 = vmatprep.subr.mxu0 0.0
    %2727 = vmatpush1.msra.mxu0 0.0
    %2728 = vmatprep.subr.mxu0 0.0
    %2729 = vmatpush1.msra.mxu0 0.0
    %2730 = vmatprep.subr.mxu0 0.0
    %2731 = vmatpush1.msra.mxu0 0.0
    %2732 = vmatprep.subr.mxu0 0.0
    %2733 = vmatpush1.msra.mxu0 0.0
    %2734 = vmatprep.subr.mxu0 0.0
    %2735 = vmatpush1.msra.mxu0 0.0
    %2736 = vmatprep.subr.mxu0 0.0
    %2737 = vmatpush1.msra.mxu0 0.0
    %2738 = vmatprep.mubr.f32.mxu0 0.0
    %2739 = vmatmul.mubr.f32.gmra.mrb[0].mxu0 %v2672
    %v2740 = vpop.f32.mrb[0].mxu0
    %v2741 = vadd.f32 0.0, %v2740
    %v2742 = vpop.f32.mrb[0].mxu0
    %2743 = vdwg.mxu0
    %2744 = vrot.lane.b32.xlu0 %v1590, 40
    %v2745 = vpop.permute.xlu0 %2744
    %2746 = vrot.lane.b32.xlu0 %v1588, 72
    %v2747 = vpop.permute.xlu0 %2746
    %v2748 = vsel %vm226, %v2745, 0
    %v2750 = vsel %vm226, %v2747, 0
    %2752 = vmatprep.subr.mxu0 0.0
    %2753 = vmatpush1.xpose.msra.mxu0 %v2750
    %2754 = vmatprep.subr.mxu0 0.0
    %2755 = vmatpush1.xpose.msra.mxu0 0.0
    %2756 = vmatprep.subr.mxu0 0.0
    %2757 = vmatpush1.xpose.msra.mxu0 0.0
    %2758 = vmatprep.subr.mxu0 0.0
    %2759 = vmatpush1.xpose.msra.mxu0 0.0
    %2760 = vmatprep.subr.mxu0 0.0
    %2761 = vmatpush1.xpose.msra.mxu0 0.0
    %2762 = vmatprep.subr.mxu0 0.0
    %2763 = vmatpush1.xpose.msra.mxu0 0.0
    %2764 = vmatprep.subr.mxu0 0.0
    %2765 = vmatpush1.xpose.msra.mxu0 0.0
    %2766 = vmatprep.subr.mxu0 0.0
    %2767 = vmatpush1.xpose.msra.mxu0 0.0
    %2768 = vmatprep.subr.mxu0 0.0
    %2769 = vmatpush1.xpose.msra.mxu0 0.0
    %2770 = vmatprep.subr.mxu0 0.0
    %2771 = vmatpush1.xpose.msra.mxu0 0.0
    %2772 = vmatprep.subr.mxu0 0.0
    %2773 = vmatpush1.xpose.msra.mxu0 0.0
    %2774 = vmatprep.subr.mxu0 0.0
    %2775 = vmatpush1.xpose.msra.mxu0 0.0
    %2776 = vmatprep.subr.mxu0 0.0
    %2777 = vmatpush1.xpose.msra.mxu0 0.0
    %2778 = vmatprep.subr.mxu0 0.0
    %2779 = vmatpush1.xpose.msra.mxu0 0.0
    %2780 = vmatprep.subr.mxu0 0.0
    %2781 = vmatpush1.xpose.msra.mxu0 0.0
    %2782 = vmatprep.subr.mxu0 0.0
    %2783 = vmatpush1.xpose.msra.mxu0 0.0
    %2784 = vmatprep.subr.mxu0 0.0
    %2785 = vmatpush1.xpose.msra.mxu0 0.0
    %2786 = vmatprep.subr.mxu0 0.0
    %2787 = vmatpush1.xpose.msra.mxu0 0.0
    %2788 = vmatprep.subr.mxu0 0.0
    %2789 = vmatpush1.xpose.msra.mxu0 0.0
    %2790 = vmatprep.subr.mxu0 0.0
    %2791 = vmatpush1.xpose.msra.mxu0 0.0
    %2792 = vmatprep.subr.mxu0 0.0
    %2793 = vmatpush1.xpose.msra.mxu0 0.0
    %2794 = vmatprep.subr.mxu0 0.0
    %2795 = vmatpush1.xpose.msra.mxu0 0.0
    %2796 = vmatprep.subr.mxu0 0.0
    %2797 = vmatpush1.xpose.msra.mxu0 0.0
    %2798 = vmatprep.subr.mxu0 0.0
    %2799 = vmatpush1.xpose.msra.mxu0 0.0
    %2800 = vmatprep.subr.mxu0 0.0
    %2801 = vmatpush1.xpose.msra.mxu0 0.0
    %2802 = vmatprep.subr.mxu0 0.0
    %2803 = vmatpush1.xpose.msra.mxu0 0.0
    %2804 = vmatprep.subr.mxu0 0.0
    %2805 = vmatpush1.xpose.msra.mxu0 0.0
    %2806 = vmatprep.subr.mxu0 0.0
    %2807 = vmatpush1.xpose.msra.mxu0 0.0
    %2808 = vmatprep.subr.mxu0 0.0
    %2809 = vmatpush1.xpose.msra.mxu0 0.0
    %2810 = vmatprep.subr.mxu0 0.0
    %2811 = vmatpush1.xpose.msra.mxu0 0.0
    %2812 = vmatprep.subr.mxu0 0.0
    %2813 = vmatpush1.xpose.msra.mxu0 0.0
    %2814 = vmatprep.subr.mxu0 0.0
    %2815 = vmatpush1.xpose.msra.mxu0 0.0
    %2816 = vmatprep.mubr.f32.mxu0 0.0
    %2817 = vmatmul.mubr.f32.gmra.mrb[0].mxu0 %v2748
    %v2818 = vpop.f32.mrb[0].mxu0
    %v2819 = vadd.f32 0.0, %v2818
    %v2820 = vpop.f32.mrb[0].mxu0
    %2821 = vdwg.mxu0
    %v2822 = vsel %vm226, %v2819, -inf
    %2823 = vmax.xlane.f32.xlu0 %v2822
    %v2824 = vpop.xlane.xlu0 %2823
    %v2825 = vsub.f32 %v2819, %v2824
    %v2826 = vmul.f32 %v2825, 1.442695
    %v2827 = vpow.pop %v2826
    %v2828 = vsel %vm226, %v2827, 0.0
    %2829 = vadd.xlane.f32.xlu0 %v2828
    %v2830 = vpop.xlane.xlu0 %2829
    %v2831 = vrcp.pop %v2830
    %v2832 = vmul.f32 %v2827, %v2831
    %2833 = vrot.lane.b32.xlu0 %v1588, 40
    %v2834 = vpop.permute.xlu0 %2833
    %v2837 = vsel %vm226, %v2832, 0
    %2839 = vmatprep.subr.mxu0 0.0
    %2840 = vmatpush1.msra.mxu0 %v2834
    %2841 = vmatprep.subr.mxu0 0.0
    %2842 = vmatpush1.msra.mxu0 0.0
    %2843 = vmatprep.subr.mxu0 0.0
    %2844 = vmatpush1.msra.mxu0 0.0
    %2845 = vmatprep.subr.mxu0 0.0
    %2846 = vmatpush1.msra.mxu0 0.0
    %2847 = vmatprep.subr.mxu0 0.0
    %2848 = vmatpush1.msra.mxu0 0.0
    %2849 = vmatprep.subr.mxu0 0.0
    %2850 = vmatpush1.msra.mxu0 0.0
    %2851 = vmatprep.subr.mxu0 0.0
    %2852 = vmatpush1.msra.mxu0 0.0
    %2853 = vmatprep.subr.mxu0 0.0
    %2854 = vmatpush1.msra.mxu0 0.0
    %2855 = vmatprep.subr.mxu0 0.0
    %2856 = vmatpush1.msra.mxu0 0.0
    %2857 = vmatprep.subr.mxu0 0.0
    %2858 = vmatpush1.msra.mxu0 0.0
    %2859 = vmatprep.subr.mxu0 0.0
    %2860 = vmatpush1.msra.mxu0 0.0
    %2861 = vmatprep.subr.mxu0 0.0
    %2862 = vmatpush1.msra.mxu0 0.0
    %2863 = vmatprep.subr.mxu0 0.0
    %2864 = vmatpush1.msra.mxu0 0.0
    %2865 = vmatprep.subr.mxu0 0.0
    %2866 = vmatpush1.msra.mxu0 0.0
    %2867 = vmatprep.subr.mxu0 0.0
    %2868 = vmatpush1.msra.mxu0 0.0
    %2869 = vmatprep.subr.mxu0 0.0
    %2870 = vmatpush1.msra.mxu0 0.0
    %2871 = vmatprep.subr.mxu0 0.0
    %2872 = vmatpush1.msra.mxu0 0.0
    %2873 = vmatprep.subr.mxu0 0.0
    %2874 = vmatpush1.msra.mxu0 0.0
    %2875 = vmatprep.subr.mxu0 0.0
    %2876 = vmatpush1.msra.mxu0 0.0
    %2877 = vmatprep.subr.mxu0 0.0
    %2878 = vmatpush1.msra.mxu0 0.0
    %2879 = vmatprep.subr.mxu0 0.0
    %2880 = vmatpush1.msra.mxu0 0.0
    %2881 = vmatprep.subr.mxu0 0.0
    %2882 = vmatpush1.msra.mxu0 0.0
    %2883 = vmatprep.subr.mxu0 0.0
    %2884 = vmatpush1.msra.mxu0 0.0
    %2885 = vmatprep.subr.mxu0 0.0
    %2886 = vmatpush1.msra.mxu0 0.0
    %2887 = vmatprep.subr.mxu0 0.0
    %2888 = vmatpush1.msra.mxu0 0.0
    %2889 = vmatprep.subr.mxu0 0.0
    %2890 = vmatpush1.msra.mxu0 0.0
    %2891 = vmatprep.subr.mxu0 0.0
    %2892 = vmatpush1.msra.mxu0 0.0
    %2893 = vmatprep.subr.mxu0 0.0
    %2894 = vmatpush1.msra.mxu0 0.0
    %2895 = vmatprep.subr.mxu0 0.0
    %2896 = vmatpush1.msra.mxu0 0.0
    %2897 = vmatprep.subr.mxu0 0.0
    %2898 = vmatpush1.msra.mxu0 0.0
    %2899 = vmatprep.subr.mxu0 0.0
    %2900 = vmatpush1.msra.mxu0 0.0
    %2901 = vmatprep.subr.mxu0 0.0
    %2902 = vmatpush1.msra.mxu0 0.0
    %2903 = vmatprep.mubr.f32.mxu0 0.0
    %2904 = vmatmul.mubr.f32.gmra.mrb[0].mxu0 %v2837
    %v2905 = vpop.f32.mrb[0].mxu0
    %v2906 = vadd.f32 0.0, %v2905
    %v2907 = vpop.f32.mrb[0].mxu0
    %2908 = vdwg.mxu0
    %2910 = vrot.lane.b32.xlu0 %v1916, 8
    %v2911 = vpop.permute.xlu0 %2910
    %2914 = vrot.lane.b32.xlu0 %v2081, 16
    %v2915 = vpop.permute.xlu0 %2914
    %2918 = vrot.lane.b32.xlu0 %v2246, 24
    %v2919 = vpop.permute.xlu0 %2918
    %2922 = vrot.lane.b32.xlu0 %v2411, 32
    %v2923 = vpop.permute.xlu0 %2922
    %2926 = vrot.lane.b32.xlu0 %v2576, 40
    %v2927 = vpop.permute.xlu0 %2926
    %2930 = vrot.lane.b32.xlu0 %v2741, 48
    %v2931 = vpop.permute.xlu0 %2930
    %2934 = vrot.lane.b32.xlu0 %v2906, 56
    %v2935 = vpop.permute.xlu0 %2934
    %v2937 = vsel %vm226, %v1751, %v2911
    %v2938 = vsel %vm1574, %v2937, %v2915
    %v2939 = vsel %vm1576, %v2938, %v2919
    %v2940 = vsel %vm45, %v2939, %v2923
    %v2941 = vsel %vm1579, %v2940, %v2927
    %v2942 = vsel %vm1581, %v2941, %v2931
    %v2943 = vsel %vm1583, %v2942, %v2935
    %s2944 = scalar_lea.vmem [#allocation4], 8
    %2945 = vst.msk [vmem:[%s2944] sm:$0xff] %vm1585, %v2943
    %v2946 = vld [vmem:[#allocation4] sm:$0xff]
    %v2947 = vld [vmem:[#allocation4 + $0x8] sm:$0xff]
    %v2948 = vld [vmem:[%s6] sm:$0xff]
    %v2949 = vld [vmem:[%s6 + $0x8] sm:$0xff]
    %v2950 = vld [vmem:[%s6 + $0x10] sm:$0xff]
    %v2951 = vld [vmem:[%s6 + $0x18] sm:$0xff]
    %v2952 = vld [vmem:[%s6 + $0x20] sm:$0xff]
    %v2953 = vld [vmem:[%s6 + $0x28] sm:$0xff]
    %v2954 = vld [vmem:[%s6 + $0x30] sm:$0xff]
    %v2955 = vld [vmem:[%s6 + $0x38] sm:$0xff]
    %v2956 = vld [vmem:[%s7] sm:$0x1]
    %v2958 = vlaneseq
    %v2959 = vshrl.u32 %v2958, 7
    %v2960 = vsub.s32 0, %v2959
    %v2961 = vrot.slane %v2956, %v2960
    %v2964 = vsel %vm1585, %v2946, 0
    %v2967 = vsel %vm1585, %v2947, 0
    %2969 = vmatprep.subr.mxu0 0.0
    %2970 = vmatpush1.msra.mxu0 %v2948
    %2971 = vmatprep.subr.mxu0 0.0
    %2972 = vmatpush1.msra.mxu0 %v2949
    %2973 = vmatprep.subr.mxu0 0.0
    %2974 = vmatpush1.msra.mxu0 %v2950
    %2975 = vmatprep.subr.mxu0 0.0
    %2976 = vmatpush1.msra.mxu0 %v2951
    %2977 = vmatprep.subr.mxu0 0.0
    %2978 = vmatpush1.msra.mxu0 %v2952
    %2979 = vmatprep.subr.mxu0 0.0
    %2980 = vmatpush1.msra.mxu0 %v2953
    %2981 = vmatprep.subr.mxu0 0.0
    %2982 = vmatpush1.msra.mxu0 %v2954
    %2983 = vmatprep.subr.mxu0 0.0
    %2984 = vmatpush1.msra.mxu0 %v2955
    %2985 = vmatprep.subr.mxu0 0.0
    %2986 = vmatpush1.msra.mxu0 0.0
    %2987 = vmatprep.subr.mxu0 0.0
    %2988 = vmatpush1.msra.mxu0 0.0
    %2989 = vmatprep.subr.mxu0 0.0
    %2990 = vmatpush1.msra.mxu0 0.0
    %2991 = vmatprep.subr.mxu0 0.0
    %2992 = vmatpush1.msra.mxu0 0.0
    %2993 = vmatprep.subr.mxu0 0.0
    %2994 = vmatpush1.msra.mxu0 0.0
    %2995 = vmatprep.subr.mxu0 0.0
    %2996 = vmatpush1.msra.mxu0 0.0
    %2997 = vmatprep.subr.mxu0 0.0
    %2998 = vmatpush1.msra.mxu0 0.0
    %2999 = vmatprep.subr.mxu0 0.0
    %3000 = vmatpush1.msra.mxu0 0.0
    %3001 = vmatprep.subr.mxu0 0.0
    %3002 = vmatpush1.msra.mxu0 0.0
    %3003 = vmatprep.subr.mxu0 0.0
    %3004 = vmatpush1.msra.mxu0 0.0
    %3005 = vmatprep.subr.mxu0 0.0
    %3006 = vmatpush1.msra.mxu0 0.0
    %3007 = vmatprep.subr.mxu0 0.0
    %3008 = vmatpush1.msra.mxu0 0.0
    %3009 = vmatprep.subr.mxu0 0.0
    %3010 = vmatpush1.msra.mxu0 0.0
    %3011 = vmatprep.subr.mxu0 0.0
    %3012 = vmatpush1.msra.mxu0 0.0
    %3013 = vmatprep.subr.mxu0 0.0
    %3014 = vmatpush1.msra.mxu0 0.0
    %3015 = vmatprep.subr.mxu0 0.0
    %3016 = vmatpush1.msra.mxu0 0.0
    %3017 = vmatprep.subr.mxu0 0.0
    %3018 = vmatpush1.msra.mxu0 0.0
    %3019 = vmatprep.subr.mxu0 0.0
    %3020 = vmatpush1.msra.mxu0 0.0
    %3021 = vmatprep.subr.mxu0 0.0
    %3022 = vmatpush1.msra.mxu0 0.0
    %3023 = vmatprep.subr.mxu0 0.0
    %3024 = vmatpush1.msra.mxu0 0.0
    %3025 = vmatprep.subr.mxu0 0.0
    %3026 = vmatpush1.msra.mxu0 0.0
    %3027 = vmatprep.subr.mxu0 0.0
    %3028 = vmatpush1.msra.mxu0 0.0
    %3029 = vmatprep.subr.mxu0 0.0
    %3030 = vmatpush1.msra.mxu0 0.0
    %3031 = vmatprep.subr.mxu0 0.0
    %3032 = vmatpush1.msra.mxu0 0.0
    %3033 = vmatprep.mubr.f32.mxu0 0.0
    %3034 = vmatmul.mubr.f32.gmra.mrb[0].mxu0 %v2964
    %v3035 = vpop.f32.mrb[0].mxu0
    %v3036 = vadd.f32 %v2961, %v3035
    %v3037 = vpop.f32.mrb[0].mxu0
    %3038 = vmatprep.mubr.f32.mxu0 0.0
    %3039 = vmatmul.mubr.f32.gmra.mrb[0].mxu0 %v2967
    %v3040 = vpop.f32.mrb[0].mxu0
    %v3041 = vadd.f32 %v2961, %v3040
    %v3042 = vpop.f32.mrb[0].mxu0
    %3043 = vdwg.mxu0
    %v3044 = vmul.f32 %v3036, 0.5
    %v3045 = vmul.f32 %v3041, 0.5
    %v3046 = vmul.f32 %v3036, 0.70710677
    %v3047 = vmul.f32 %v3041, 0.70710677
    %v3048 = verf.f32.pop %v3046
    %v3049 = verf.f32.pop %v3047
    %v3050 = vadd.f32 %v3048, 1.0
    %v3051 = vadd.f32 %v3049, 1.0
    %v3052 = vmul.f32 %v3044, %v3050
    %v3053 = vmul.f32 %v3045, %v3051
    %3054 = vst.msk [vmem:[#allocation5] sm:$0xff] %vm45, %v3052
    %3055 = vst.msk [vmem:[#allocation5 + $0x8] sm:$0xff] %vm45, %v3053
    // Predicated region
    $region34: #{tpu_custom_call.1} parent=1 // pred_check
      _
    $region35: #{tpu_custom_call.1} parent=1 // pred_check_branch
      %3057 = sbr.rel (0) target = $region37
    $region36: #{tpu_custom_call.1} parent=1 // pred_region
      %s3059 = ssub.s32 256, 256
      %3060 = vsyncadd [#allocation6], %s3059
      %s3061 = sshll.u32 [#allocation5], 4
      %s3062 = int_to_ptr.vmem [resolvable:$true] %s3061
      %3067 = dma.vmem_to_hbm [thread:$0]  %s3062, 256, %s8, [#allocation6], 128, 128, 8
    $region37: #{tpu_custom_call.1} parent=1 // pred_fallthru
      _
    // Predicated region
    $region38: #{tpu_custom_call.1} parent=1 // pred_check
      _
    $region39: #{tpu_custom_call.1} parent=1 // pred_check_branch
      %3069 = sbr.rel (0) target = $region41
    $region40: #{tpu_custom_call.1} parent=1 // pred_region
      %3070 = dma.done [#allocation6], 256
    $region41: #{tpu_custom_call.1} parent=1 // pred_fallthru
      _
    %3071 = vsyncpa [#allocation6], 1

</llo_original>
